<compile_context>
chip_gen: v7x
topology: tpu7x:2x2x1
jax: 0.10.0
libtpu: 0.0.40
codegen_flags: <defaults>
</compile_context>

<pallas_src>
import functools
import math

import jax
import jax.numpy as jnp
from jax.experimental import pallas as pl
from jax.experimental.pallas import tpu as pltpu


# ----------------------------- config ("opt") --------------------------------
class Opt:
    word_num = 100
    word_dim = 16          # dw
    pos_num = 20
    pos_dim = 8            # dp
    hidden_size = 32       # H (PCNN filters)
    rel_num = 8
    seq_len = 16           # L
    drop_out = 0.5         # eval mode -> identity
    lam = 0.05             # entity-aware gate temperature


# ------------------------------ fused Pallas kernel ---------------------------
def seg_one_block_kernel(mask_ref, xpe_ref,
                         wg_ref, bg_ref,
                         wc_ref, bc_ref,
                         w1_ref, b1_ref, v_ref,
                         fc1w_ref, fc1b_ref, fc2w_ref, fc2b_ref,
                         clsw_ref, clsb_ref,
                         o_ref, *, lam, TB, L, dw, H):
    """SeG_ONE forward for TB sentences (TB*L token rows) per grid step.

    xpe_ref : (TB*L, De+Dp) f32 slab, lanes = [Xe | Xp]
    mask_ref: (TB*L, 1) int32 piecewise-pool mask (0..3)
    """
    f32 = jnp.float32
    bf16 = jnp.bfloat16
    rows = TB * L
    De = 3 * dw

    xpe = xpe_ref[...]                                   # (rows, De+Dp) f32
    mask = mask_ref[...]                                 # (rows, 1) int32
    xe = xpe[:, :De]                                     # (rows, De)

    # ---- merged PCNN/SAN entity-aware gate fusion: one block-diag matmul ----
    # z columns: [0:De]=xph_pcnn, [De:2De]=xph_san, [2De:3De]=gate_pcnn, [3De:4De]=gate_san
    z = jnp.dot(xpe.astype(bf16), wg_ref[...],
                preferred_element_type=f32) + bg_ref[...]          # (rows, 4De)
    xph = jnp.tanh(z[:, :2 * De])
    gate = jax.nn.sigmoid(lam * z[:, 2 * De:])
    gp, gs = gate[:, :De], gate[:, De:]
    x_pcnn = gp * xph[:, :De] + (1.0 - gp) * xe                     # (rows, De)
    x_san = gs * xph[:, De:] + (1.0 - gs) * xe                      # (rows, De)

    # ---- PCNN conv1d(window=3, pad=1): shifted rows, 3 accumulated matmuls ----
    pos = jnp.mod(jax.lax.broadcasted_iota(jnp.int32, (rows, 1), 0), L)
    x_prev = jnp.where(pos >= 1, pltpu.roll(x_pcnn, shift=1, axis=0), 0.0)
    x_next = jnp.where(pos <= L - 2, pltpu.roll(x_pcnn, shift=rows - 1, axis=0), 0.0)
    conv = (jnp.dot(x_prev.astype(bf16), wc_ref[0:De, :], preferred_element_type=f32)
            + jnp.dot(x_pcnn.astype(bf16), wc_ref[De:2 * De, :], preferred_element_type=f32)
            + jnp.dot(x_next.astype(bf16), wc_ref[2 * De:, :], preferred_element_type=f32)
            + bc_ref[...])                                          # (rows, H)

    # ---- piecewise max pooling over the 3 mask pieces, then relu ----
    conv3 = conv.reshape(TB, L, H)
    mask3 = mask.reshape(TB, L, 1)
    pieces = [jnp.max(jnp.where(mask3 == p, conv3, -1e30), axis=1)
              for p in (1, 2, 3)]                                   # 3 x (TB, H)
    s = jnp.maximum(jnp.concatenate(pieces, axis=-1), 0.0)          # (TB, 3H)

    # ---- SAN: additive self-attention pooling over Xe (exact f32 softmax) ----
    h = jnp.tanh(jnp.dot(x_san.astype(bf16), w1_ref[...],
                         preferred_element_type=f32) + b1_ref[...])  # (rows, De)
    score = jnp.sum(h * v_ref[...], axis=-1, keepdims=True)          # (rows, 1)
    score3 = score.reshape(TB, L, 1)
    score3 = score3 - jnp.max(score3, axis=1, keepdims=True)
    e = jnp.exp(score3)
    a = e / jnp.sum(e, axis=1, keepdims=True)                        # (TB, L, 1)
    u = jnp.sum(a * xe.reshape(TB, L, De), axis=1)                   # (TB, De)

    # ---- selective gate + classifier (dropout = identity in eval) ----
    hh = jnp.tanh(jnp.dot(u.astype(bf16), fc1w_ref[...],
                          preferred_element_type=f32) + fc1b_ref[...])          # (TB, De)
    g = jax.nn.sigmoid(jnp.dot(hh.astype(bf16), fc2w_ref[...],
                               preferred_element_type=f32) + fc2b_ref[...])     # (TB, 3H)
    xg = g * s
    o_ref[...] = jnp.dot(xg.astype(bf16), clsw_ref[...],
                         preferred_element_type=f32) + clsb_ref[...]            # (TB, Rp)


# ------------------------------- wrapper ---------------------------------------
def seg_one_forward(pp, opt, X, X_Pos1, X_Pos2, X_Pos3, X_Pos4,
                    X_Ent1, X_Ent2, X_Mask, *, batch_tile=8):
    """SeG_ONE forward: XLA-side embedding gathers + one row-tiled pallas_call."""
    # TODO(synk): X_Pos3/X_Pos4 semantics live inside Entity_Aware_Embedding whose
    # source is not provided; they are accepted but unused here.
    del X_Pos3, X_Pos4
    B, L = X.shape
    dw, dp, H, R = opt.word_dim, opt.pos_dim, opt.hidden_size, opt.rel_num
    De, Dp = 3 * dw, dw + 2 * dp
    Rp = pp["cls_W"].shape[1]  # classifier output padded to a multiple of 128

    # Embedding gathers stay in XLA (tables live in HBM, never enter kernel VMEM).
    xw = jnp.take(pp["word_emb"], X, axis=0)                          # (B, L, dw)
    p1 = jnp.take(pp["pos1_emb"], X_Pos1, axis=0)                     # (B, L, dp)
    p2 = jnp.take(pp["pos2_emb"], X_Pos2, axis=0)                     # (B, L, dp)
    e1 = jnp.broadcast_to(jnp.take(pp["word_emb"], X_Ent1, axis=0)[:, None, :], (B, L, dw))
    e2 = jnp.broadcast_to(jnp.take(pp["word_emb"], X_Ent2, axis=0)[:, None, :], (B, L, dw))
    xe = jnp.concatenate([xw, e1, e2], axis=-1)                       # (B, L, De)
    xp = jnp.concatenate([xw, p1, p2], axis=-1)                       # (B, L, Dp)
    xpe = jnp.concatenate([xe, xp], axis=-1).reshape(B * L, De + Dp).astype(jnp.float32)
    mask = X_Mask.astype(jnp.int32).reshape(B * L, 1)

    # Batch tile: multiple of 8 rows in the output block (or whole batch).
    TB = batch_tile if (B % batch_tile == 0 and batch_tile % 8 == 0) else B
    grid = (B // TB,)

    kern = functools.partial(seg_one_block_kernel, lam=opt.lam,
                             TB=TB, L=L, dw=dw, H=H)

    rows = B * L
    w_bytes = sum(int(pp[k].size) * pp[k].dtype.itemsize
                  for k in ("Wg", "bg", "Wc", "bc", "W1", "b1", "v",
                            "fc1_W", "fc1_b", "fc2_W", "fc2_b", "cls_W", "cls_b"))
    cost = pl.CostEstimate(
        flops=(2 * rows * (De + Dp) * 4 * De + 6 * rows * De * H + 2 * rows * De * De
               + 2 * B * (De * De + De * 3 * H + 3 * H * Rp)),
        transcendentals=rows * (4 * De + 2),
        bytes_accessed=int(xpe.size) * 4 + int(mask.size) * 4 + w_bytes + B * Rp * 4)

    out = pl.pallas_call(
        kern,
        out_shape=jax.ShapeDtypeStruct((B, Rp), jnp.float32),
        grid_spec=pltpu.PrefetchScalarGridSpec(
            num_scalar_prefetch=0,
            grid=grid,
            in_specs=[
                pl.BlockSpec((TB * L, 1), lambda i: (i, 0)),            # mask slab
                pl.BlockSpec((TB * L, De + Dp), lambda i: (i, 0)),      # [Xe|Xp] slab
                pl.BlockSpec(pp["Wg"].shape, lambda i: (0, 0)),
                pl.BlockSpec(pp["bg"].shape, lambda i: (0, 0)),
                pl.BlockSpec(pp["Wc"].shape, lambda i: (0, 0)),
                pl.BlockSpec(pp["bc"].shape, lambda i: (0, 0)),
                pl.BlockSpec(pp["W1"].shape, lambda i: (0, 0)),
                pl.BlockSpec(pp["b1"].shape, lambda i: (0, 0)),
                pl.BlockSpec(pp["v"].shape, lambda i: (0, 0)),
                pl.BlockSpec(pp["fc1_W"].shape, lambda i: (0, 0)),
                pl.BlockSpec(pp["fc1_b"].shape, lambda i: (0, 0)),
                pl.BlockSpec(pp["fc2_W"].shape, lambda i: (0, 0)),
                pl.BlockSpec(pp["fc2_b"].shape, lambda i: (0, 0)),
                pl.BlockSpec(pp["cls_W"].shape, lambda i: (0, 0)),
                pl.BlockSpec(pp["cls_b"].shape, lambda i: (0, 0)),
            ],
            out_specs=pl.BlockSpec((TB, Rp), lambda i: (i, 0)),
        ),
        compiler_params=pltpu.CompilerParams(
            dimension_semantics=("parallel",),
            vmem_limit_bytes=32 * 1024 * 1024),
        cost_estimate=cost,
    )(mask, xpe,
      pp["Wg"], pp["bg"], pp["Wc"], pp["bc"],
      pp["W1"], pp["b1"], pp["v"],
      pp["fc1_W"], pp["fc1_b"], pp["fc2_W"], pp["fc2_b"],
      pp["cls_W"], pp["cls_b"])
    return out[:, :R]


# ------------------------------ param init -------------------------------------
def xavier_uniform(key, shape):
    fan_in, fan_out = shape
    bound = math.sqrt(6.0 / (fan_in + fan_out))
    return jax.random.uniform(key, shape, jnp.float32, -bound, bound)


def init_params(key, opt):
    dw, dp, H = opt.word_dim, opt.pos_dim, opt.hidden_size
    Dp, De = dw + 2 * dp, 3 * dw
    ks = iter(jax.random.split(key, 32))
    n = lambda shape, scale=0.1: scale * jax.random.normal(next(ks), shape, jnp.float32)
    return {
        # embeddings
        "word_emb": n((opt.word_num, dw)),
        "pos1_emb": n((opt.pos_num, dp)),
        "pos2_emb": n((opt.pos_num, dp)),
        # PCNN: gate fusion + conv (window=3 split into 3 taps)
        "pcnn_Wp": xavier_uniform(next(ks), (Dp, De)), "pcnn_bp": jnp.zeros((1, De)),
        "pcnn_Wa": xavier_uniform(next(ks), (De, De)), "pcnn_ba": jnp.zeros((1, De)),
        "pcnn_Wc0": xavier_uniform(next(ks), (De, H)),
        "pcnn_Wc1": xavier_uniform(next(ks), (De, H)),
        "pcnn_Wc2": xavier_uniform(next(ks), (De, H)),
        "pcnn_bc": jnp.zeros((1, H)),
        # SAN: gate fusion + additive attention
        "san_Wp": xavier_uniform(next(ks), (Dp, De)), "san_bp": jnp.zeros((1, De)),
        "san_Wa": xavier_uniform(next(ks), (De, De)), "san_ba": jnp.zeros((1, De)),
        "san_W1": xavier_uniform(next(ks), (De, De)), "san_b1": jnp.zeros((1, De)),
        "san_v": xavier_uniform(next(ks), (De, 1)),
        # head: fc1 / fc2 / classifier (xavier_uniform + zero bias, as init_weight())
        "fc1_W": xavier_uniform(next(ks), (3 * dw, 3 * dw)), "fc1_b": jnp.zeros((1, 3 * dw)),
        "fc2_W": xavier_uniform(next(ks), (3 * dw, 3 * H)), "fc2_b": jnp.zeros((1, 3 * H)),
        "cls_W": xavier_uniform(next(ks), (3 * H, opt.rel_num)),
        "cls_b": jnp.zeros((1, opt.rel_num)),
    }


def prepare_params(p, opt):
    """One-time host-side packing:
       * block-diagonal merged gate-fusion weight (xe rows -> gates, xp rows -> xph),
       * stacked 3-tap conv weight,
       * classifier padded to a 128-lane output,
       * MXU weights pre-cast to bf16 (biases / tables stay f32)."""
    dw, dp, H, R = opt.word_dim, opt.pos_dim, opt.hidden_size, opt.rel_num
    De, Dp = 3 * dw, dw + 2 * dp
    Rp = ((R + 127) // 128) * 128
    bf = jnp.bfloat16

    wg = jnp.concatenate([
        # xe rows: contribute to gate columns [2De:4De]
        jnp.concatenate([jnp.zeros((De, 2 * De), jnp.float32), p["pcnn_Wa"], p["san_Wa"]], axis=1),
        # xp rows: contribute to xph columns [0:2De]
        jnp.concatenate([p["pcnn_Wp"], p["san_Wp"], jnp.zeros((Dp, 2 * De), jnp.float32)], axis=1),
    ], axis=0)                                                         # (De+Dp, 4De)
    bg = jnp.concatenate([p["pcnn_bp"], p["san_bp"], p["pcnn_ba"], p["san_ba"]], axis=1)

    return {
        "word_emb": p["word_emb"], "pos1_emb": p["pos1_emb"], "pos2_emb": p["pos2_emb"],
        "Wg": wg.astype(bf), "bg": bg,
        "Wc": jnp.concatenate([p["pcnn_Wc0"], p["pcnn_Wc1"], p["pcnn_Wc2"]], axis=0).astype(bf),
        "bc": p["pcnn_bc"],
        "W1": p["san_W1"].astype(bf), "b1": p["san_b1"], "v": p["san_v"].T,   # (1, De) f32
        "fc1_W": p["fc1_W"].astype(bf), "fc1_b": p["fc1_b"],
        "fc2_W": p["fc2_W"].astype(bf), "fc2_b": p["fc2_b"],
        "cls_W": jnp.pad(p["cls_W"], ((0, 0), (0, Rp - R))).astype(bf),       # (3H, 128)
        "cls_b": jnp.pad(p["cls_b"], ((0, 0), (0, Rp - R))),                  # (1, 128)
    }


# --------------------------------- main ----------------------------------------
if __name__ == "__main__":
    opt = Opt()
    B, L = 16, opt.seq_len   # B=16 -> TB=8, grid=(2,) exercises the parallel grid

    key = jax.random.PRNGKey(0)
    kp, kx, k1, k2, k3, k4, ke1, ke2 = jax.random.split(key, 8)
    params = init_params(kp, opt)
    prepped = prepare_params(params, opt)

    X = jax.random.randint(kx, (B, L), 0, opt.word_num)
    X_Pos1 = jax.random.randint(k1, (B, L), 0, opt.pos_num)
    X_Pos2 = jax.random.randint(k2, (B, L), 0, opt.pos_num)
    X_Pos3 = jax.random.randint(k3, (B, L), 0, opt.pos_num)
    X_Pos4 = jax.random.randint(k4, (B, L), 0, opt.pos_num)
    X_Ent1 = jax.random.randint(ke1, (B,), 0, opt.word_num)
    X_Ent2 = jax.random.randint(ke2, (B,), 0, opt.word_num)
    # piecewise mask: piece 1 / 2 / 3 with trailing padding (0)
    t = jnp.arange(L)[None, :]
    X_Mask = jnp.where(t < 5, 1, jnp.where(t < 10, 2, jnp.where(t < 14, 3, 0)))
    X_Mask = jnp.broadcast_to(X_Mask, (B, L)).astype(jnp.int32)

    fwd = jax.jit(functools.partial(seg_one_forward, prepped, opt))
    logits = fwd(X, X_Pos1, X_Pos2, X_Pos3, X_Pos4, X_Ent1, X_Ent2, X_Mask)
    jax.block_until_ready(logits)
    assert logits.shape == (B, opt.rel_num)
    assert bool(jnp.all(jnp.isfinite(logits)))
    print("KERNEL_OK")
</pallas_src>

<mosaic_0001>
module attributes {stable_mosaic.version = 11 : i64} {
  func.func @seg_one_block_kernel(%arg0: i32, %arg1: memref<128x1xi32, #tpu.memory_space<vmem>>, %arg2: memref<128x80xf32, #tpu.memory_space<vmem>>, %arg3: memref<80x192xbf16, #tpu.memory_space<vmem>>, %arg4: memref<1x192xf32, #tpu.memory_space<vmem>>, %arg5: memref<144x32xbf16, #tpu.memory_space<vmem>>, %arg6: memref<1x32xf32, #tpu.memory_space<vmem>>, %arg7: memref<48x48xbf16, #tpu.memory_space<vmem>>, %arg8: memref<1x48xf32, #tpu.memory_space<vmem>>, %arg9: memref<1x48xf32, #tpu.memory_space<vmem>>, %arg10: memref<48x48xbf16, #tpu.memory_space<vmem>>, %arg11: memref<1x48xf32, #tpu.memory_space<vmem>>, %arg12: memref<48x96xbf16, #tpu.memory_space<vmem>>, %arg13: memref<1x96xf32, #tpu.memory_space<vmem>>, %arg14: memref<96x128xbf16, #tpu.memory_space<vmem>>, %arg15: memref<1x128xf32, #tpu.memory_space<vmem>>, %arg16: memref<8x128xf32, #tpu.memory_space<vmem>>) attributes {dimension_semantics = [#tpu.dimension_semantics<parallel>], iteration_bounds = array<i64: 2>, scalar_prefetch = 0 : i64, scratch_operands = 0 : i64, tpu.core_type = #tpu.core_type<tc>, window_params = [{transform_indices = @transform_0, window_bounds = array<i64: 128, 1>}, {transform_indices = @transform_1, window_bounds = array<i64: 128, 80>}, {pipeline_mode = #tpu.pipeline_mode<synchronous>, transform_indices = @transform_2, window_bounds = array<i64: 80, 192>}, {pipeline_mode = #tpu.pipeline_mode<synchronous>, transform_indices = @transform_3, window_bounds = array<i64: 1, 192>}, {pipeline_mode = #tpu.pipeline_mode<synchronous>, transform_indices = @transform_4, window_bounds = array<i64: 144, 32>}, {pipeline_mode = #tpu.pipeline_mode<synchronous>, transform_indices = @transform_5, window_bounds = array<i64: 1, 32>}, {pipeline_mode = #tpu.pipeline_mode<synchronous>, transform_indices = @transform_6, window_bounds = array<i64: 48, 48>}, {pipeline_mode = #tpu.pipeline_mode<synchronous>, transform_indices = @transform_7, window_bounds = array<i64: 1, 48>}, {pipeline_mode = #tpu.pipeline_mode<synchronous>, transform_indices = @transform_8, window_bounds = array<i64: 1, 48>}, {pipeline_mode = #tpu.pipeline_mode<synchronous>, transform_indices = @transform_9, window_bounds = array<i64: 48, 48>}, {pipeline_mode = #tpu.pipeline_mode<synchronous>, transform_indices = @transform_10, window_bounds = array<i64: 1, 48>}, {pipeline_mode = #tpu.pipeline_mode<synchronous>, transform_indices = @transform_11, window_bounds = array<i64: 48, 96>}, {pipeline_mode = #tpu.pipeline_mode<synchronous>, transform_indices = @transform_12, window_bounds = array<i64: 1, 96>}, {pipeline_mode = #tpu.pipeline_mode<synchronous>, transform_indices = @transform_13, window_bounds = array<i64: 96, 128>}, {pipeline_mode = #tpu.pipeline_mode<synchronous>, transform_indices = @transform_14, window_bounds = array<i64: 1, 128>}, {transform_indices = @transform_15, window_bounds = array<i64: 8, 128>}]} {
    %c0 = arith.constant 0 : index
    %c0_0 = arith.constant 0 : index
    %0 = vector.load %arg2[%c0, %c0_0] : memref<128x80xf32, #tpu.memory_space<vmem>>, vector<128x80xf32>
    %c0_1 = arith.constant 0 : index
    %c0_2 = arith.constant 0 : index
    %1 = vector.load %arg1[%c0_1, %c0_2] : memref<128x1xi32, #tpu.memory_space<vmem>>, vector<128x1xi32>
    %2 = vector.extract_strided_slice %0 {offsets = [0, 0], sizes = [128, 48], strides = [1, 1]} : vector<128x80xf32> to vector<128x48xf32>
    %3 = arith.truncf %0 : vector<128x80xf32> to vector<128x80xbf16>
    %c0_3 = arith.constant 0 : index
    %c0_4 = arith.constant 0 : index
    %4 = vector.load %arg3[%c0_3, %c0_4] : memref<80x192xbf16, #tpu.memory_space<vmem>>, vector<80x192xbf16>
    %cst = arith.constant dense<0.000000e+00> : vector<128x192xf32>
    %5 = tpu.matmul %3, %4, %cst {dimension_numbers = #tpu.dot_dimension_numbers<[1], [0], [0], [1], [0, 0, 1, 1], [], []>} : vector<128x80xbf16>, vector<80x192xbf16>, vector<128x192xf32> -> vector<128x192xf32>
    %c0_5 = arith.constant 0 : index
    %c0_6 = arith.constant 0 : index
    %6 = vector.load %arg4[%c0_5, %c0_6] : memref<1x192xf32, #tpu.memory_space<vmem>>, vector<1x192xf32>
    %7 = vector.broadcast %6 : vector<1x192xf32> to vector<128x192xf32>
    %8 = arith.addf %5, %7 : vector<128x192xf32>
    %9 = vector.extract_strided_slice %8 {offsets = [0, 0], sizes = [128, 96], strides = [1, 1]} : vector<128x192xf32> to vector<128x96xf32>
    %10 = math.tanh %9 : vector<128x96xf32>
    %11 = vector.extract_strided_slice %8 {offsets = [0, 96], sizes = [128, 96], strides = [1, 1]} : vector<128x192xf32> to vector<128x96xf32>
    %cst_7 = arith.constant 5.000000e-02 : f32
    %12 = vector.broadcast %cst_7 : f32 to vector<128x96xf32>
    %13 = arith.mulf %12, %11 : vector<128x96xf32>
    %14 = arith.negf %13 : vector<128x96xf32>
    %15 = math.exp %14 : vector<128x96xf32>
    %cst_8 = arith.constant 1.000000e+00 : f32
    %16 = vector.broadcast %cst_8 : f32 to vector<128x96xf32>
    %17 = arith.addf %16, %15 : vector<128x96xf32>
    %18 = arith.divf %16, %17 : vector<128x96xf32>
    %19 = vector.extract_strided_slice %18 {offsets = [0, 0], sizes = [128, 48], strides = [1, 1]} : vector<128x96xf32> to vector<128x48xf32>
    %20 = vector.extract_strided_slice %18 {offsets = [0, 48], sizes = [128, 48], strides = [1, 1]} : vector<128x96xf32> to vector<128x48xf32>
    %21 = vector.extract_strided_slice %10 {offsets = [0, 0], sizes = [128, 48], strides = [1, 1]} : vector<128x96xf32> to vector<128x48xf32>
    %22 = arith.mulf %19, %21 : vector<128x48xf32>
    %cst_9 = arith.constant 1.000000e+00 : f32
    %23 = vector.broadcast %cst_9 : f32 to vector<128x48xf32>
    %24 = arith.subf %23, %19 : vector<128x48xf32>
    %25 = arith.mulf %24, %2 : vector<128x48xf32>
    %26 = arith.addf %22, %25 : vector<128x48xf32>
    %27 = vector.extract_strided_slice %10 {offsets = [0, 48], sizes = [128, 48], strides = [1, 1]} : vector<128x96xf32> to vector<128x48xf32>
    %28 = arith.mulf %20, %27 : vector<128x48xf32>
    %cst_10 = arith.constant 1.000000e+00 : f32
    %29 = vector.broadcast %cst_10 : f32 to vector<128x48xf32>
    %30 = arith.subf %29, %20 : vector<128x48xf32>
    %31 = arith.mulf %30, %2 : vector<128x48xf32>
    %32 = arith.addf %28, %31 : vector<128x48xf32>
    %33 = tpu.iota {dimensions = array<i32: 0>} : vector<128x1xi32>
    %c16_i32 = arith.constant 16 : i32
    %c0_i32 = arith.constant 0 : i32
    %34 = arith.cmpi eq, %c16_i32, %c0_i32 : i32
    %c1_i32 = arith.constant 1 : i32
    %35 = arith.select %34, %c1_i32, %c16_i32 : i32
    %36 = vector.broadcast %35 : i32 to vector<128x1xi32>
    %37 = arith.remsi %33, %36 : vector<128x1xi32>
    %c0_i32_11 = arith.constant 0 : i32
    %38 = vector.broadcast %c0_i32_11 : i32 to vector<128x1xi32>
    %39 = arith.cmpi ne, %37, %38 : vector<128x1xi32>
    %c0_i32_12 = arith.constant 0 : i32
    %40 = vector.broadcast %c0_i32_12 : i32 to vector<128x1xi32>
    %41 = arith.cmpi slt, %37, %40 : vector<128x1xi32>
    %c0_i32_13 = arith.constant 0 : i32
    %42 = arith.cmpi slt, %35, %c0_i32_13 : i32
    %43 = vector.broadcast %42 : i1 to vector<128x1xi1>
    %44 = vector.broadcast %43 : vector<128x1xi1> to vector<128x1xi1>
    %45 = arith.xori %41, %44 : vector<128x1xi1>
    %46 = arith.andi %45, %39 : vector<128x1xi1>
    %47 = vector.broadcast %35 : i32 to vector<128x1xi32>
    %48 = arith.addi %37, %47 : vector<128x1xi32>
    %49 = arith.select %46, %48, %37 : vector<128x1xi1>, vector<128x1xi32>
    %c1_i32_14 = arith.constant 1 : i32
    %50 = vector.broadcast %c1_i32_14 : i32 to vector<128x1xi32>
    %51 = arith.cmpi sge, %49, %50 : vector<128x1xi32>
    %c1_i32_15 = arith.constant 1 : i32
    %52 = tpu.dynamic_rotate %26 by %c1_i32_15 dim 0 : vector<128x48xf32>, i32 -> vector<128x48xf32>
    %cst_16 = arith.constant 0.000000e+00 : f32
    %53 = vector.shape_cast %51 : vector<128x1xi1> to vector<128x1xi1>
    %54 = vector.broadcast %53 : vector<128x1xi1> to vector<128x48xi1>
    %55 = vector.broadcast %cst_16 : f32 to vector<128x48xf32>
    %56 = arith.select %54, %52, %55 : vector<128x48xi1>, vector<128x48xf32>
    %c14_i32 = arith.constant 14 : i32
    %57 = vector.broadcast %c14_i32 : i32 to vector<128x1xi32>
    %58 = arith.cmpi sle, %49, %57 : vector<128x1xi32>
    %c127_i32 = arith.constant 127 : i32
    %59 = tpu.dynamic_rotate %26 by %c127_i32 dim 0 : vector<128x48xf32>, i32 -> vector<128x48xf32>
    %cst_17 = arith.constant 0.000000e+00 : f32
    %60 = vector.shape_cast %58 : vector<128x1xi1> to vector<128x1xi1>
    %61 = vector.broadcast %60 : vector<128x1xi1> to vector<128x48xi1>
    %62 = vector.broadcast %cst_17 : f32 to vector<128x48xf32>
    %63 = arith.select %61, %59, %62 : vector<128x48xi1>, vector<128x48xf32>
    %64 = arith.truncf %56 : vector<128x48xf32> to vector<128x48xbf16>
    %c0_18 = arith.constant 0 : index
    %c0_19 = arith.constant 0 : index
    %65 = vector.load %arg5[%c0_18, %c0_19] : memref<144x32xbf16, #tpu.memory_space<vmem>>, vector<48x32xbf16>
    %cst_20 = arith.constant dense<0.000000e+00> : vector<128x32xf32>
    %66 = tpu.matmul %64, %65, %cst_20 {dimension_numbers = #tpu.dot_dimension_numbers<[1], [0], [0], [1], [0, 0, 1, 1], [], []>} : vector<128x48xbf16>, vector<48x32xbf16>, vector<128x32xf32> -> vector<128x32xf32>
    %67 = arith.truncf %26 : vector<128x48xf32> to vector<128x48xbf16>
    %c48 = arith.constant 48 : index
    %c0_21 = arith.constant 0 : index
    %68 = vector.load %arg5[%c48, %c0_21] : memref<144x32xbf16, #tpu.memory_space<vmem>>, vector<48x32xbf16>
    %cst_22 = arith.constant dense<0.000000e+00> : vector<128x32xf32>
    %69 = tpu.matmul %67, %68, %cst_22 {dimension_numbers = #tpu.dot_dimension_numbers<[1], [0], [0], [1], [0, 0, 1, 1], [], []>} : vector<128x48xbf16>, vector<48x32xbf16>, vector<128x32xf32> -> vector<128x32xf32>
    %70 = arith.addf %66, %69 : vector<128x32xf32>
    %71 = arith.truncf %63 : vector<128x48xf32> to vector<128x48xbf16>
    %c96 = arith.constant 96 : index
    %c0_23 = arith.constant 0 : index
    %72 = vector.load %arg5[%c96, %c0_23] : memref<144x32xbf16, #tpu.memory_space<vmem>>, vector<48x32xbf16>
    %cst_24 = arith.constant dense<0.000000e+00> : vector<128x32xf32>
    %73 = tpu.matmul %71, %72, %cst_24 {dimension_numbers = #tpu.dot_dimension_numbers<[1], [0], [0], [1], [0, 0, 1, 1], [], []>} : vector<128x48xbf16>, vector<48x32xbf16>, vector<128x32xf32> -> vector<128x32xf32>
    %74 = arith.addf %70, %73 : vector<128x32xf32>
    %c0_25 = arith.constant 0 : index
    %c0_26 = arith.constant 0 : index
    %75 = vector.load %arg6[%c0_25, %c0_26] : memref<1x32xf32, #tpu.memory_space<vmem>>, vector<1x32xf32>
    %76 = vector.broadcast %75 : vector<1x32xf32> to vector<128x32xf32>
    %77 = arith.addf %74, %76 : vector<128x32xf32>
    %78 = vector.shape_cast %77 : vector<128x32xf32> to vector<8x16x32xf32>
    %79 = vector.shape_cast %1 : vector<128x1xi32> to vector<8x16x1xi32>
    %c1_i32_27 = arith.constant 1 : i32
    %80 = vector.broadcast %c1_i32_27 : i32 to vector<8x16x1xi32>
    %81 = arith.cmpi eq, %79, %80 : vector<8x16x1xi32>
    %cst_28 = arith.constant -1.000000e+30 : f32
    %82 = vector.shape_cast %81 : vector<8x16x1xi1> to vector<8x16x1xi1>
    %83 = vector.broadcast %82 : vector<8x16x1xi1> to vector<8x16x32xi1>
    %84 = vector.broadcast %cst_28 : f32 to vector<8x16x32xf32>
    %85 = arith.select %83, %78, %84 : vector<8x16x32xi1>, vector<8x16x32xf32>
    %cst_29 = arith.constant dense<0xFF800000> : vector<8x32xf32>
    %86 = vector.multi_reduction <maximumf>, %85, %cst_29 [1] : vector<8x16x32xf32> to vector<8x32xf32>
    %c2_i32 = arith.constant 2 : i32
    %87 = vector.broadcast %c2_i32 : i32 to vector<8x16x1xi32>
    %88 = arith.cmpi eq, %79, %87 : vector<8x16x1xi32>
    %cst_30 = arith.constant -1.000000e+30 : f32
    %89 = vector.shape_cast %88 : vector<8x16x1xi1> to vector<8x16x1xi1>
    %90 = vector.broadcast %89 : vector<8x16x1xi1> to vector<8x16x32xi1>
    %91 = vector.broadcast %cst_30 : f32 to vector<8x16x32xf32>
    %92 = arith.select %90, %78, %91 : vector<8x16x32xi1>, vector<8x16x32xf32>
    %cst_31 = arith.constant dense<0xFF800000> : vector<8x32xf32>
    %93 = vector.multi_reduction <maximumf>, %92, %cst_31 [1] : vector<8x16x32xf32> to vector<8x32xf32>
    %c3_i32 = arith.constant 3 : i32
    %94 = vector.broadcast %c3_i32 : i32 to vector<8x16x1xi32>
    %95 = arith.cmpi eq, %79, %94 : vector<8x16x1xi32>
    %cst_32 = arith.constant -1.000000e+30 : f32
    %96 = vector.shape_cast %95 : vector<8x16x1xi1> to vector<8x16x1xi1>
    %97 = vector.broadcast %96 : vector<8x16x1xi1> to vector<8x16x32xi1>
    %98 = vector.broadcast %cst_32 : f32 to vector<8x16x32xf32>
    %99 = arith.select %97, %78, %98 : vector<8x16x32xi1>, vector<8x16x32xf32>
    %cst_33 = arith.constant dense<0xFF800000> : vector<8x32xf32>
    %100 = vector.multi_reduction <maximumf>, %99, %cst_33 [1] : vector<8x16x32xf32> to vector<8x32xf32>
    %101 = tpu.concatenate %86, %93, %100 in 1 : vector<8x32xf32>, vector<8x32xf32>, vector<8x32xf32> -> vector<8x96xf32>
    %cst_34 = arith.constant 0.000000e+00 : f32
    %102 = vector.broadcast %cst_34 : f32 to vector<8x96xf32>
    %103 = arith.maximumf %101, %102 : vector<8x96xf32>
    %104 = arith.truncf %32 : vector<128x48xf32> to vector<128x48xbf16>
    %c0_35 = arith.constant 0 : index
    %c0_36 = arith.constant 0 : index
    %105 = vector.load %arg7[%c0_35, %c0_36] : memref<48x48xbf16, #tpu.memory_space<vmem>>, vector<48x48xbf16>
    %cst_37 = arith.constant dense<0.000000e+00> : vector<128x48xf32>
    %106 = tpu.matmul %104, %105, %cst_37 {dimension_numbers = #tpu.dot_dimension_numbers<[1], [0], [0], [1], [0, 0, 1, 1], [], []>} : vector<128x48xbf16>, vector<48x48xbf16>, vector<128x48xf32> -> vector<128x48xf32>
    %c0_38 = arith.constant 0 : index
    %c0_39 = arith.constant 0 : index
    %107 = vector.load %arg8[%c0_38, %c0_39] : memref<1x48xf32, #tpu.memory_space<vmem>>, vector<1x48xf32>
    %108 = vector.broadcast %107 : vector<1x48xf32> to vector<128x48xf32>
    %109 = arith.addf %106, %108 : vector<128x48xf32>
    %110 = math.tanh %109 : vector<128x48xf32>
    %c0_40 = arith.constant 0 : index
    %c0_41 = arith.constant 0 : index
    %111 = vector.load %arg9[%c0_40, %c0_41] : memref<1x48xf32, #tpu.memory_space<vmem>>, vector<1x48xf32>
    %112 = vector.broadcast %111 : vector<1x48xf32> to vector<128x48xf32>
    %113 = arith.mulf %110, %112 : vector<128x48xf32>
    %cst_42 = arith.constant dense<0.000000e+00> : vector<128xf32>
    %114 = vector.multi_reduction <add>, %113, %cst_42 [1] : vector<128x48xf32> to vector<128xf32>
    %115 = vector.shape_cast %114 : vector<128xf32> to vector<128x1xf32>
    %116 = vector.shape_cast %115 : vector<128x1xf32> to vector<8x16x1xf32>
    %cst_43 = arith.constant dense<0xFF800000> : vector<8x1xf32>
    %117 = vector.multi_reduction <maximumf>, %116, %cst_43 [1] : vector<8x16x1xf32> to vector<8x1xf32>
    %118 = vector.shape_cast %117 : vector<8x1xf32> to vector<8x1x1xf32>
    %119 = vector.broadcast %118 : vector<8x1x1xf32> to vector<8x16x1xf32>
    %120 = arith.subf %116, %119 : vector<8x16x1xf32>
    %121 = math.exp %120 : vector<8x16x1xf32>
    %cst_44 = arith.constant dense<0.000000e+00> : vector<8x1xf32>
    %122 = vector.multi_reduction <add>, %121, %cst_44 [1] : vector<8x16x1xf32> to vector<8x1xf32>
    %123 = vector.shape_cast %122 : vector<8x1xf32> to vector<8x1x1xf32>
    %124 = vector.broadcast %123 : vector<8x1x1xf32> to vector<8x16x1xf32>
    %125 = arith.divf %121, %124 : vector<8x16x1xf32>
    %126 = vector.shape_cast %2 : vector<128x48xf32> to vector<8x16x48xf32>
    %127 = vector.broadcast %125 : vector<8x16x1xf32> to vector<8x16x48xf32>
    %128 = arith.mulf %127, %126 : vector<8x16x48xf32>
    %cst_45 = arith.constant dense<0.000000e+00> : vector<8x48xf32>
    %129 = vector.multi_reduction <add>, %128, %cst_45 [1] : vector<8x16x48xf32> to vector<8x48xf32>
    %130 = arith.truncf %129 : vector<8x48xf32> to vector<8x48xbf16>
    %c0_46 = arith.constant 0 : index
    %c0_47 = arith.constant 0 : index
    %131 = vector.load %arg10[%c0_46, %c0_47] : memref<48x48xbf16, #tpu.memory_space<vmem>>, vector<48x48xbf16>
    %cst_48 = arith.constant dense<0.000000e+00> : vector<8x48xf32>
    %132 = tpu.matmul %130, %131, %cst_48 {dimension_numbers = #tpu.dot_dimension_numbers<[1], [0], [0], [1], [0, 0, 1, 1], [], []>} : vector<8x48xbf16>, vector<48x48xbf16>, vector<8x48xf32> -> vector<8x48xf32>
    %c0_49 = arith.constant 0 : index
    %c0_50 = arith.constant 0 : index
    %133 = vector.load %arg11[%c0_49, %c0_50] : memref<1x48xf32, #tpu.memory_space<vmem>>, vector<1x48xf32>
    %134 = vector.broadcast %133 : vector<1x48xf32> to vector<8x48xf32>
    %135 = arith.addf %132, %134 : vector<8x48xf32>
    %136 = math.tanh %135 : vector<8x48xf32>
    %137 = arith.truncf %136 : vector<8x48xf32> to vector<8x48xbf16>
    %c0_51 = arith.constant 0 : index
    %c0_52 = arith.constant 0 : index
    %138 = vector.load %arg12[%c0_51, %c0_52] : memref<48x96xbf16, #tpu.memory_space<vmem>>, vector<48x96xbf16>
    %cst_53 = arith.constant dense<0.000000e+00> : vector<8x96xf32>
    %139 = tpu.matmul %137, %138, %cst_53 {dimension_numbers = #tpu.dot_dimension_numbers<[1], [0], [0], [1], [0, 0, 1, 1], [], []>} : vector<8x48xbf16>, vector<48x96xbf16>, vector<8x96xf32> -> vector<8x96xf32>
    %c0_54 = arith.constant 0 : index
    %c0_55 = arith.constant 0 : index
    %140 = vector.load %arg13[%c0_54, %c0_55] : memref<1x96xf32, #tpu.memory_space<vmem>>, vector<1x96xf32>
    %141 = vector.broadcast %140 : vector<1x96xf32> to vector<8x96xf32>
    %142 = arith.addf %139, %141 : vector<8x96xf32>
    %143 = arith.negf %142 : vector<8x96xf32>
    %144 = math.exp %143 : vector<8x96xf32>
    %cst_56 = arith.constant 1.000000e+00 : f32
    %145 = vector.broadcast %cst_56 : f32 to vector<8x96xf32>
    %146 = arith.addf %145, %144 : vector<8x96xf32>
    %147 = arith.divf %145, %146 : vector<8x96xf32>
    %148 = arith.mulf %147, %103 : vector<8x96xf32>
    %149 = arith.truncf %148 : vector<8x96xf32> to vector<8x96xbf16>
    %c0_57 = arith.constant 0 : index
    %c0_58 = arith.constant 0 : index
    %150 = vector.load %arg14[%c0_57, %c0_58] : memref<96x128xbf16, #tpu.memory_space<vmem>>, vector<96x128xbf16>
    %cst_59 = arith.constant dense<0.000000e+00> : vector<8x128xf32>
    %151 = tpu.matmul %149, %150, %cst_59 {dimension_numbers = #tpu.dot_dimension_numbers<[1], [0], [0], [1], [0, 0, 1, 1], [], []>} : vector<8x96xbf16>, vector<96x128xbf16>, vector<8x128xf32> -> vector<8x128xf32>
    %c0_60 = arith.constant 0 : index
    %c0_61 = arith.constant 0 : index
    %152 = vector.load %arg15[%c0_60, %c0_61] : memref<1x128xf32, #tpu.memory_space<vmem>>, vector<1x128xf32>
    %153 = vector.broadcast %152 : vector<1x128xf32> to vector<8x128xf32>
    %154 = arith.addf %151, %153 : vector<8x128xf32>
    %c0_62 = arith.constant 0 : index
    %c0_63 = arith.constant 0 : index
    %155 = vector.load %arg16[%c0_62, %c0_63] : memref<8x128xf32, #tpu.memory_space<vmem>>, vector<8x128xf32>
    tpu.vector_store %arg16[%c0_62, %c0_63], %154 {strides = array<i32>} : memref<8x128xf32, #tpu.memory_space<vmem>>, vector<8x128xf32>,
    return
  }
  func.func @transform_0(%arg0: i32) -> (i32, i32) {
    %c0_i32 = arith.constant 0 : i32
    %c0_i32_0 = arith.constant 0 : i32
    return %arg0, %c0_i32 : i32, i32
  }
  func.func @transform_1(%arg0: i32) -> (i32, i32) {
    %c0_i32 = arith.constant 0 : i32
    %c0_i32_0 = arith.constant 0 : i32
    return %arg0, %c0_i32 : i32, i32
  }
  func.func @transform_2(%arg0: i32) -> (i32, i32) {
    %c0_i32 = arith.constant 0 : i32
    %c0_i32_0 = arith.constant 0 : i32
    %c0_i32_1 = arith.constant 0 : i32
    return %c0_i32, %c0_i32_0 : i32, i32
  }
  func.func @transform_3(%arg0: i32) -> (i32, i32) {
    %c0_i32 = arith.constant 0 : i32
    %c0_i32_0 = arith.constant 0 : i32
    %c0_i32_1 = arith.constant 0 : i32
    return %c0_i32, %c0_i32_0 : i32, i32
  }
  func.func @transform_4(%arg0: i32) -> (i32, i32) {
    %c0_i32 = arith.constant 0 : i32
    %c0_i32_0 = arith.constant 0 : i32
    %c0_i32_1 = arith.constant 0 : i32
    return %c0_i32, %c0_i32_0 : i32, i32
  }
  func.func @transform_5(%arg0: i32) -> (i32, i32) {
    %c0_i32 = arith.constant 0 : i32
    %c0_i32_0 = arith.constant 0 : i32
    %c0_i32_1 = arith.constant 0 : i32
    return %c0_i32, %c0_i32_0 : i32, i32
  }
  func.func @transform_6(%arg0: i32) -> (i32, i32) {
    %c0_i32 = arith.constant 0 : i32
    %c0_i32_0 = arith.constant 0 : i32
    %c0_i32_1 = arith.constant 0 : i32
    return %c0_i32, %c0_i32_0 : i32, i32
  }
  func.func @transform_7(%arg0: i32) -> (i32, i32) {
    %c0_i32 = arith.constant 0 : i32
    %c0_i32_0 = arith.constant 0 : i32
    %c0_i32_1 = arith.constant 0 : i32
    return %c0_i32, %c0_i32_0 : i32, i32
  }
  func.func @transform_8(%arg0: i32) -> (i32, i32) {
    %c0_i32 = arith.constant 0 : i32
    %c0_i32_0 = arith.constant 0 : i32
    %c0_i32_1 = arith.constant 0 : i32
    return %c0_i32, %c0_i32_0 : i32, i32
  }
  func.func @transform_9(%arg0: i32) -> (i32, i32) {
    %c0_i32 = arith.constant 0 : i32
    %c0_i32_0 = arith.constant 0 : i32
    %c0_i32_1 = arith.constant 0 : i32
    return %c0_i32, %c0_i32_0 : i32, i32
  }
  func.func @transform_10(%arg0: i32) -> (i32, i32) {
    %c0_i32 = arith.constant 0 : i32
    %c0_i32_0 = arith.constant 0 : i32
    %c0_i32_1 = arith.constant 0 : i32
    return %c0_i32, %c0_i32_0 : i32, i32
  }
  func.func @transform_11(%arg0: i32) -> (i32, i32) {
    %c0_i32 = arith.constant 0 : i32
    %c0_i32_0 = arith.constant 0 : i32
    %c0_i32_1 = arith.constant 0 : i32
    return %c0_i32, %c0_i32_0 : i32, i32
  }
  func.func @transform_12(%arg0: i32) -> (i32, i32) {
    %c0_i32 = arith.constant 0 : i32
    %c0_i32_0 = arith.constant 0 : i32
    %c0_i32_1 = arith.constant 0 : i32
    return %c0_i32, %c0_i32_0 : i32, i32
  }
  func.func @transform_13(%arg0: i32) -> (i32, i32) {
    %c0_i32 = arith.constant 0 : i32
    %c0_i32_0 = arith.constant 0 : i32
    %c0_i32_1 = arith.constant 0 : i32
    return %c0_i32, %c0_i32_0 : i32, i32
  }
  func.func @transform_14(%arg0: i32) -> (i32, i32) {
    %c0_i32 = arith.constant 0 : i32
    %c0_i32_0 = arith.constant 0 : i32
    %c0_i32_1 = arith.constant 0 : i32
    return %c0_i32, %c0_i32_0 : i32, i32
  }
  func.func @transform_15(%arg0: i32) -> (i32, i32) {
    %c0_i32 = arith.constant 0 : i32
    %c0_i32_0 = arith.constant 0 : i32
    return %arg0, %c0_i32 : i32, i32
  }
}

</mosaic_0001>

<llo_original>
// kernel: seg_one_forward.1
$region0: #{seg_one_forward.1}
  #allocation0 [shape = 'u32[]', space=smem, size = 0x4, offset = 0x4, fixed_abs, tag = 'smem constant byte address 0x4 - core index']
  #allocation1 [shape = 'u32[144,128]{1,0:T(1,128)}', space=vmem, size = 0x12000, scoped, tag = 'internal scratch']
  %s0 = inlined_call_operand.vmem [shape: s32[256,1], index: 0, kind: input, shape index: {}]
  %s1 = inlined_call_operand.vmem [shape: f32[256,80], index: 1, kind: input, shape index: {}]
  %s2 = inlined_call_operand.vmem [shape: bf16[80,192], index: 2, kind: input, shape index: {}]
  %s3 = inlined_call_operand.vmem [shape: f32[1,192], index: 3, kind: input, shape index: {}]
  %s4 = inlined_call_operand.vmem [shape: bf16[144,32], index: 4, kind: input, shape index: {}]
  %s5 = inlined_call_operand.vmem [shape: f32[1,32], index: 5, kind: input, shape index: {}]
  %s6 = inlined_call_operand.vmem [shape: bf16[48,48], index: 6, kind: input, shape index: {}]
  %s7 = inlined_call_operand.vmem [shape: f32[1,48], index: 7, kind: input, shape index: {}, may-alias: {7,10}]
  %s8 = inlined_call_operand.vmem [shape: f32[1,48], index: 8, kind: input, shape index: {}]
  %s9 = inlined_call_operand.vmem [shape: bf16[48,48], index: 9, kind: input, shape index: {}]
  %s10 = inlined_call_operand.vmem [shape: f32[1,48], index: 10, kind: input, shape index: {}, may-alias: {7,10}]
  %s11 = inlined_call_operand.vmem [shape: bf16[48,96], index: 11, kind: input, shape index: {}]
  %s12 = inlined_call_operand.vmem [shape: f32[1,96], index: 12, kind: input, shape index: {}]
  %s13 = inlined_call_operand.vmem [shape: bf16[96,128], index: 13, kind: input, shape index: {}]
  %s14 = inlined_call_operand.vmem [shape: f32[1,128], index: 14, kind: input, shape index: {}]
  %s15 = inlined_call_operand.vmem [shape: f32[16,128], index: 15, kind: output, shape index: {}]
  %s16 = sld [smem:[#allocation0]]
  $region93: #{seg_one_forward.1} parent=0
    _
  %s18 = ssub.s32 1, %s16
  %s19 = scalar_select 0, %s18, %s16
  loop: start=0, step=1, limit=4
  $region2: #{seg_one_forward.1} parent=0 // loop_pre_header
    _
  $region3: #{seg_one_forward.1} parent=0 // loop_header
    %s21 = sphi 0, %s25
    %p22 = scmp.ge.s32.totalorder %s21, 4
    %s31 = sphi 0, %s33
    %s34 = sphi 0, %s31
    %s35 = sphi 0, %s34
    %s51 = sphi 0, %s35
    %s57 = sphi 0, %s59
    %s60 = sphi 0, %s57
    %s61 = sphi 0, %s60
    %s77 = sphi 0, %s61
    %s81 = sphi 0, %s81
    %s83 = sphi 0, %s81
    %s84 = sphi 0, %s83
    %s98 = sphi 0, %s84
    %s102 = sphi 0, %s102
    %s104 = sphi 0, %s102
    %s105 = sphi 0, %s104
    %s119 = sphi 0, %s105
    %s123 = sphi 0, %s123
    %s125 = sphi 0, %s123
    %s126 = sphi 0, %s125
    %s140 = sphi 0, %s126
    %s144 = sphi 0, %s144
    %s146 = sphi 0, %s144
    %s147 = sphi 0, %s146
    %s161 = sphi 0, %s147
    %s165 = sphi 0, %s165
    %s167 = sphi 0, %s165
    %s168 = sphi 0, %s167
    %s182 = sphi 0, %s168
    %s186 = sphi 0, %s186
    %s188 = sphi 0, %s186
    %s189 = sphi 0, %s188
    %s203 = sphi 0, %s189
    %s207 = sphi 0, %s207
    %s209 = sphi 0, %s207
    %s210 = sphi 0, %s209
    %s224 = sphi 0, %s210
    %s228 = sphi 0, %s228
    %s230 = sphi 0, %s228
    %s231 = sphi 0, %s230
    %s245 = sphi 0, %s231
    %s249 = sphi 0, %s249
    %s251 = sphi 0, %s249
    %s252 = sphi 0, %s251
    %s266 = sphi 0, %s252
    %s270 = sphi 0, %s270
    %s272 = sphi 0, %s270
    %s273 = sphi 0, %s272
    %s287 = sphi 0, %s273
    %s291 = sphi 0, %s291
    %s293 = sphi 0, %s291
    %s294 = sphi 0, %s293
    %s308 = sphi 0, %s294
    %s312 = sphi 0, %s312
    %s314 = sphi 0, %s312
    %s315 = sphi 0, %s314
    %s329 = sphi 0, %s315
    %s333 = sphi 0, %s333
    %s335 = sphi 0, %s333
    %s336 = sphi 0, %s335
    %s350 = sphi 0, %s336
    %s356 = sphi 0, %s358
    %s359 = sphi 0, %s356
    %s360 = sphi 0, %s359
    %s376 = sphi 0, %s360
  $region4: #{seg_one_forward.1} parent=0 // loop_header_branch
    %24 = sbr.rel (%p22) target = $region8
  $region5: #{seg_one_forward.1} parent=0 // loop_body
    %s26 = ssub.s32 %s21, 1
    %s27 = ssub.s32 %s21, 2
    %s28 = sadd.s32 %s21, 1
    %s29 = ssub.s32 %s21, %s28
    %p30 = scmp.eq.s32.totalorder %s29, 0
    %s32 = sadd.s32 %s31, 1
    %s33 = scalar_select %p30, %s31, %s32
    %p36 = pneg %p30
    %p37 = scmp.eq.s32.totalorder %s21, 1
    %p38 = por %p36, %p37
    %p39 = scmp.ne.s32.totalorder %s31, %s34
    %p40 = scmp.eq.s32.totalorder %s21, 0
    %p41 = por %p39, %p40
    %p42 = scmp.ne.s32.totalorder %s31, %s34
    %p43 = scmp.eq.s32.totalorder %s26, 1
    %p44 = por %p42, %p43
    %p45 = scmp.ne.s32.totalorder %s34, %s35
    %p46 = scmp.eq.s32.totalorder %s26, 0
    %p47 = por %p45, %p46
    %p48 = scmp.ne.s32.totalorder %s34, %s35
    %p49 = scmp.eq.s32.totalorder %s27, 1
    %p50 = por %p48, %p49
    %p52 = scmp.ne.s32.totalorder %s35, %s51
    %p53 = scmp.eq.s32.totalorder %s27, 0
    %p54 = por %p52, %p53
    %s55 = ssub.s32 %s21, %s28
    %p56 = scmp.eq.s32.totalorder %s55, 0
    %s58 = sadd.s32 %s57, 1
    %s59 = scalar_select %p56, %s57, %s58
    %p62 = pneg %p56
    %p63 = scmp.eq.s32.totalorder %s21, 1
    %p64 = por %p62, %p63
    %p65 = scmp.ne.s32.totalorder %s57, %s60
    %p66 = scmp.eq.s32.totalorder %s21, 0
    %p67 = por %p65, %p66
    %p68 = scmp.ne.s32.totalorder %s57, %s60
    %p69 = scmp.eq.s32.totalorder %s26, 1
    %p70 = por %p68, %p69
    %p71 = scmp.ne.s32.totalorder %s60, %s61
    %p72 = scmp.eq.s32.totalorder %s26, 0
    %p73 = por %p71, %p72
    %p74 = scmp.ne.s32.totalorder %s60, %s61
    %p75 = scmp.eq.s32.totalorder %s27, 1
    %p76 = por %p74, %p75
    %p78 = scmp.ne.s32.totalorder %s61, %s77
    %p79 = scmp.eq.s32.totalorder %s27, 0
    %p80 = por %p78, %p79
    %s82 = sadd.s32 %s81, 1
    %p85 = scmp.eq.s32.totalorder %s21, 1
    %p86 = scmp.ne.s32.totalorder %s81, %s83
    %p87 = scmp.eq.s32.totalorder %s21, 0
    %p88 = por %p86, %p87
    %p89 = scmp.ne.s32.totalorder %s81, %s83
    %p90 = scmp.eq.s32.totalorder %s26, 1
    %p91 = por %p89, %p90
    %p92 = scmp.ne.s32.totalorder %s83, %s84
    %p93 = scmp.eq.s32.totalorder %s26, 0
    %p94 = por %p92, %p93
    %p95 = scmp.ne.s32.totalorder %s83, %s84
    %p96 = scmp.eq.s32.totalorder %s27, 1
    %p97 = por %p95, %p96
    %p99 = scmp.ne.s32.totalorder %s84, %s98
    %p100 = scmp.eq.s32.totalorder %s27, 0
    %p101 = por %p99, %p100
    %s103 = sadd.s32 %s102, 1
    %p106 = scmp.eq.s32.totalorder %s21, 1
    %p107 = scmp.ne.s32.totalorder %s102, %s104
    %p108 = scmp.eq.s32.totalorder %s21, 0
    %p109 = por %p107, %p108
    %p110 = scmp.ne.s32.totalorder %s102, %s104
    %p111 = scmp.eq.s32.totalorder %s26, 1
    %p112 = por %p110, %p111
    %p113 = scmp.ne.s32.totalorder %s104, %s105
    %p114 = scmp.eq.s32.totalorder %s26, 0
    %p115 = por %p113, %p114
    %p116 = scmp.ne.s32.totalorder %s104, %s105
    %p117 = scmp.eq.s32.totalorder %s27, 1
    %p118 = por %p116, %p117
    %p120 = scmp.ne.s32.totalorder %s105, %s119
    %p121 = scmp.eq.s32.totalorder %s27, 0
    %p122 = por %p120, %p121
    %s124 = sadd.s32 %s123, 1
    %p127 = scmp.eq.s32.totalorder %s21, 1
    %p128 = scmp.ne.s32.totalorder %s123, %s125
    %p129 = scmp.eq.s32.totalorder %s21, 0
    %p130 = por %p128, %p129
    %p131 = scmp.ne.s32.totalorder %s123, %s125
    %p132 = scmp.eq.s32.totalorder %s26, 1
    %p133 = por %p131, %p132
    %p134 = scmp.ne.s32.totalorder %s125, %s126
    %p135 = scmp.eq.s32.totalorder %s26, 0
    %p136 = por %p134, %p135
    %p137 = scmp.ne.s32.totalorder %s125, %s126
    %p138 = scmp.eq.s32.totalorder %s27, 1
    %p139 = por %p137, %p138
    %p141 = scmp.ne.s32.totalorder %s126, %s140
    %p142 = scmp.eq.s32.totalorder %s27, 0
    %p143 = por %p141, %p142
    %s145 = sadd.s32 %s144, 1
    %p148 = scmp.eq.s32.totalorder %s21, 1
    %p149 = scmp.ne.s32.totalorder %s144, %s146
    %p150 = scmp.eq.s32.totalorder %s21, 0
    %p151 = por %p149, %p150
    %p152 = scmp.ne.s32.totalorder %s144, %s146
    %p153 = scmp.eq.s32.totalorder %s26, 1
    %p154 = por %p152, %p153
    %p155 = scmp.ne.s32.totalorder %s146, %s147
    %p156 = scmp.eq.s32.totalorder %s26, 0
    %p157 = por %p155, %p156
    %p158 = scmp.ne.s32.totalorder %s146, %s147
    %p159 = scmp.eq.s32.totalorder %s27, 1
    %p160 = por %p158, %p159
    %p162 = scmp.ne.s32.totalorder %s147, %s161
    %p163 = scmp.eq.s32.totalorder %s27, 0
    %p164 = por %p162, %p163
    %s166 = sadd.s32 %s165, 1
    %p169 = scmp.eq.s32.totalorder %s21, 1
    %p170 = scmp.ne.s32.totalorder %s165, %s167
    %p171 = scmp.eq.s32.totalorder %s21, 0
    %p172 = por %p170, %p171
    %p173 = scmp.ne.s32.totalorder %s165, %s167
    %p174 = scmp.eq.s32.totalorder %s26, 1
    %p175 = por %p173, %p174
    %p176 = scmp.ne.s32.totalorder %s167, %s168
    %p177 = scmp.eq.s32.totalorder %s26, 0
    %p178 = por %p176, %p177
    %p179 = scmp.ne.s32.totalorder %s167, %s168
    %p180 = scmp.eq.s32.totalorder %s27, 1
    %p181 = por %p179, %p180
    %p183 = scmp.ne.s32.totalorder %s168, %s182
    %p184 = scmp.eq.s32.totalorder %s27, 0
    %p185 = por %p183, %p184
    %s187 = sadd.s32 %s186, 1
    %p190 = scmp.eq.s32.totalorder %s21, 1
    %p191 = scmp.ne.s32.totalorder %s186, %s188
    %p192 = scmp.eq.s32.totalorder %s21, 0
    %p193 = por %p191, %p192
    %p194 = scmp.ne.s32.totalorder %s186, %s188
    %p195 = scmp.eq.s32.totalorder %s26, 1
    %p196 = por %p194, %p195
    %p197 = scmp.ne.s32.totalorder %s188, %s189
    %p198 = scmp.eq.s32.totalorder %s26, 0
    %p199 = por %p197, %p198
    %p200 = scmp.ne.s32.totalorder %s188, %s189
    %p201 = scmp.eq.s32.totalorder %s27, 1
    %p202 = por %p200, %p201
    %p204 = scmp.ne.s32.totalorder %s189, %s203
    %p205 = scmp.eq.s32.totalorder %s27, 0
    %p206 = por %p204, %p205
    %s208 = sadd.s32 %s207, 1
    %p211 = scmp.eq.s32.totalorder %s21, 1
    %p212 = scmp.ne.s32.totalorder %s207, %s209
    %p213 = scmp.eq.s32.totalorder %s21, 0
    %p214 = por %p212, %p213
    %p215 = scmp.ne.s32.totalorder %s207, %s209
    %p216 = scmp.eq.s32.totalorder %s26, 1
    %p217 = por %p215, %p216
    %p218 = scmp.ne.s32.totalorder %s209, %s210
    %p219 = scmp.eq.s32.totalorder %s26, 0
    %p220 = por %p218, %p219
    %p221 = scmp.ne.s32.totalorder %s209, %s210
    %p222 = scmp.eq.s32.totalorder %s27, 1
    %p223 = por %p221, %p222
    %p225 = scmp.ne.s32.totalorder %s210, %s224
    %p226 = scmp.eq.s32.totalorder %s27, 0
    %p227 = por %p225, %p226
    %s229 = sadd.s32 %s228, 1
    %p232 = scmp.eq.s32.totalorder %s21, 1
    %p233 = scmp.ne.s32.totalorder %s228, %s230
    %p234 = scmp.eq.s32.totalorder %s21, 0
    %p235 = por %p233, %p234
    %p236 = scmp.ne.s32.totalorder %s228, %s230
    %p237 = scmp.eq.s32.totalorder %s26, 1
    %p238 = por %p236, %p237
    %p239 = scmp.ne.s32.totalorder %s230, %s231
    %p240 = scmp.eq.s32.totalorder %s26, 0
    %p241 = por %p239, %p240
    %p242 = scmp.ne.s32.totalorder %s230, %s231
    %p243 = scmp.eq.s32.totalorder %s27, 1
    %p244 = por %p242, %p243
    %p246 = scmp.ne.s32.totalorder %s231, %s245
    %p247 = scmp.eq.s32.totalorder %s27, 0
    %p248 = por %p246, %p247
    %s250 = sadd.s32 %s249, 1
    %p253 = scmp.eq.s32.totalorder %s21, 1
    %p254 = scmp.ne.s32.totalorder %s249, %s251
    %p255 = scmp.eq.s32.totalorder %s21, 0
    %p256 = por %p254, %p255
    %p257 = scmp.ne.s32.totalorder %s249, %s251
    %p258 = scmp.eq.s32.totalorder %s26, 1
    %p259 = por %p257, %p258
    %p260 = scmp.ne.s32.totalorder %s251, %s252
    %p261 = scmp.eq.s32.totalorder %s26, 0
    %p262 = por %p260, %p261
    %p263 = scmp.ne.s32.totalorder %s251, %s252
    %p264 = scmp.eq.s32.totalorder %s27, 1
    %p265 = por %p263, %p264
    %p267 = scmp.ne.s32.totalorder %s252, %s266
    %p268 = scmp.eq.s32.totalorder %s27, 0
    %p269 = por %p267, %p268
    %s271 = sadd.s32 %s270, 1
    %p274 = scmp.eq.s32.totalorder %s21, 1
    %p275 = scmp.ne.s32.totalorder %s270, %s272
    %p276 = scmp.eq.s32.totalorder %s21, 0
    %p277 = por %p275, %p276
    %p278 = scmp.ne.s32.totalorder %s270, %s272
    %p279 = scmp.eq.s32.totalorder %s26, 1
    %p280 = por %p278, %p279
    %p281 = scmp.ne.s32.totalorder %s272, %s273
    %p282 = scmp.eq.s32.totalorder %s26, 0
    %p283 = por %p281, %p282
    %p284 = scmp.ne.s32.totalorder %s272, %s273
    %p285 = scmp.eq.s32.totalorder %s27, 1
    %p286 = por %p284, %p285
    %p288 = scmp.ne.s32.totalorder %s273, %s287
    %p289 = scmp.eq.s32.totalorder %s27, 0
    %p290 = por %p288, %p289
    %s292 = sadd.s32 %s291, 1
    %p295 = scmp.eq.s32.totalorder %s21, 1
    %p296 = scmp.ne.s32.totalorder %s291, %s293
    %p297 = scmp.eq.s32.totalorder %s21, 0
    %p298 = por %p296, %p297
    %p299 = scmp.ne.s32.totalorder %s291, %s293
    %p300 = scmp.eq.s32.totalorder %s26, 1
    %p301 = por %p299, %p300
    %p302 = scmp.ne.s32.totalorder %s293, %s294
    %p303 = scmp.eq.s32.totalorder %s26, 0
    %p304 = por %p302, %p303
    %p305 = scmp.ne.s32.totalorder %s293, %s294
    %p306 = scmp.eq.s32.totalorder %s27, 1
    %p307 = por %p305, %p306
    %p309 = scmp.ne.s32.totalorder %s294, %s308
    %p310 = scmp.eq.s32.totalorder %s27, 0
    %p311 = por %p309, %p310
    %s313 = sadd.s32 %s312, 1
    %p316 = scmp.eq.s32.totalorder %s21, 1
    %p317 = scmp.ne.s32.totalorder %s312, %s314
    %p318 = scmp.eq.s32.totalorder %s21, 0
    %p319 = por %p317, %p318
    %p320 = scmp.ne.s32.totalorder %s312, %s314
    %p321 = scmp.eq.s32.totalorder %s26, 1
    %p322 = por %p320, %p321
    %p323 = scmp.ne.s32.totalorder %s314, %s315
    %p324 = scmp.eq.s32.totalorder %s26, 0
    %p325 = por %p323, %p324
    %p326 = scmp.ne.s32.totalorder %s314, %s315
    %p327 = scmp.eq.s32.totalorder %s27, 1
    %p328 = por %p326, %p327
    %p330 = scmp.ne.s32.totalorder %s315, %s329
    %p331 = scmp.eq.s32.totalorder %s27, 0
    %p332 = por %p330, %p331
    %s334 = sadd.s32 %s333, 1
    %p337 = scmp.eq.s32.totalorder %s21, 1
    %p338 = scmp.ne.s32.totalorder %s333, %s335
    %p339 = scmp.eq.s32.totalorder %s21, 0
    %p340 = por %p338, %p339
    %p341 = scmp.ne.s32.totalorder %s333, %s335
    %p342 = scmp.eq.s32.totalorder %s26, 1
    %p343 = por %p341, %p342
    %p344 = scmp.ne.s32.totalorder %s335, %s336
    %p345 = scmp.eq.s32.totalorder %s26, 0
    %p346 = por %p344, %p345
    %p347 = scmp.ne.s32.totalorder %s335, %s336
    %p348 = scmp.eq.s32.totalorder %s27, 1
    %p349 = por %p347, %p348
    %p351 = scmp.ne.s32.totalorder %s336, %s350
    %p352 = scmp.eq.s32.totalorder %s27, 0
    %p353 = por %p351, %p352
    %s354 = ssub.s32 %s21, %s28
    %p355 = scmp.eq.s32.totalorder %s354, 0
    %s357 = sadd.s32 %s356, 1
    %s358 = scalar_select %p355, %s356, %s357
    %p361 = pneg %p355
    %p362 = scmp.eq.s32.totalorder %s21, 1
    %p363 = por %p361, %p362
    %p364 = scmp.ne.s32.totalorder %s356, %s359
    %p365 = scmp.eq.s32.totalorder %s21, 0
    %p366 = por %p364, %p365
    %p367 = scmp.ne.s32.totalorder %s356, %s359
    %p368 = scmp.eq.s32.totalorder %s26, 1
    %p369 = por %p367, %p368
    %p370 = scmp.ne.s32.totalorder %s359, %s360
    %p371 = scmp.eq.s32.totalorder %s26, 0
    %p372 = por %p370, %p371
    %p373 = scmp.ne.s32.totalorder %s359, %s360
    %p374 = scmp.eq.s32.totalorder %s27, 1
    %p375 = por %p373, %p374
    %p377 = scmp.ne.s32.totalorder %s360, %s376
    %p378 = scmp.eq.s32.totalorder %s27, 0
    %p379 = por %p377, %p378
    %p380 = scmp.le.s32.totalorder 1, %s21
    %p381 = scmp.lt.s32.totalorder %s21, 3
    %p382 = pnand %p380, %p381
    %p383 = pneg %p382
    // Predicated region
    $region9: #{seg_one_forward.1} parent=5 // pred_check
      _
    $region10: #{seg_one_forward.1} parent=5 // pred_check_branch
      %385 = sbr.rel (%p382) target = $region12
    $region11: #{seg_one_forward.1} parent=5 // pred_region
      %s386 = ssub.s32 %s21, 1
      // Predicated region
      $region13: #{seg_one_forward.1} parent=11 // pred_check
        %p387 = pneg %p94
      $region14: #{seg_one_forward.1} parent=11 // pred_check_branch
        %389 = sbr.rel (%p387) target = $region16
      $region15: #{seg_one_forward.1} parent=11 // pred_region
        _
      $region16: #{seg_one_forward.1} parent=11 // pred_fallthru
        _
      // Predicated region
      $region17: #{seg_one_forward.1} parent=11 // pred_check
        %p390 = pneg %p115
      $region18: #{seg_one_forward.1} parent=11 // pred_check_branch
        %392 = sbr.rel (%p390) target = $region20
      $region19: #{seg_one_forward.1} parent=11 // pred_region
        _
      $region20: #{seg_one_forward.1} parent=11 // pred_fallthru
        _
      // Predicated region
      $region21: #{seg_one_forward.1} parent=11 // pred_check
        %p393 = pneg %p136
      $region22: #{seg_one_forward.1} parent=11 // pred_check_branch
        %395 = sbr.rel (%p393) target = $region24
      $region23: #{seg_one_forward.1} parent=11 // pred_region
        _
      $region24: #{seg_one_forward.1} parent=11 // pred_fallthru
        _
      // Predicated region
      $region25: #{seg_one_forward.1} parent=11 // pred_check
        %p396 = pneg %p157
      $region26: #{seg_one_forward.1} parent=11 // pred_check_branch
        %398 = sbr.rel (%p396) target = $region28
      $region27: #{seg_one_forward.1} parent=11 // pred_region
        _
      $region28: #{seg_one_forward.1} parent=11 // pred_fallthru
        _
      // Predicated region
      $region29: #{seg_one_forward.1} parent=11 // pred_check
        %p399 = pneg %p178
      $region30: #{seg_one_forward.1} parent=11 // pred_check_branch
        %401 = sbr.rel (%p399) target = $region32
      $region31: #{seg_one_forward.1} parent=11 // pred_region
        _
      $region32: #{seg_one_forward.1} parent=11 // pred_fallthru
        _
      // Predicated region
      $region33: #{seg_one_forward.1} parent=11 // pred_check
        %p402 = pneg %p199
      $region34: #{seg_one_forward.1} parent=11 // pred_check_branch
        %404 = sbr.rel (%p402) target = $region36
      $region35: #{seg_one_forward.1} parent=11 // pred_region
        _
      $region36: #{seg_one_forward.1} parent=11 // pred_fallthru
        _
      // Predicated region
      $region37: #{seg_one_forward.1} parent=11 // pred_check
        %p405 = pneg %p220
      $region38: #{seg_one_forward.1} parent=11 // pred_check_branch
        %407 = sbr.rel (%p405) target = $region40
      $region39: #{seg_one_forward.1} parent=11 // pred_region
        _
      $region40: #{seg_one_forward.1} parent=11 // pred_fallthru
        _
      // Predicated region
      $region41: #{seg_one_forward.1} parent=11 // pred_check
        %p408 = pneg %p241
      $region42: #{seg_one_forward.1} parent=11 // pred_check_branch
        %410 = sbr.rel (%p408) target = $region44
      $region43: #{seg_one_forward.1} parent=11 // pred_region
        _
      $region44: #{seg_one_forward.1} parent=11 // pred_fallthru
        _
      // Predicated region
      $region45: #{seg_one_forward.1} parent=11 // pred_check
        %p411 = pneg %p262
      $region46: #{seg_one_forward.1} parent=11 // pred_check_branch
        %413 = sbr.rel (%p411) target = $region48
      $region47: #{seg_one_forward.1} parent=11 // pred_region
        _
      $region48: #{seg_one_forward.1} parent=11 // pred_fallthru
        _
      // Predicated region
      $region49: #{seg_one_forward.1} parent=11 // pred_check
        %p414 = pneg %p283
      $region50: #{seg_one_forward.1} parent=11 // pred_check_branch
        %416 = sbr.rel (%p414) target = $region52
      $region51: #{seg_one_forward.1} parent=11 // pred_region
        _
      $region52: #{seg_one_forward.1} parent=11 // pred_fallthru
        _
      // Predicated region
      $region53: #{seg_one_forward.1} parent=11 // pred_check
        %p417 = pneg %p304
      $region54: #{seg_one_forward.1} parent=11 // pred_check_branch
        %419 = sbr.rel (%p417) target = $region56
      $region55: #{seg_one_forward.1} parent=11 // pred_region
        _
      $region56: #{seg_one_forward.1} parent=11 // pred_fallthru
        _
      // Predicated region
      $region57: #{seg_one_forward.1} parent=11 // pred_check
        %p420 = pneg %p325
      $region58: #{seg_one_forward.1} parent=11 // pred_check_branch
        %422 = sbr.rel (%p420) target = $region60
      $region59: #{seg_one_forward.1} parent=11 // pred_region
        _
      $region60: #{seg_one_forward.1} parent=11 // pred_fallthru
        _
      // Predicated region
      $region61: #{seg_one_forward.1} parent=11 // pred_check
        %p423 = pneg %p346
      $region62: #{seg_one_forward.1} parent=11 // pred_check_branch
        %425 = sbr.rel (%p423) target = $region64
      $region63: #{seg_one_forward.1} parent=11 // pred_region
        _
      $region64: #{seg_one_forward.1} parent=11 // pred_fallthru
        _
    $region12: #{seg_one_forward.1} parent=5 // pred_fallthru
      _
    %p426 = scmp.lt.s32.totalorder %s21, 2
    // Predicated region
    $region65: #{seg_one_forward.1} parent=5 // pred_check
      %p427 = pneg %p426
    $region66: #{seg_one_forward.1} parent=5 // pred_check_branch
      %429 = sbr.rel (%p427) target = $region68
    $region67: #{seg_one_forward.1} parent=5 // pred_region
      // Predicated region
      $region69: #{seg_one_forward.1} parent=67 // pred_check
        %p430 = pneg %p41
      $region70: #{seg_one_forward.1} parent=67 // pred_check_branch
        %432 = sbr.rel (%p430) target = $region72
      $region71: #{seg_one_forward.1} parent=67 // pred_region
        %s433 = smul.u32 16, %s21
        %p434 = scmp.lt.s32.totalorder %s433, 31
        %s435 = scalar_select %p434, %s433, 31
        %s436 = smul.addr %s435, 8
        %s437 = scalar_lea.vmem %s0, %s436
        %s438 = smul.u32 16, %s21
      $region72: #{seg_one_forward.1} parent=67 // pred_fallthru
        _
      // Predicated region
      $region73: #{seg_one_forward.1} parent=67 // pred_check
        %p439 = pneg %p67
      $region74: #{seg_one_forward.1} parent=67 // pred_check_branch
        %441 = sbr.rel (%p439) target = $region76
      $region75: #{seg_one_forward.1} parent=67 // pred_region
        %s442 = smul.u32 16, %s21
        %p443 = scmp.lt.s32.totalorder %s442, 31
        %s444 = scalar_select %p443, %s442, 31
        %s445 = smul.addr %s444, 8
        %s446 = scalar_lea.vmem %s1, %s445
        %s447 = smul.u32 16, %s21
      $region76: #{seg_one_forward.1} parent=67 // pred_fallthru
        _
    $region68: #{seg_one_forward.1} parent=5 // pred_fallthru
      _
    %p448 = scmp.le.s32.totalorder 1, %s21
    %p449 = scmp.lt.s32.totalorder %s21, 3
    %p450 = pnand %p448, %p449
    %p451 = pneg %p450
    // Predicated region
    $region77: #{seg_one_forward.1} parent=5 // pred_check
      _
    $region78: #{seg_one_forward.1} parent=5 // pred_check_branch
      %453 = sbr.rel (%p450) target = $region80
    $region79: #{seg_one_forward.1} parent=5 // pred_region
      %s454 = ssub.s32 %s21, 1
      %s455 = smul.u32 16, %s26
      %p456 = scmp.lt.s32.totalorder %s455, 31
      %s457 = scalar_select %p456, %s455, 31
      %s458 = smul.addr %s457, 8
      %s459 = scalar_lea.vmem %s0, %s458
      %p460 = pneg %p47
      %p461 = pneg %p44
      %s462 = smul.u32 16, %s26
      %p463 = scmp.lt.s32.totalorder %s462, 31
      %s464 = scalar_select %p463, %s462, 31
      %s465 = smul.addr %s464, 8
      %s466 = scalar_lea.vmem %s1, %s465
      %p467 = pneg %p73
      %p468 = pneg %p70
      %p469 = pneg %p94
      %p470 = pneg %p91
      %p471 = pneg %p115
      %p472 = pneg %p112
      %p473 = pneg %p136
      %p474 = pneg %p133
      %p475 = pneg %p157
      %p476 = pneg %p154
      %p477 = pneg %p178
      %p478 = pneg %p175
      %p479 = pneg %p199
      %p480 = pneg %p196
      %p481 = pneg %p220
      %p482 = pneg %p217
      %p483 = pneg %p241
      %p484 = pneg %p238
      %p485 = pneg %p262
      %p486 = pneg %p259
      %p487 = pneg %p283
      %p488 = pneg %p280
      %p489 = pneg %p304
      %p490 = pneg %p301
      %p491 = pneg %p325
      %p492 = pneg %p322
      %p493 = pneg %p346
      %p494 = pneg %p343
      %p495 = pneg %p372
      %p496 = pneg %p369
      %p497 = scmp.lt.s32.totalorder %s26, 1
      %s498 = scalar_select %p497, %s26, 1
      %s499 = smul.addr %s498, 8
      %s500 = scalar_lea.vmem %s15, %s499
      %s501 = smul.u32 16, %s26
      %p502 = scmp.lt.s32.totalorder %s501, 31
      %s503 = scalar_select %p502, %s501, 31
      %s504 = smul.addr %s503, 8
      %s505 = scalar_lea.vmem %s0, %s504
      %s506 = smul.u32 16, %s26
      %s507 = smul.u32 16, %s26
      %p508 = scmp.lt.s32.totalorder %s507, 31
      %s509 = scalar_select %p508, %s507, 31
      %s510 = smul.addr %s509, 8
      %s511 = scalar_lea.vmem %s1, %s510
      %s512 = smul.u32 16, %s26
      %p513 = scmp.lt.s32.totalorder %s26, 1
      %s514 = scalar_select %p513, %s26, 1
      %s515 = smul.addr %s514, 8
      %s516 = scalar_lea.vmem %s15, %s515
      %v518 = vld [vmem:[%s511] sm:$0xff]
      %v519 = vld [vmem:[%s511 + $0x8] sm:$0xff]
      %v520 = vld [vmem:[%s511 + $0x10] sm:$0xff]
      %v521 = vld [vmem:[%s511 + $0x18] sm:$0xff]
      %v522 = vld [vmem:[%s511 + $0x20] sm:$0xff]
      %v523 = vld [vmem:[%s511 + $0x28] sm:$0xff]
      %v524 = vld [vmem:[%s511 + $0x30] sm:$0xff]
      %v525 = vld [vmem:[%s511 + $0x38] sm:$0xff]
      %v526 = vld [vmem:[%s511 + $0x40] sm:$0xff]
      %v527 = vld [vmem:[%s511 + $0x48] sm:$0xff]
      %v528 = vld [vmem:[%s511 + $0x50] sm:$0xff]
      %v529 = vld [vmem:[%s511 + $0x58] sm:$0xff]
      %v530 = vld [vmem:[%s511 + $0x60] sm:$0xff]
      %v531 = vld [vmem:[%s511 + $0x68] sm:$0xff]
      %v532 = vld [vmem:[%s511 + $0x70] sm:$0xff]
      %v533 = vld [vmem:[%s511 + $0x78] sm:$0xff]
      %v534 = vld [vmem:[%s505] sm:$0xff]
      %v535 = vld [vmem:[%s505 + $0x8] sm:$0xff]
      %v536 = vld [vmem:[%s505 + $0x10] sm:$0xff]
      %v537 = vld [vmem:[%s505 + $0x18] sm:$0xff]
      %v538 = vld [vmem:[%s505 + $0x20] sm:$0xff]
      %v539 = vld [vmem:[%s505 + $0x28] sm:$0xff]
      %v540 = vld [vmem:[%s505 + $0x30] sm:$0xff]
      %v541 = vld [vmem:[%s505 + $0x38] sm:$0xff]
      %v542 = vld [vmem:[%s505 + $0x40] sm:$0xff]
      %v543 = vld [vmem:[%s505 + $0x48] sm:$0xff]
      %v544 = vld [vmem:[%s505 + $0x50] sm:$0xff]
      %v545 = vld [vmem:[%s505 + $0x58] sm:$0xff]
      %v546 = vld [vmem:[%s505 + $0x60] sm:$0xff]
      %v547 = vld [vmem:[%s505 + $0x68] sm:$0xff]
      %v548 = vld [vmem:[%s505 + $0x70] sm:$0xff]
      %v549 = vld [vmem:[%s505 + $0x78] sm:$0xff]
      %v550 = vpack.c.bf16 %v519, %v518
      %v551 = vpack.c.bf16 %v521, %v520
      %v552 = vpack.c.bf16 %v523, %v522
      %v553 = vpack.c.bf16 %v525, %v524
      %v554 = vpack.c.bf16 %v527, %v526
      %v555 = vpack.c.bf16 %v529, %v528
      %v556 = vpack.c.bf16 %v531, %v530
      %v557 = vpack.c.bf16 %v533, %v532
      %v558 = vld [vmem:[%s2] sm:$0xff]
      %v559 = vld [vmem:[%s2 + $0x8] sm:$0xff]
      %v560 = vld [vmem:[%s2 + $0x10] sm:$0xff]
      %v561 = vld [vmem:[%s2 + $0x18] sm:$0xff]
      %v562 = vld [vmem:[%s2 + $0x20] sm:$0xff]
      %v563 = vld [vmem:[%s2 + $0x28] sm:$0xff]
      %v564 = vld [vmem:[%s2 + $0x30] sm:$0xff]
      %v565 = vld [vmem:[%s2 + $0x38] sm:$0xff]
      %v566 = vld [vmem:[%s2 + $0x40] sm:$0xff]
      %v567 = vld [vmem:[%s2 + $0x48] sm:$0xff]
      %v568 = vld [vmem:[%s3] sm:$0x3]
      %v570 = vlaneseq
      %v571 = vshrl.u32 %v570, 7
      %v572 = vsub.s32 0, %v571
      %v573 = vrot.slane %v568, %v572
      %v574 = vlaneseq
      %v575 = vshrl.u32 %v574, 7
      %v576 = vsub.s32 1, %v575
      %v577 = vrot.slane %v568, %v576
      %v590 = vunpack.c.l.b16 %v558
      %v591 = vunpack.c.h.b16 %v558
      %v592 = vunpack.c.l.b16 %v559
      %v593 = vunpack.c.h.b16 %v559
      %v594 = vunpack.c.l.b16 %v560
      %v595 = vunpack.c.h.b16 %v560
      %v596 = vunpack.c.l.b16 %v561
      %v597 = vunpack.c.h.b16 %v561
      %v598 = vunpack.c.l.b16 %v562
      %v599 = vunpack.c.h.b16 %v562
      %v600 = vunpack.c.l.b16 %v563
      %v601 = vunpack.c.h.b16 %v563
      %v602 = vunpack.c.l.b16 %v564
      %v603 = vunpack.c.h.b16 %v564
      %v604 = vunpack.c.l.b16 %v565
      %v605 = vunpack.c.h.b16 %v565
      %v606 = vunpack.c.l.b16 %v566
      %v607 = vunpack.c.h.b16 %v566
      %v608 = vunpack.c.l.b16 %v567
      %v609 = vunpack.c.h.b16 %v567
      %v610 = vpack.c.b16 %v592, %v590
      %v611 = vpack.c.b16 %v593, %v591
      %v612 = vpack.c.b16 %v596, %v594
      %v613 = vpack.c.b16 %v597, %v595
      %v614 = vpack.c.b16 %v600, %v598
      %v615 = vpack.c.b16 %v601, %v599
      %v616 = vpack.c.b16 %v604, %v602
      %v617 = vpack.c.b16 %v605, %v603
      %v618 = vpack.c.b16 %v608, %v606
      %v619 = vpack.c.b16 %v609, %v607
      %vm630 = vcmask 654336
      %v632 = vsel %vm630, %v550, 0
      %v635 = vsel %vm630, %v551, 0
      %v638 = vsel %vm630, %v552, 0
      %v641 = vsel %vm630, %v553, 0
      %v644 = vsel %vm630, %v554, 0
      %v647 = vsel %vm630, %v555, 0
      %v650 = vsel %vm630, %v556, 0
      %v653 = vsel %vm630, %v557, 0
      %655 = vmatprep.subr.bf16.mxu0 %v611
      %656 = vmatpush1.bf16.msra.mxu0 %v610
      %657 = vmatprep.subr.bf16.mxu0 %v613
      %658 = vmatpush1.bf16.msra.mxu0 %v612
      %659 = vmatprep.subr.bf16.mxu0 %v615
      %660 = vmatpush1.bf16.msra.mxu0 %v614
      %661 = vmatprep.subr.bf16.mxu0 %v617
      %662 = vmatpush1.bf16.msra.mxu0 %v616
      %663 = vmatprep.subr.bf16.mxu0 %v619
      %664 = vmatpush1.bf16.msra.mxu0 %v618
      %665 = vmatprep.subr.bf16.mxu0 0
      %666 = vmatpush1.bf16.msra.mxu0 0
      %667 = vmatprep.subr.bf16.mxu0 0
      %668 = vmatpush1.bf16.msra.mxu0 0
      %669 = vmatprep.subr.bf16.mxu0 0
      %670 = vmatpush1.bf16.msra.mxu0 0
      %671 = vmatprep.subr.bf16.mxu0 0
      %672 = vmatpush1.bf16.msra.mxu0 0
      %673 = vmatprep.subr.bf16.mxu0 0
      %674 = vmatpush1.bf16.msra.mxu0 0
      %675 = vmatprep.subr.bf16.mxu0 0
      %676 = vmatpush1.bf16.msra.mxu0 0
      %677 = vmatprep.subr.bf16.mxu0 0
      %678 = vmatpush1.bf16.msra.mxu0 0
      %679 = vmatprep.subr.bf16.mxu0 0
      %680 = vmatpush1.bf16.msra.mxu0 0
      %681 = vmatprep.subr.bf16.mxu0 0
      %682 = vmatpush1.bf16.msra.mxu0 0
      %683 = vmatprep.subr.bf16.mxu0 0
      %684 = vmatpush1.bf16.msra.mxu0 0
      %685 = vmatprep.subr.bf16.mxu0 0
      %686 = vmatpush1.bf16.msra.mxu0 0
      %687 = vmatprep.mubr.bf16.mxu0 0
      %688 = vmatmul.mubr.bf16.gmra.mrb[0].mxu0 %v632
      %v689 = vpop.f32.mrb[0].mxu0
      %v690 = vadd.f32 %v573, %v689
      %v691 = vpop.f32.mrb[0].mxu0
      %v692 = vadd.f32 %v577, %v691
      %v693 = vpop.f32.mrb[0].mxu0
      %v694 = vadd.f32 %v573, %v693
      %v695 = vpop.f32.mrb[0].mxu0
      %v696 = vadd.f32 %v577, %v695
      %697 = vmatprep.mubr.bf16.mxu0 0
      %698 = vmatmul.mubr.bf16.gmra.mrb[0].mxu0 %v635
      %v699 = vpop.f32.mrb[0].mxu0
      %v700 = vadd.f32 %v573, %v699
      %v701 = vpop.f32.mrb[0].mxu0
      %v702 = vadd.f32 %v577, %v701
      %v703 = vpop.f32.mrb[0].mxu0
      %v704 = vadd.f32 %v573, %v703
      %v705 = vpop.f32.mrb[0].mxu0
      %v706 = vadd.f32 %v577, %v705
      %707 = vmatprep.mubr.bf16.mxu0 0
      %708 = vmatmul.mubr.bf16.gmra.mrb[0].mxu0 %v638
      %v709 = vpop.f32.mrb[0].mxu0
      %v710 = vadd.f32 %v573, %v709
      %v711 = vpop.f32.mrb[0].mxu0
      %v712 = vadd.f32 %v577, %v711
      %v713 = vpop.f32.mrb[0].mxu0
      %v714 = vadd.f32 %v573, %v713
      %v715 = vpop.f32.mrb[0].mxu0
      %v716 = vadd.f32 %v577, %v715
      %717 = vmatprep.mubr.bf16.mxu0 0
      %718 = vmatmul.mubr.bf16.gmra.mrb[0].mxu0 %v641
      %v719 = vpop.f32.mrb[0].mxu0
      %v720 = vadd.f32 %v573, %v719
      %v721 = vpop.f32.mrb[0].mxu0
      %v722 = vadd.f32 %v577, %v721
      %v723 = vpop.f32.mrb[0].mxu0
      %v724 = vadd.f32 %v573, %v723
      %v725 = vpop.f32.mrb[0].mxu0
      %v726 = vadd.f32 %v577, %v725
      %727 = vmatprep.mubr.bf16.mxu0 0
      %728 = vmatmul.mubr.bf16.gmra.mrb[0].mxu0 %v644
      %v729 = vpop.f32.mrb[0].mxu0
      %v730 = vadd.f32 %v573, %v729
      %v731 = vpop.f32.mrb[0].mxu0
      %v732 = vadd.f32 %v577, %v731
      %v733 = vpop.f32.mrb[0].mxu0
      %v734 = vadd.f32 %v573, %v733
      %v735 = vpop.f32.mrb[0].mxu0
      %v736 = vadd.f32 %v577, %v735
      %737 = vmatprep.mubr.bf16.mxu0 0
      %738 = vmatmul.mubr.bf16.gmra.mrb[0].mxu0 %v647
      %v739 = vpop.f32.mrb[0].mxu0
      %v740 = vadd.f32 %v573, %v739
      %v741 = vpop.f32.mrb[0].mxu0
      %v742 = vadd.f32 %v577, %v741
      %v743 = vpop.f32.mrb[0].mxu0
      %v744 = vadd.f32 %v573, %v743
      %v745 = vpop.f32.mrb[0].mxu0
      %v746 = vadd.f32 %v577, %v745
      %747 = vmatprep.mubr.bf16.mxu0 0
      %748 = vmatmul.mubr.bf16.gmra.mrb[0].mxu0 %v650
      %v749 = vpop.f32.mrb[0].mxu0
      %v750 = vadd.f32 %v573, %v749
      %v751 = vpop.f32.mrb[0].mxu0
      %v752 = vadd.f32 %v577, %v751
      %v753 = vpop.f32.mrb[0].mxu0
      %v754 = vadd.f32 %v573, %v753
      %v755 = vpop.f32.mrb[0].mxu0
      %v756 = vadd.f32 %v577, %v755
      %757 = vmatprep.mubr.bf16.mxu0 0
      %758 = vmatmul.mubr.bf16.gmra.mrb[0].mxu0 %v653
      %v759 = vpop.f32.mrb[0].mxu0
      %v760 = vadd.f32 %v573, %v759
      %v761 = vpop.f32.mrb[0].mxu0
      %v762 = vadd.f32 %v577, %v761
      %v763 = vpop.f32.mrb[0].mxu0
      %v764 = vadd.f32 %v573, %v763
      %v765 = vpop.f32.mrb[0].mxu0
      %v766 = vadd.f32 %v577, %v765
      %767 = vdwg.mxu0
      %v768 = vtanh.pop %v690
      %v769 = vtanh.pop %v694
      %v770 = vtanh.pop %v700
      %v771 = vtanh.pop %v704
      %v772 = vtanh.pop %v710
      %v773 = vtanh.pop %v714
      %v774 = vtanh.pop %v720
      %v775 = vtanh.pop %v724
      %v776 = vtanh.pop %v730
      %v777 = vtanh.pop %v734
      %v778 = vtanh.pop %v740
      %v779 = vtanh.pop %v744
      %v780 = vtanh.pop %v750
      %v781 = vtanh.pop %v754
      %v782 = vtanh.pop %v760
      %v783 = vtanh.pop %v764
      %v784 = vmul.f32 %v690, 0.05
      %v785 = vmul.f32 %v692, 0.05
      %v786 = vmul.f32 %v694, 0.05
      %v787 = vmul.f32 %v696, 0.05
      %v788 = vmul.f32 %v700, 0.05
      %v789 = vmul.f32 %v702, 0.05
      %v790 = vmul.f32 %v704, 0.05
      %v791 = vmul.f32 %v706, 0.05
      %v792 = vmul.f32 %v710, 0.05
      %v793 = vmul.f32 %v712, 0.05
      %v794 = vmul.f32 %v714, 0.05
      %v795 = vmul.f32 %v716, 0.05
      %v796 = vmul.f32 %v720, 0.05
      %v797 = vmul.f32 %v722, 0.05
      %v798 = vmul.f32 %v724, 0.05
      %v799 = vmul.f32 %v726, 0.05
      %v800 = vmul.f32 %v730, 0.05
      %v801 = vmul.f32 %v732, 0.05
      %v802 = vmul.f32 %v734, 0.05
      %v803 = vmul.f32 %v736, 0.05
      %v804 = vmul.f32 %v740, 0.05
      %v805 = vmul.f32 %v742, 0.05
      %v806 = vmul.f32 %v744, 0.05
      %v807 = vmul.f32 %v746, 0.05
      %v808 = vmul.f32 %v750, 0.05
      %v809 = vmul.f32 %v752, 0.05
      %v810 = vmul.f32 %v754, 0.05
      %v811 = vmul.f32 %v756, 0.05
      %v812 = vmul.f32 %v760, 0.05
      %v813 = vmul.f32 %v762, 0.05
      %v814 = vmul.f32 %v764, 0.05
      %v815 = vmul.f32 %v766, 0.05
      %v816 = vxor.u32 %v784, 2147483648
      %v817 = vxor.u32 %v785, 2147483648
      %v818 = vxor.u32 %v786, 2147483648
      %v819 = vxor.u32 %v787, 2147483648
      %v820 = vxor.u32 %v788, 2147483648
      %v821 = vxor.u32 %v789, 2147483648
      %v822 = vxor.u32 %v790, 2147483648
      %v823 = vxor.u32 %v791, 2147483648
      %v824 = vxor.u32 %v792, 2147483648
      %v825 = vxor.u32 %v793, 2147483648
      %v826 = vxor.u32 %v794, 2147483648
      %v827 = vxor.u32 %v795, 2147483648
      %v828 = vxor.u32 %v796, 2147483648
      %v829 = vxor.u32 %v797, 2147483648
      %v830 = vxor.u32 %v798, 2147483648
      %v831 = vxor.u32 %v799, 2147483648
      %v832 = vxor.u32 %v800, 2147483648
      %v833 = vxor.u32 %v801, 2147483648
      %v834 = vxor.u32 %v802, 2147483648
      %v835 = vxor.u32 %v803, 2147483648
      %v836 = vxor.u32 %v804, 2147483648
      %v837 = vxor.u32 %v805, 2147483648
      %v838 = vxor.u32 %v806, 2147483648
      %v839 = vxor.u32 %v807, 2147483648
      %v840 = vxor.u32 %v808, 2147483648
      %v841 = vxor.u32 %v809, 2147483648
      %v842 = vxor.u32 %v810, 2147483648
      %v843 = vxor.u32 %v811, 2147483648
      %v844 = vxor.u32 %v812, 2147483648
      %v845 = vxor.u32 %v813, 2147483648
      %v846 = vxor.u32 %v814, 2147483648
      %v847 = vxor.u32 %v815, 2147483648
      %v848 = vmul.f32 %v816, 1.442695
      %v849 = vpow.pop %v848
      %v850 = vmul.f32 %v817, 1.442695
      %v851 = vpow.pop %v850
      %v852 = vmul.f32 %v818, 1.442695
      %v853 = vpow.pop %v852
      %v854 = vmul.f32 %v819, 1.442695
      %v855 = vpow.pop %v854
      %v856 = vmul.f32 %v820, 1.442695
      %v857 = vpow.pop %v856
      %v858 = vmul.f32 %v821, 1.442695
      %v859 = vpow.pop %v858
      %v860 = vmul.f32 %v822, 1.442695
      %v861 = vpow.pop %v860
      %v862 = vmul.f32 %v823, 1.442695
      %v863 = vpow.pop %v862
      %v864 = vmul.f32 %v824, 1.442695
      %v865 = vpow.pop %v864
      %v866 = vmul.f32 %v825, 1.442695
      %v867 = vpow.pop %v866
      %v868 = vmul.f32 %v826, 1.442695
      %v869 = vpow.pop %v868
      %v870 = vmul.f32 %v827, 1.442695
      %v871 = vpow.pop %v870
      %v872 = vmul.f32 %v828, 1.442695
      %v873 = vpow.pop %v872
      %v874 = vmul.f32 %v829, 1.442695
      %v875 = vpow.pop %v874
      %v876 = vmul.f32 %v830, 1.442695
      %v877 = vpow.pop %v876
      %v878 = vmul.f32 %v831, 1.442695
      %v879 = vpow.pop %v878
      %v880 = vmul.f32 %v832, 1.442695
      %v881 = vpow.pop %v880
      %v882 = vmul.f32 %v833, 1.442695
      %v883 = vpow.pop %v882
      %v884 = vmul.f32 %v834, 1.442695
      %v885 = vpow.pop %v884
      %v886 = vmul.f32 %v835, 1.442695
      %v887 = vpow.pop %v886
      %v888 = vmul.f32 %v836, 1.442695
      %v889 = vpow.pop %v888
      %v890 = vmul.f32 %v837, 1.442695
      %v891 = vpow.pop %v890
      %v892 = vmul.f32 %v838, 1.442695
      %v893 = vpow.pop %v892
      %v894 = vmul.f32 %v839, 1.442695
      %v895 = vpow.pop %v894
      %v896 = vmul.f32 %v840, 1.442695
      %v897 = vpow.pop %v896
      %v898 = vmul.f32 %v841, 1.442695
      %v899 = vpow.pop %v898
      %v900 = vmul.f32 %v842, 1.442695
      %v901 = vpow.pop %v900
      %v902 = vmul.f32 %v843, 1.442695
      %v903 = vpow.pop %v902
      %v904 = vmul.f32 %v844, 1.442695
      %v905 = vpow.pop %v904
      %v906 = vmul.f32 %v845, 1.442695
      %v907 = vpow.pop %v906
      %v908 = vmul.f32 %v846, 1.442695
      %v909 = vpow.pop %v908
      %v910 = vmul.f32 %v847, 1.442695
      %v911 = vpow.pop %v910
      %v912 = vadd.f32 %v849, 1.0
      %v913 = vadd.f32 %v851, 1.0
      %v914 = vadd.f32 %v853, 1.0
      %v915 = vadd.f32 %v855, 1.0
      %v916 = vadd.f32 %v857, 1.0
      %v917 = vadd.f32 %v859, 1.0
      %v918 = vadd.f32 %v861, 1.0
      %v919 = vadd.f32 %v863, 1.0
      %v920 = vadd.f32 %v865, 1.0
      %v921 = vadd.f32 %v867, 1.0
      %v922 = vadd.f32 %v869, 1.0
      %v923 = vadd.f32 %v871, 1.0
      %v924 = vadd.f32 %v873, 1.0
      %v925 = vadd.f32 %v875, 1.0
      %v926 = vadd.f32 %v877, 1.0
      %v927 = vadd.f32 %v879, 1.0
      %v928 = vadd.f32 %v881, 1.0
      %v929 = vadd.f32 %v883, 1.0
      %v930 = vadd.f32 %v885, 1.0
      %v931 = vadd.f32 %v887, 1.0
      %v932 = vadd.f32 %v889, 1.0
      %v933 = vadd.f32 %v891, 1.0
      %v934 = vadd.f32 %v893, 1.0
      %v935 = vadd.f32 %v895, 1.0
      %v936 = vadd.f32 %v897, 1.0
      %v937 = vadd.f32 %v899, 1.0
      %v938 = vadd.f32 %v901, 1.0
      %v939 = vadd.f32 %v903, 1.0
      %v940 = vadd.f32 %v905, 1.0
      %v941 = vadd.f32 %v907, 1.0
      %v942 = vadd.f32 %v909, 1.0
      %v943 = vadd.f32 %v911, 1.0
      %v944 = vrcp.pop %v912
      %v945 = vmul.f32 1.0, %v944
      %v946 = vrcp.pop %v913
      %v947 = vmul.f32 1.0, %v946
      %v948 = vrcp.pop %v914
      %v949 = vmul.f32 1.0, %v948
      %v950 = vrcp.pop %v915
      %v951 = vmul.f32 1.0, %v950
      %v952 = vrcp.pop %v916
      %v953 = vmul.f32 1.0, %v952
      %v954 = vrcp.pop %v917
      %v955 = vmul.f32 1.0, %v954
      %v956 = vrcp.pop %v918
      %v957 = vmul.f32 1.0, %v956
      %v958 = vrcp.pop %v919
      %v959 = vmul.f32 1.0, %v958
      %v960 = vrcp.pop %v920
      %v961 = vmul.f32 1.0, %v960
      %v962 = vrcp.pop %v921
      %v963 = vmul.f32 1.0, %v962
      %v964 = vrcp.pop %v922
      %v965 = vmul.f32 1.0, %v964
      %v966 = vrcp.pop %v923
      %v967 = vmul.f32 1.0, %v966
      %v968 = vrcp.pop %v924
      %v969 = vmul.f32 1.0, %v968
      %v970 = vrcp.pop %v925
      %v971 = vmul.f32 1.0, %v970
      %v972 = vrcp.pop %v926
      %v973 = vmul.f32 1.0, %v972
      %v974 = vrcp.pop %v927
      %v975 = vmul.f32 1.0, %v974
      %v976 = vrcp.pop %v928
      %v977 = vmul.f32 1.0, %v976
      %v978 = vrcp.pop %v929
      %v979 = vmul.f32 1.0, %v978
      %v980 = vrcp.pop %v930
      %v981 = vmul.f32 1.0, %v980
      %v982 = vrcp.pop %v931
      %v983 = vmul.f32 1.0, %v982
      %v984 = vrcp.pop %v932
      %v985 = vmul.f32 1.0, %v984
      %v986 = vrcp.pop %v933
      %v987 = vmul.f32 1.0, %v986
      %v988 = vrcp.pop %v934
      %v989 = vmul.f32 1.0, %v988
      %v990 = vrcp.pop %v935
      %v991 = vmul.f32 1.0, %v990
      %v992 = vrcp.pop %v936
      %v993 = vmul.f32 1.0, %v992
      %v994 = vrcp.pop %v937
      %v995 = vmul.f32 1.0, %v994
      %v996 = vrcp.pop %v938
      %v997 = vmul.f32 1.0, %v996
      %v998 = vrcp.pop %v939
      %v999 = vmul.f32 1.0, %v998
      %v1000 = vrcp.pop %v940
      %v1001 = vmul.f32 1.0, %v1000
      %v1002 = vrcp.pop %v941
      %v1003 = vmul.f32 1.0, %v1002
      %v1004 = vrcp.pop %v942
      %v1005 = vmul.f32 1.0, %v1004
      %v1006 = vrcp.pop %v943
      %v1007 = vmul.f32 1.0, %v1006
      %1024 = vrot.lane.b32.xlu0 %v768, 96
      %v1025 = vpop.permute.xlu0 %1024
      %1026 = vrot.lane.b32.xlu0 %v769, 96
      %v1027 = vpop.permute.xlu0 %1026
      %1028 = vrot.lane.b32.xlu0 %v770, 96
      %v1029 = vpop.permute.xlu0 %1028
      %1030 = vrot.lane.b32.xlu0 %v771, 96
      %v1031 = vpop.permute.xlu0 %1030
      %1032 = vrot.lane.b32.xlu0 %v772, 96
      %v1033 = vpop.permute.xlu0 %1032
      %1034 = vrot.lane.b32.xlu0 %v773, 96
      %v1035 = vpop.permute.xlu0 %1034
      %1036 = vrot.lane.b32.xlu0 %v774, 96
      %v1037 = vpop.permute.xlu0 %1036
      %1038 = vrot.lane.b32.xlu0 %v775, 96
      %v1039 = vpop.permute.xlu0 %1038
      %1040 = vrot.lane.b32.xlu0 %v776, 96
      %v1041 = vpop.permute.xlu0 %1040
      %1042 = vrot.lane.b32.xlu0 %v777, 96
      %v1043 = vpop.permute.xlu0 %1042
      %1044 = vrot.lane.b32.xlu0 %v778, 96
      %v1045 = vpop.permute.xlu0 %1044
      %1046 = vrot.lane.b32.xlu0 %v779, 96
      %v1047 = vpop.permute.xlu0 %1046
      %1048 = vrot.lane.b32.xlu0 %v780, 96
      %v1049 = vpop.permute.xlu0 %1048
      %1050 = vrot.lane.b32.xlu0 %v781, 96
      %v1051 = vpop.permute.xlu0 %1050
      %1052 = vrot.lane.b32.xlu0 %v782, 96
      %v1053 = vpop.permute.xlu0 %1052
      %1054 = vrot.lane.b32.xlu0 %v783, 96
      %v1055 = vpop.permute.xlu0 %1054
      %v1072 = vmul.f32 %v945, %v1025
      %v1073 = vmul.f32 %v947, %v1025
      %v1074 = vmul.f32 %v949, %v1027
      %v1075 = vmul.f32 %v951, %v1027
      %v1076 = vmul.f32 %v953, %v1029
      %v1077 = vmul.f32 %v955, %v1029
      %v1078 = vmul.f32 %v957, %v1031
      %v1079 = vmul.f32 %v959, %v1031
      %v1080 = vmul.f32 %v961, %v1033
      %v1081 = vmul.f32 %v963, %v1033
      %v1082 = vmul.f32 %v965, %v1035
      %v1083 = vmul.f32 %v967, %v1035
      %v1084 = vmul.f32 %v969, %v1037
      %v1085 = vmul.f32 %v971, %v1037
      %v1086 = vmul.f32 %v973, %v1039
      %v1087 = vmul.f32 %v975, %v1039
      %v1088 = vmul.f32 %v977, %v1041
      %v1089 = vmul.f32 %v979, %v1041
      %v1090 = vmul.f32 %v981, %v1043
      %v1091 = vmul.f32 %v983, %v1043
      %v1092 = vmul.f32 %v985, %v1045
      %v1093 = vmul.f32 %v987, %v1045
      %v1094 = vmul.f32 %v989, %v1047
      %v1095 = vmul.f32 %v991, %v1047
      %v1096 = vmul.f32 %v993, %v1049
      %v1097 = vmul.f32 %v995, %v1049
      %v1098 = vmul.f32 %v997, %v1051
      %v1099 = vmul.f32 %v999, %v1051
      %v1100 = vmul.f32 %v1001, %v1053
      %v1101 = vmul.f32 %v1003, %v1053
      %v1102 = vmul.f32 %v1005, %v1055
      %v1103 = vmul.f32 %v1007, %v1055
      %v1104 = vsub.f32 1.0, %v945
      %v1105 = vsub.f32 1.0, %v947
      %v1106 = vsub.f32 1.0, %v949
      %v1107 = vsub.f32 1.0, %v951
      %v1108 = vsub.f32 1.0, %v953
      %v1109 = vsub.f32 1.0, %v955
      %v1110 = vsub.f32 1.0, %v957
      %v1111 = vsub.f32 1.0, %v959
      %v1112 = vsub.f32 1.0, %v961
      %v1113 = vsub.f32 1.0, %v963
      %v1114 = vsub.f32 1.0, %v965
      %v1115 = vsub.f32 1.0, %v967
      %v1116 = vsub.f32 1.0, %v969
      %v1117 = vsub.f32 1.0, %v971
      %v1118 = vsub.f32 1.0, %v973
      %v1119 = vsub.f32 1.0, %v975
      %v1120 = vsub.f32 1.0, %v977
      %v1121 = vsub.f32 1.0, %v979
      %v1122 = vsub.f32 1.0, %v981
      %v1123 = vsub.f32 1.0, %v983
      %v1124 = vsub.f32 1.0, %v985
      %v1125 = vsub.f32 1.0, %v987
      %v1126 = vsub.f32 1.0, %v989
      %v1127 = vsub.f32 1.0, %v991
      %v1128 = vsub.f32 1.0, %v993
      %v1129 = vsub.f32 1.0, %v995
      %v1130 = vsub.f32 1.0, %v997
      %v1131 = vsub.f32 1.0, %v999
      %v1132 = vsub.f32 1.0, %v1001
      %v1133 = vsub.f32 1.0, %v1003
      %v1134 = vsub.f32 1.0, %v1005
      %v1135 = vsub.f32 1.0, %v1007
      %1152 = vrot.lane.b32.xlu0 %v518, 96
      %v1153 = vpop.permute.xlu0 %1152
      %1154 = vrot.lane.b32.xlu0 %v519, 96
      %v1155 = vpop.permute.xlu0 %1154
      %1156 = vrot.lane.b32.xlu0 %v520, 96
      %v1157 = vpop.permute.xlu0 %1156
      %1158 = vrot.lane.b32.xlu0 %v521, 96
      %v1159 = vpop.permute.xlu0 %1158
      %1160 = vrot.lane.b32.xlu0 %v522, 96
      %v1161 = vpop.permute.xlu0 %1160
      %1162 = vrot.lane.b32.xlu0 %v523, 96
      %v1163 = vpop.permute.xlu0 %1162
      %1164 = vrot.lane.b32.xlu0 %v524, 96
      %v1165 = vpop.permute.xlu0 %1164
      %1166 = vrot.lane.b32.xlu0 %v525, 96
      %v1167 = vpop.permute.xlu0 %1166
      %1168 = vrot.lane.b32.xlu0 %v526, 96
      %v1169 = vpop.permute.xlu0 %1168
      %1170 = vrot.lane.b32.xlu0 %v527, 96
      %v1171 = vpop.permute.xlu0 %1170
      %1172 = vrot.lane.b32.xlu0 %v528, 96
      %v1173 = vpop.permute.xlu0 %1172
      %1174 = vrot.lane.b32.xlu0 %v529, 96
      %v1175 = vpop.permute.xlu0 %1174
      %1176 = vrot.lane.b32.xlu0 %v530, 96
      %v1177 = vpop.permute.xlu0 %1176
      %1178 = vrot.lane.b32.xlu0 %v531, 96
      %v1179 = vpop.permute.xlu0 %1178
      %1180 = vrot.lane.b32.xlu0 %v532, 96
      %v1181 = vpop.permute.xlu0 %1180
      %1182 = vrot.lane.b32.xlu0 %v533, 96
      %v1183 = vpop.permute.xlu0 %1182
      %v1200 = vmul.f32 %v1104, %v1153
      %v1201 = vmul.f32 %v1105, %v1153
      %v1202 = vmul.f32 %v1106, %v1155
      %v1203 = vmul.f32 %v1107, %v1155
      %v1204 = vmul.f32 %v1108, %v1157
      %v1205 = vmul.f32 %v1109, %v1157
      %v1206 = vmul.f32 %v1110, %v1159
      %v1207 = vmul.f32 %v1111, %v1159
      %v1208 = vmul.f32 %v1112, %v1161
      %v1209 = vmul.f32 %v1113, %v1161
      %v1210 = vmul.f32 %v1114, %v1163
      %v1211 = vmul.f32 %v1115, %v1163
      %v1212 = vmul.f32 %v1116, %v1165
      %v1213 = vmul.f32 %v1117, %v1165
      %v1214 = vmul.f32 %v1118, %v1167
      %v1215 = vmul.f32 %v1119, %v1167
      %v1216 = vmul.f32 %v1120, %v1169
      %v1217 = vmul.f32 %v1121, %v1169
      %v1218 = vmul.f32 %v1122, %v1171
      %v1219 = vmul.f32 %v1123, %v1171
      %v1220 = vmul.f32 %v1124, %v1173
      %v1221 = vmul.f32 %v1125, %v1173
      %v1222 = vmul.f32 %v1126, %v1175
      %v1223 = vmul.f32 %v1127, %v1175
      %v1224 = vmul.f32 %v1128, %v1177
      %v1225 = vmul.f32 %v1129, %v1177
      %v1226 = vmul.f32 %v1130, %v1179
      %v1227 = vmul.f32 %v1131, %v1179
      %v1228 = vmul.f32 %v1132, %v1181
      %v1229 = vmul.f32 %v1133, %v1181
      %v1230 = vmul.f32 %v1134, %v1183
      %v1231 = vmul.f32 %v1135, %v1183
      %v1232 = vadd.f32 %v1072, %v1200
      %v1233 = vadd.f32 %v1073, %v1201
      %v1234 = vadd.f32 %v1074, %v1202
      %v1235 = vadd.f32 %v1075, %v1203
      %v1236 = vadd.f32 %v1076, %v1204
      %v1237 = vadd.f32 %v1077, %v1205
      %v1238 = vadd.f32 %v1078, %v1206
      %v1239 = vadd.f32 %v1079, %v1207
      %v1240 = vadd.f32 %v1080, %v1208
      %v1241 = vadd.f32 %v1081, %v1209
      %v1242 = vadd.f32 %v1082, %v1210
      %v1243 = vadd.f32 %v1083, %v1211
      %v1244 = vadd.f32 %v1084, %v1212
      %v1245 = vadd.f32 %v1085, %v1213
      %v1246 = vadd.f32 %v1086, %v1214
      %v1247 = vadd.f32 %v1087, %v1215
      %v1248 = vadd.f32 %v1088, %v1216
      %v1249 = vadd.f32 %v1089, %v1217
      %v1250 = vadd.f32 %v1090, %v1218
      %v1251 = vadd.f32 %v1091, %v1219
      %v1252 = vadd.f32 %v1092, %v1220
      %v1253 = vadd.f32 %v1093, %v1221
      %v1254 = vadd.f32 %v1094, %v1222
      %v1255 = vadd.f32 %v1095, %v1223
      %v1256 = vadd.f32 %v1096, %v1224
      %v1257 = vadd.f32 %v1097, %v1225
      %v1258 = vadd.f32 %v1098, %v1226
      %v1259 = vadd.f32 %v1099, %v1227
      %v1260 = vadd.f32 %v1100, %v1228
      %v1261 = vadd.f32 %v1101, %v1229
      %v1262 = vadd.f32 %v1102, %v1230
      %v1263 = vadd.f32 %v1103, %v1231
      %1264 = vrot.lane.b32.xlu0 %v518, 16
      %v1265 = vpop.permute.xlu0 %1264
      %1266 = vrot.lane.b32.xlu0 %v519, 16
      %v1267 = vpop.permute.xlu0 %1266
      %1268 = vrot.lane.b32.xlu0 %v520, 16
      %v1269 = vpop.permute.xlu0 %1268
      %1270 = vrot.lane.b32.xlu0 %v521, 16
      %v1271 = vpop.permute.xlu0 %1270
      %1272 = vrot.lane.b32.xlu0 %v522, 16
      %v1273 = vpop.permute.xlu0 %1272
      %1274 = vrot.lane.b32.xlu0 %v523, 16
      %v1275 = vpop.permute.xlu0 %1274
      %1276 = vrot.lane.b32.xlu0 %v524, 16
      %v1277 = vpop.permute.xlu0 %1276
      %1278 = vrot.lane.b32.xlu0 %v525, 16
      %v1279 = vpop.permute.xlu0 %1278
      %1280 = vrot.lane.b32.xlu0 %v526, 16
      %v1281 = vpop.permute.xlu0 %1280
      %1282 = vrot.lane.b32.xlu0 %v527, 16
      %v1283 = vpop.permute.xlu0 %1282
      %1284 = vrot.lane.b32.xlu0 %v528, 16
      %v1285 = vpop.permute.xlu0 %1284
      %1286 = vrot.lane.b32.xlu0 %v529, 16
      %v1287 = vpop.permute.xlu0 %1286
      %1288 = vrot.lane.b32.xlu0 %v530, 16
      %v1289 = vpop.permute.xlu0 %1288
      %1290 = vrot.lane.b32.xlu0 %v531, 16
      %v1291 = vpop.permute.xlu0 %1290
      %1292 = vrot.lane.b32.xlu0 %v532, 16
      %v1293 = vpop.permute.xlu0 %1292
      %1294 = vrot.lane.b32.xlu0 %v533, 16
      %v1295 = vpop.permute.xlu0 %1294
      %v1312 = vmul.f32 %v1105, %v1265
      %v1313 = vmul.f32 %v1107, %v1267
      %v1314 = vmul.f32 %v1109, %v1269
      %v1315 = vmul.f32 %v1111, %v1271
      %v1316 = vmul.f32 %v1113, %v1273
      %v1317 = vmul.f32 %v1115, %v1275
      %v1318 = vmul.f32 %v1117, %v1277
      %v1319 = vmul.f32 %v1119, %v1279
      %v1320 = vmul.f32 %v1121, %v1281
      %v1321 = vmul.f32 %v1123, %v1283
      %v1322 = vmul.f32 %v1125, %v1285
      %v1323 = vmul.f32 %v1127, %v1287
      %v1324 = vmul.f32 %v1129, %v1289
      %v1325 = vmul.f32 %v1131, %v1291
      %v1326 = vmul.f32 %v1133, %v1293
      %v1327 = vmul.f32 %v1135, %v1295
      %v1328 = vadd.f32 %v1073, %v1312
      %v1329 = vadd.f32 %v1075, %v1313
      %v1330 = vadd.f32 %v1077, %v1314
      %v1331 = vadd.f32 %v1079, %v1315
      %v1332 = vadd.f32 %v1081, %v1316
      %v1333 = vadd.f32 %v1083, %v1317
      %v1334 = vadd.f32 %v1085, %v1318
      %v1335 = vadd.f32 %v1087, %v1319
      %v1336 = vadd.f32 %v1089, %v1320
      %v1337 = vadd.f32 %v1091, %v1321
      %v1338 = vadd.f32 %v1093, %v1322
      %v1339 = vadd.f32 %v1095, %v1323
      %v1340 = vadd.f32 %v1097, %v1324
      %v1341 = vadd.f32 %v1099, %v1325
      %v1342 = vadd.f32 %v1101, %v1326
      %v1343 = vadd.f32 %v1103, %v1327
      %v1344 = vlaneseq
      %v1345 = vshrl.u32 %v1344, 7
      %v1346 = vadd.s32 %v1345, 8
      %v1347 = vadd.s32 %v1345, 16
      %v1348 = vadd.s32 %v1345, 24
      %v1349 = vadd.s32 %v1345, 32
      %v1350 = vadd.s32 %v1345, 40
      %v1351 = vadd.s32 %v1345, 48
      %v1352 = vadd.s32 %v1345, 56
      %v1353 = vadd.s32 %v1345, 64
      %v1354 = vadd.s32 %v1345, 72
      %v1355 = vadd.s32 %v1345, 80
      %v1356 = vadd.s32 %v1345, 88
      %v1357 = vadd.s32 %v1345, 96
      %v1358 = vadd.s32 %v1345, 104
      %v1359 = vadd.s32 %v1345, 112
      %v1360 = vadd.s32 %v1345, 120
      %vm1361 = vcmp.lt.s32.totalorder %v1345, 0
      %v1362 = vsub.s32 0, %v1345
      %v1363 = vsel %vm1361, %v1362, %v1345
      %v1364 = vshrl.u32 %v1363, 4
      %v1365 = vand.u32 %v1363, 15
      %v1366 = vsub.s32 0, %v1365
      %v1367 = vsel %vm1361, %v1366, %v1365
      %vm1368 = vcmp.lt.s32.totalorder %v1346, 0
      %v1369 = vsub.s32 0, %v1346
      %v1370 = vsel %vm1368, %v1369, %v1346
      %v1371 = vshrl.u32 %v1370, 4
      %v1372 = vand.u32 %v1370, 15
      %v1373 = vsub.s32 0, %v1372
      %v1374 = vsel %vm1368, %v1373, %v1372
      %vm1375 = vcmp.lt.s32.totalorder %v1347, 0
      %v1376 = vsub.s32 0, %v1347
      %v1377 = vsel %vm1375, %v1376, %v1347
      %v1378 = vshrl.u32 %v1377, 4
      %v1379 = vand.u32 %v1377, 15
      %v1380 = vsub.s32 0, %v1379
      %v1381 = vsel %vm1375, %v1380, %v1379
      %vm1382 = vcmp.lt.s32.totalorder %v1348, 0
      %v1383 = vsub.s32 0, %v1348
      %v1384 = vsel %vm1382, %v1383, %v1348
      %v1385 = vshrl.u32 %v1384, 4
      %v1386 = vand.u32 %v1384, 15
      %v1387 = vsub.s32 0, %v1386
      %v1388 = vsel %vm1382, %v1387, %v1386
      %vm1389 = vcmp.lt.s32.totalorder %v1349, 0
      %v1390 = vsub.s32 0, %v1349
      %v1391 = vsel %vm1389, %v1390, %v1349
      %v1392 = vshrl.u32 %v1391, 4
      %v1393 = vand.u32 %v1391, 15
      %v1394 = vsub.s32 0, %v1393
      %v1395 = vsel %vm1389, %v1394, %v1393
      %vm1396 = vcmp.lt.s32.totalorder %v1350, 0
      %v1397 = vsub.s32 0, %v1350
      %v1398 = vsel %vm1396, %v1397, %v1350
      %v1399 = vshrl.u32 %v1398, 4
      %v1400 = vand.u32 %v1398, 15
      %v1401 = vsub.s32 0, %v1400
      %v1402 = vsel %vm1396, %v1401, %v1400
      %vm1403 = vcmp.lt.s32.totalorder %v1351, 0
      %v1404 = vsub.s32 0, %v1351
      %v1405 = vsel %vm1403, %v1404, %v1351
      %v1406 = vshrl.u32 %v1405, 4
      %v1407 = vand.u32 %v1405, 15
      %v1408 = vsub.s32 0, %v1407
      %v1409 = vsel %vm1403, %v1408, %v1407
      %vm1410 = vcmp.lt.s32.totalorder %v1352, 0
      %v1411 = vsub.s32 0, %v1352
      %v1412 = vsel %vm1410, %v1411, %v1352
      %v1413 = vshrl.u32 %v1412, 4
      %v1414 = vand.u32 %v1412, 15
      %v1415 = vsub.s32 0, %v1414
      %v1416 = vsel %vm1410, %v1415, %v1414
      %vm1417 = vcmp.lt.s32.totalorder %v1353, 0
      %v1418 = vsub.s32 0, %v1353
      %v1419 = vsel %vm1417, %v1418, %v1353
      %v1420 = vshrl.u32 %v1419, 4
      %v1421 = vand.u32 %v1419, 15
      %v1422 = vsub.s32 0, %v1421
      %v1423 = vsel %vm1417, %v1422, %v1421
      %vm1424 = vcmp.lt.s32.totalorder %v1354, 0
      %v1425 = vsub.s32 0, %v1354
      %v1426 = vsel %vm1424, %v1425, %v1354
      %v1427 = vshrl.u32 %v1426, 4
      %v1428 = vand.u32 %v1426, 15
      %v1429 = vsub.s32 0, %v1428
      %v1430 = vsel %vm1424, %v1429, %v1428
      %vm1431 = vcmp.lt.s32.totalorder %v1355, 0
      %v1432 = vsub.s32 0, %v1355
      %v1433 = vsel %vm1431, %v1432, %v1355
      %v1434 = vshrl.u32 %v1433, 4
      %v1435 = vand.u32 %v1433, 15
      %v1436 = vsub.s32 0, %v1435
      %v1437 = vsel %vm1431, %v1436, %v1435
      %vm1438 = vcmp.lt.s32.totalorder %v1356, 0
      %v1439 = vsub.s32 0, %v1356
      %v1440 = vsel %vm1438, %v1439, %v1356
      %v1441 = vshrl.u32 %v1440, 4
      %v1442 = vand.u32 %v1440, 15
      %v1443 = vsub.s32 0, %v1442
      %v1444 = vsel %vm1438, %v1443, %v1442
      %vm1445 = vcmp.lt.s32.totalorder %v1357, 0
      %v1446 = vsub.s32 0, %v1357
      %v1447 = vsel %vm1445, %v1446, %v1357
      %v1448 = vshrl.u32 %v1447, 4
      %v1449 = vand.u32 %v1447, 15
      %v1450 = vsub.s32 0, %v1449
      %v1451 = vsel %vm1445, %v1450, %v1449
      %vm1452 = vcmp.lt.s32.totalorder %v1358, 0
      %v1453 = vsub.s32 0, %v1358
      %v1454 = vsel %vm1452, %v1453, %v1358
      %v1455 = vshrl.u32 %v1454, 4
      %v1456 = vand.u32 %v1454, 15
      %v1457 = vsub.s32 0, %v1456
      %v1458 = vsel %vm1452, %v1457, %v1456
      %vm1459 = vcmp.lt.s32.totalorder %v1359, 0
      %v1460 = vsub.s32 0, %v1359
      %v1461 = vsel %vm1459, %v1460, %v1359
      %v1462 = vshrl.u32 %v1461, 4
      %v1463 = vand.u32 %v1461, 15
      %v1464 = vsub.s32 0, %v1463
      %v1465 = vsel %vm1459, %v1464, %v1463
      %vm1466 = vcmp.lt.s32.totalorder %v1360, 0
      %v1467 = vsub.s32 0, %v1360
      %v1468 = vsel %vm1466, %v1467, %v1360
      %v1469 = vshrl.u32 %v1468, 4
      %v1470 = vand.u32 %v1468, 15
      %v1471 = vsub.s32 0, %v1470
      %v1472 = vsel %vm1466, %v1471, %v1470
      %vm1473 = vcmp.ne.s32.totalorder %v1367, 0
      %vm1474 = vcmp.ne.s32.totalorder %v1374, 0
      %vm1475 = vcmp.ne.s32.totalorder %v1381, 0
      %vm1476 = vcmp.ne.s32.totalorder %v1388, 0
      %vm1477 = vcmp.ne.s32.totalorder %v1395, 0
      %vm1478 = vcmp.ne.s32.totalorder %v1402, 0
      %vm1479 = vcmp.ne.s32.totalorder %v1409, 0
      %vm1480 = vcmp.ne.s32.totalorder %v1416, 0
      %vm1481 = vcmp.ne.s32.totalorder %v1423, 0
      %vm1482 = vcmp.ne.s32.totalorder %v1430, 0
      %vm1483 = vcmp.ne.s32.totalorder %v1437, 0
      %vm1484 = vcmp.ne.s32.totalorder %v1444, 0
      %vm1485 = vcmp.ne.s32.totalorder %v1451, 0
      %vm1486 = vcmp.ne.s32.totalorder %v1458, 0
      %vm1487 = vcmp.ne.s32.totalorder %v1465, 0
      %vm1488 = vcmp.ne.s32.totalorder %v1472, 0
      %vm1489 = vcmp.lt.s32.totalorder %v1367, 0
      %vm1490 = vcmp.lt.s32.totalorder %v1374, 0
      %vm1491 = vcmp.lt.s32.totalorder %v1381, 0
      %vm1492 = vcmp.lt.s32.totalorder %v1388, 0
      %vm1493 = vcmp.lt.s32.totalorder %v1395, 0
      %vm1494 = vcmp.lt.s32.totalorder %v1402, 0
      %vm1495 = vcmp.lt.s32.totalorder %v1409, 0
      %vm1496 = vcmp.lt.s32.totalorder %v1416, 0
      %vm1497 = vcmp.lt.s32.totalorder %v1423, 0
      %vm1498 = vcmp.lt.s32.totalorder %v1430, 0
      %vm1499 = vcmp.lt.s32.totalorder %v1437, 0
      %vm1500 = vcmp.lt.s32.totalorder %v1444, 0
      %vm1501 = vcmp.lt.s32.totalorder %v1451, 0
      %vm1502 = vcmp.lt.s32.totalorder %v1458, 0
      %vm1503 = vcmp.lt.s32.totalorder %v1465, 0
      %vm1504 = vcmp.lt.s32.totalorder %v1472, 0
      %vm1505 = vmand %vm1489, %vm1473
      %vm1506 = vmand %vm1490, %vm1474
      %vm1507 = vmand %vm1491, %vm1475
      %vm1508 = vmand %vm1492, %vm1476
      %vm1509 = vmand %vm1493, %vm1477
      %vm1510 = vmand %vm1494, %vm1478
      %vm1511 = vmand %vm1495, %vm1479
      %vm1512 = vmand %vm1496, %vm1480
      %vm1513 = vmand %vm1497, %vm1481
      %vm1514 = vmand %vm1498, %vm1482
      %vm1515 = vmand %vm1499, %vm1483
      %vm1516 = vmand %vm1500, %vm1484
      %vm1517 = vmand %vm1501, %vm1485
      %vm1518 = vmand %vm1502, %vm1486
      %vm1519 = vmand %vm1503, %vm1487
      %vm1520 = vmand %vm1504, %vm1488
      %v1521 = vadd.s32 %v1367, 16
      %v1522 = vadd.s32 %v1374, 16
      %v1523 = vadd.s32 %v1381, 16
      %v1524 = vadd.s32 %v1388, 16
      %v1525 = vadd.s32 %v1395, 16
      %v1526 = vadd.s32 %v1402, 16
      %v1527 = vadd.s32 %v1409, 16
      %v1528 = vadd.s32 %v1416, 16
      %v1529 = vadd.s32 %v1423, 16
      %v1530 = vadd.s32 %v1430, 16
      %v1531 = vadd.s32 %v1437, 16
      %v1532 = vadd.s32 %v1444, 16
      %v1533 = vadd.s32 %v1451, 16
      %v1534 = vadd.s32 %v1458, 16
      %v1535 = vadd.s32 %v1465, 16
      %v1536 = vadd.s32 %v1472, 16
      %v1537 = vsel %vm1505, %v1521, %v1367
      %v1538 = vsel %vm1506, %v1522, %v1374
      %v1539 = vsel %vm1507, %v1523, %v1381
      %v1540 = vsel %vm1508, %v1524, %v1388
      %v1541 = vsel %vm1509, %v1525, %v1395
      %v1542 = vsel %vm1510, %v1526, %v1402
      %v1543 = vsel %vm1511, %v1527, %v1409
      %v1544 = vsel %vm1512, %v1528, %v1416
      %v1545 = vsel %vm1513, %v1529, %v1423
      %v1546 = vsel %vm1514, %v1530, %v1430
      %v1547 = vsel %vm1515, %v1531, %v1437
      %v1548 = vsel %vm1516, %v1532, %v1444
      %v1549 = vsel %vm1517, %v1533, %v1451
      %v1550 = vsel %vm1518, %v1534, %v1458
      %v1551 = vsel %vm1519, %v1535, %v1465
      %v1552 = vsel %vm1520, %v1536, %v1472
      %vm1553 = vcmp.ge.s32.totalorder %v1537, 1
      %vm1554 = vcmp.ge.s32.totalorder %v1538, 1
      %vm1555 = vcmp.ge.s32.totalorder %v1539, 1
      %vm1556 = vcmp.ge.s32.totalorder %v1540, 1
      %vm1557 = vcmp.ge.s32.totalorder %v1541, 1
      %vm1558 = vcmp.ge.s32.totalorder %v1542, 1
      %vm1559 = vcmp.ge.s32.totalorder %v1543, 1
      %vm1560 = vcmp.ge.s32.totalorder %v1544, 1
      %vm1561 = vcmp.ge.s32.totalorder %v1545, 1
      %vm1562 = vcmp.ge.s32.totalorder %v1546, 1
      %vm1563 = vcmp.ge.s32.totalorder %v1547, 1
      %vm1564 = vcmp.ge.s32.totalorder %v1548, 1
      %vm1565 = vcmp.ge.s32.totalorder %v1549, 1
      %vm1566 = vcmp.ge.s32.totalorder %v1550, 1
      %vm1567 = vcmp.ge.s32.totalorder %v1551, 1
      %vm1568 = vcmp.ge.s32.totalorder %v1552, 1
      %1601 = vrot.lane.b32.xlu0 %v1232, 32
      %v1602 = vpop.permute.xlu0 %1601
      %1603 = vrot.lane.b32.xlu0 %v1233, 32
      %v1604 = vpop.permute.xlu0 %1603
      %1605 = vrot.lane.b32.xlu0 %v1234, 32
      %v1606 = vpop.permute.xlu0 %1605
      %1607 = vrot.lane.b32.xlu0 %v1235, 32
      %v1608 = vpop.permute.xlu0 %1607
      %1609 = vrot.lane.b32.xlu0 %v1236, 32
      %v1610 = vpop.permute.xlu0 %1609
      %1611 = vrot.lane.b32.xlu0 %v1237, 32
      %v1612 = vpop.permute.xlu0 %1611
      %1613 = vrot.lane.b32.xlu0 %v1238, 32
      %v1614 = vpop.permute.xlu0 %1613
      %1615 = vrot.lane.b32.xlu0 %v1239, 32
      %v1616 = vpop.permute.xlu0 %1615
      %1617 = vrot.lane.b32.xlu0 %v1240, 32
      %v1618 = vpop.permute.xlu0 %1617
      %1619 = vrot.lane.b32.xlu0 %v1241, 32
      %v1620 = vpop.permute.xlu0 %1619
      %1621 = vrot.lane.b32.xlu0 %v1242, 32
      %v1622 = vpop.permute.xlu0 %1621
      %1623 = vrot.lane.b32.xlu0 %v1243, 32
      %v1624 = vpop.permute.xlu0 %1623
      %1625 = vrot.lane.b32.xlu0 %v1244, 32
      %v1626 = vpop.permute.xlu0 %1625
      %1627 = vrot.lane.b32.xlu0 %v1245, 32
      %v1628 = vpop.permute.xlu0 %1627
      %1629 = vrot.lane.b32.xlu0 %v1246, 32
      %v1630 = vpop.permute.xlu0 %1629
      %1631 = vrot.lane.b32.xlu0 %v1247, 32
      %v1632 = vpop.permute.xlu0 %1631
      %1633 = vrot.lane.b32.xlu0 %v1248, 32
      %v1634 = vpop.permute.xlu0 %1633
      %1635 = vrot.lane.b32.xlu0 %v1249, 32
      %v1636 = vpop.permute.xlu0 %1635
      %1637 = vrot.lane.b32.xlu0 %v1250, 32
      %v1638 = vpop.permute.xlu0 %1637
      %1639 = vrot.lane.b32.xlu0 %v1251, 32
      %v1640 = vpop.permute.xlu0 %1639
      %1641 = vrot.lane.b32.xlu0 %v1252, 32
      %v1642 = vpop.permute.xlu0 %1641
      %1643 = vrot.lane.b32.xlu0 %v1253, 32
      %v1644 = vpop.permute.xlu0 %1643
      %1645 = vrot.lane.b32.xlu0 %v1254, 32
      %v1646 = vpop.permute.xlu0 %1645
      %1647 = vrot.lane.b32.xlu0 %v1255, 32
      %v1648 = vpop.permute.xlu0 %1647
      %1649 = vrot.lane.b32.xlu0 %v1256, 32
      %v1650 = vpop.permute.xlu0 %1649
      %1651 = vrot.lane.b32.xlu0 %v1257, 32
      %v1652 = vpop.permute.xlu0 %1651
      %1653 = vrot.lane.b32.xlu0 %v1258, 32
      %v1654 = vpop.permute.xlu0 %1653
      %1655 = vrot.lane.b32.xlu0 %v1259, 32
      %v1656 = vpop.permute.xlu0 %1655
      %1657 = vrot.lane.b32.xlu0 %v1260, 32
      %v1658 = vpop.permute.xlu0 %1657
      %1659 = vrot.lane.b32.xlu0 %v1261, 32
      %v1660 = vpop.permute.xlu0 %1659
      %1661 = vrot.lane.b32.xlu0 %v1262, 32
      %v1662 = vpop.permute.xlu0 %1661
      %1663 = vrot.lane.b32.xlu0 %v1263, 32
      %v1664 = vpop.permute.xlu0 %1663
      %vm1665 = vcmask 261120
      %v1666 = vsel %vm1665, %v1602, %v1604
      %v1667 = vsel %vm1665, %v1606, %v1608
      %v1668 = vsel %vm1665, %v1610, %v1612
      %v1669 = vsel %vm1665, %v1614, %v1616
      %v1670 = vsel %vm1665, %v1618, %v1620
      %v1671 = vsel %vm1665, %v1622, %v1624
      %v1672 = vsel %vm1665, %v1626, %v1628
      %v1673 = vsel %vm1665, %v1630, %v1632
      %v1674 = vsel %vm1665, %v1634, %v1636
      %v1675 = vsel %vm1665, %v1638, %v1640
      %v1676 = vsel %vm1665, %v1642, %v1644
      %v1677 = vsel %vm1665, %v1646, %v1648
      %v1678 = vsel %vm1665, %v1650, %v1652
      %v1679 = vsel %vm1665, %v1654, %v1656
      %v1680 = vsel %vm1665, %v1658, %v1660
      %v1681 = vsel %vm1665, %v1662, %v1664
      %v1698 = vrot.slane %v1666, 7
      %v1699 = vrot.slane %v1667, 7
      %v1700 = vrot.slane %v1668, 7
      %v1701 = vrot.slane %v1669, 7
      %v1702 = vrot.slane %v1670, 7
      %v1703 = vrot.slane %v1671, 7
      %v1704 = vrot.slane %v1672, 7
      %v1705 = vrot.slane %v1673, 7
      %v1706 = vrot.slane %v1674, 7
      %v1707 = vrot.slane %v1675, 7
      %v1708 = vrot.slane %v1676, 7
      %v1709 = vrot.slane %v1677, 7
      %v1710 = vrot.slane %v1678, 7
      %v1711 = vrot.slane %v1679, 7
      %v1712 = vrot.slane %v1680, 7
      %v1713 = vrot.slane %v1681, 7
      %vm1714 = vcmp.lt.s32.totalorder %v1345, 1
      %v1715 = vsel %vm1714, %v1712, %v1713
      %v1716 = vsel %vm1714, %v1711, %v1712
      %v1717 = vsel %vm1714, %v1710, %v1711
      %v1718 = vsel %vm1714, %v1709, %v1710
      %v1719 = vsel %vm1714, %v1708, %v1709
      %v1720 = vsel %vm1714, %v1707, %v1708
      %v1721 = vsel %vm1714, %v1706, %v1707
      %v1722 = vsel %vm1714, %v1705, %v1706
      %v1723 = vsel %vm1714, %v1704, %v1705
      %v1724 = vsel %vm1714, %v1703, %v1704
      %v1725 = vsel %vm1714, %v1702, %v1703
      %v1726 = vsel %vm1714, %v1701, %v1702
      %v1727 = vsel %vm1714, %v1700, %v1701
      %v1728 = vsel %vm1714, %v1699, %v1700
      %v1729 = vsel %vm1714, %v1698, %v1699
      %v1730 = vsel %vm1714, %v1713, %v1698
      %v1731 = vsel %vm1553, 1, 0
      %v1732 = vsel %vm1554, 1, 0
      %v1733 = vsel %vm1555, 1, 0
      %v1734 = vsel %vm1556, 1, 0
      %v1735 = vsel %vm1557, 1, 0
      %v1736 = vsel %vm1558, 1, 0
      %v1737 = vsel %vm1559, 1, 0
      %v1738 = vsel %vm1560, 1, 0
      %v1739 = vsel %vm1561, 1, 0
      %v1740 = vsel %vm1562, 1, 0
      %v1741 = vsel %vm1563, 1, 0
      %v1742 = vsel %vm1564, 1, 0
      %v1743 = vsel %vm1565, 1, 0
      %v1744 = vsel %vm1566, 1, 0
      %v1745 = vsel %vm1567, 1, 0
      %v1746 = vsel %vm1568, 1, 0
      %vm1747 = vcmp.eq.s32.totalorder %v1731, 1
      %vm1748 = vcmp.eq.s32.totalorder %v1732, 1
      %vm1749 = vcmp.eq.s32.totalorder %v1733, 1
      %vm1750 = vcmp.eq.s32.totalorder %v1734, 1
      %vm1751 = vcmp.eq.s32.totalorder %v1735, 1
      %vm1752 = vcmp.eq.s32.totalorder %v1736, 1
      %vm1753 = vcmp.eq.s32.totalorder %v1737, 1
      %vm1754 = vcmp.eq.s32.totalorder %v1738, 1
      %vm1755 = vcmp.eq.s32.totalorder %v1739, 1
      %vm1756 = vcmp.eq.s32.totalorder %v1740, 1
      %vm1757 = vcmp.eq.s32.totalorder %v1741, 1
      %vm1758 = vcmp.eq.s32.totalorder %v1742, 1
      %vm1759 = vcmp.eq.s32.totalorder %v1743, 1
      %vm1760 = vcmp.eq.s32.totalorder %v1744, 1
      %vm1761 = vcmp.eq.s32.totalorder %v1745, 1
      %vm1762 = vcmp.eq.s32.totalorder %v1746, 1
      %v1763 = vsel %vm1747, %v1730, 0.0
      %v1764 = vsel %vm1748, %v1729, 0.0
      %v1765 = vsel %vm1749, %v1728, 0.0
      %v1766 = vsel %vm1750, %v1727, 0.0
      %v1767 = vsel %vm1751, %v1726, 0.0
      %v1768 = vsel %vm1752, %v1725, 0.0
      %v1769 = vsel %vm1753, %v1724, 0.0
      %v1770 = vsel %vm1754, %v1723, 0.0
      %v1771 = vsel %vm1755, %v1722, 0.0
      %v1772 = vsel %vm1756, %v1721, 0.0
      %v1773 = vsel %vm1757, %v1720, 0.0
      %v1774 = vsel %vm1758, %v1719, 0.0
      %v1775 = vsel %vm1759, %v1718, 0.0
      %v1776 = vsel %vm1760, %v1717, 0.0
      %v1777 = vsel %vm1761, %v1716, 0.0
      %v1778 = vsel %vm1762, %v1715, 0.0
      %vm1779 = vcmp.le.s32.totalorder %v1537, 14
      %vm1780 = vcmp.le.s32.totalorder %v1538, 14
      %vm1781 = vcmp.le.s32.totalorder %v1539, 14
      %vm1782 = vcmp.le.s32.totalorder %v1540, 14
      %vm1783 = vcmp.le.s32.totalorder %v1541, 14
      %vm1784 = vcmp.le.s32.totalorder %v1542, 14
      %vm1785 = vcmp.le.s32.totalorder %v1543, 14
      %vm1786 = vcmp.le.s32.totalorder %v1544, 14
      %vm1787 = vcmp.le.s32.totalorder %v1545, 14
      %vm1788 = vcmp.le.s32.totalorder %v1546, 14
      %vm1789 = vcmp.le.s32.totalorder %v1547, 14
      %vm1790 = vcmp.le.s32.totalorder %v1548, 14
      %vm1791 = vcmp.le.s32.totalorder %v1549, 14
      %vm1792 = vcmp.le.s32.totalorder %v1550, 14
      %vm1793 = vcmp.le.s32.totalorder %v1551, 14
      %vm1794 = vcmp.le.s32.totalorder %v1552, 14
      %v1795 = vrot.slane %v1666, 1
      %v1796 = vrot.slane %v1667, 1
      %v1797 = vrot.slane %v1668, 1
      %v1798 = vrot.slane %v1669, 1
      %v1799 = vrot.slane %v1670, 1
      %v1800 = vrot.slane %v1671, 1
      %v1801 = vrot.slane %v1672, 1
      %v1802 = vrot.slane %v1673, 1
      %v1803 = vrot.slane %v1674, 1
      %v1804 = vrot.slane %v1675, 1
      %v1805 = vrot.slane %v1676, 1
      %v1806 = vrot.slane %v1677, 1
      %v1807 = vrot.slane %v1678, 1
      %v1808 = vrot.slane %v1679, 1
      %v1809 = vrot.slane %v1680, 1
      %v1810 = vrot.slane %v1681, 1
      %vm1811 = vcmp.lt.s32.totalorder %v1345, 7
      %v1812 = vsel %vm1811, %v1809, %v1810
      %v1813 = vsel %vm1811, %v1808, %v1809
      %v1814 = vsel %vm1811, %v1807, %v1808
      %v1815 = vsel %vm1811, %v1806, %v1807
      %v1816 = vsel %vm1811, %v1805, %v1806
      %v1817 = vsel %vm1811, %v1804, %v1805
      %v1818 = vsel %vm1811, %v1803, %v1804
      %v1819 = vsel %vm1811, %v1802, %v1803
      %v1820 = vsel %vm1811, %v1801, %v1802
      %v1821 = vsel %vm1811, %v1800, %v1801
      %v1822 = vsel %vm1811, %v1799, %v1800
      %v1823 = vsel %vm1811, %v1798, %v1799
      %v1824 = vsel %vm1811, %v1797, %v1798
      %v1825 = vsel %vm1811, %v1796, %v1797
      %v1826 = vsel %vm1811, %v1795, %v1796
      %v1827 = vsel %vm1811, %v1810, %v1795
      %v1828 = vsel %vm1779, 1, 0
      %v1829 = vsel %vm1780, 1, 0
      %v1830 = vsel %vm1781, 1, 0
      %v1831 = vsel %vm1782, 1, 0
      %v1832 = vsel %vm1783, 1, 0
      %v1833 = vsel %vm1784, 1, 0
      %v1834 = vsel %vm1785, 1, 0
      %v1835 = vsel %vm1786, 1, 0
      %v1836 = vsel %vm1787, 1, 0
      %v1837 = vsel %vm1788, 1, 0
      %v1838 = vsel %vm1789, 1, 0
      %v1839 = vsel %vm1790, 1, 0
      %v1840 = vsel %vm1791, 1, 0
      %v1841 = vsel %vm1792, 1, 0
      %v1842 = vsel %vm1793, 1, 0
      %v1843 = vsel %vm1794, 1, 0
      %vm1844 = vcmp.eq.s32.totalorder %v1828, 1
      %vm1845 = vcmp.eq.s32.totalorder %v1829, 1
      %vm1846 = vcmp.eq.s32.totalorder %v1830, 1
      %vm1847 = vcmp.eq.s32.totalorder %v1831, 1
      %vm1848 = vcmp.eq.s32.totalorder %v1832, 1
      %vm1849 = vcmp.eq.s32.totalorder %v1833, 1
      %vm1850 = vcmp.eq.s32.totalorder %v1834, 1
      %vm1851 = vcmp.eq.s32.totalorder %v1835, 1
      %vm1852 = vcmp.eq.s32.totalorder %v1836, 1
      %vm1853 = vcmp.eq.s32.totalorder %v1837, 1
      %vm1854 = vcmp.eq.s32.totalorder %v1838, 1
      %vm1855 = vcmp.eq.s32.totalorder %v1839, 1
      %vm1856 = vcmp.eq.s32.totalorder %v1840, 1
      %vm1857 = vcmp.eq.s32.totalorder %v1841, 1
      %vm1858 = vcmp.eq.s32.totalorder %v1842, 1
      %vm1859 = vcmp.eq.s32.totalorder %v1843, 1
      %v1860 = vsel %vm1844, %v1826, 0.0
      %v1861 = vsel %vm1845, %v1825, 0.0
      %v1862 = vsel %vm1846, %v1824, 0.0
      %v1863 = vsel %vm1847, %v1823, 0.0
      %v1864 = vsel %vm1848, %v1822, 0.0
      %v1865 = vsel %vm1849, %v1821, 0.0
      %v1866 = vsel %vm1850, %v1820, 0.0
      %v1867 = vsel %vm1851, %v1819, 0.0
      %v1868 = vsel %vm1852, %v1818, 0.0
      %v1869 = vsel %vm1853, %v1817, 0.0
      %v1870 = vsel %vm1854, %v1816, 0.0
      %v1871 = vsel %vm1855, %v1815, 0.0
      %v1872 = vsel %vm1856, %v1814, 0.0
      %v1873 = vsel %vm1857, %v1813, 0.0
      %v1874 = vsel %vm1858, %v1812, 0.0
      %v1875 = vsel %vm1859, %v1827, 0.0
      %v1876 = vpack.c.bf16 %v1764, %v1763
      %v1877 = vpack.c.bf16 %v1766, %v1765
      %v1878 = vpack.c.bf16 %v1768, %v1767
      %v1879 = vpack.c.bf16 %v1770, %v1769
      %v1880 = vpack.c.bf16 %v1772, %v1771
      %v1881 = vpack.c.bf16 %v1774, %v1773
      %v1882 = vpack.c.bf16 %v1776, %v1775
      %v1883 = vpack.c.bf16 %v1778, %v1777
      %v1884 = vld [vmem:[%s4] sm:$0xf]
      %v1885 = vld [vmem:[%s4 + $0x4] sm:$0xf]
      %v1886 = vld [vmem:[%s4 + $0x8] sm:$0xf]
      %v1887 = vld [vmem:[%s4 + $0xc] sm:$0xf]
      %v1888 = vld [vmem:[%s4 + $0x10] sm:$0xf]
      %v1889 = vld [vmem:[%s4 + $0x14] sm:$0xf]
      %v1890 = vpack.c.bf16 %v1234, %v1232
      %v1891 = vpack.c.bf16 %v1235, %v1233
      %v1892 = vpack.c.bf16 %v1238, %v1236
      %v1893 = vpack.c.bf16 %v1239, %v1237
      %v1894 = vpack.c.bf16 %v1242, %v1240
      %v1895 = vpack.c.bf16 %v1243, %v1241
      %v1896 = vpack.c.bf16 %v1246, %v1244
      %v1897 = vpack.c.bf16 %v1247, %v1245
      %v1898 = vpack.c.bf16 %v1250, %v1248
      %v1899 = vpack.c.bf16 %v1251, %v1249
      %v1900 = vpack.c.bf16 %v1254, %v1252
      %v1901 = vpack.c.bf16 %v1255, %v1253
      %v1902 = vpack.c.bf16 %v1258, %v1256
      %v1903 = vpack.c.bf16 %v1259, %v1257
      %v1904 = vpack.c.bf16 %v1262, %v1260
      %v1905 = vpack.c.bf16 %v1263, %v1261
      %v1906 = vld [vmem:[%s4 + $0x18] sm:$0xf]
      %v1907 = vld [vmem:[%s4 + $0x1c] sm:$0xf]
      %v1908 = vld [vmem:[%s4 + $0x20] sm:$0xf]
      %v1909 = vld [vmem:[%s4 + $0x24] sm:$0xf]
      %v1910 = vld [vmem:[%s4 + $0x28] sm:$0xf]
      %v1911 = vld [vmem:[%s4 + $0x2c] sm:$0xf]
      %1928 = vrot.lane.b32.xlu0 %v1890, 32
      %v1929 = vpop.permute.xlu0 %1928
      %1930 = vrot.lane.b32.xlu0 %v1891, 32
      %v1931 = vpop.permute.xlu0 %1930
      %1932 = vrot.lane.b32.xlu0 %v1892, 32
      %v1933 = vpop.permute.xlu0 %1932
      %1934 = vrot.lane.b32.xlu0 %v1893, 32
      %v1935 = vpop.permute.xlu0 %1934
      %1936 = vrot.lane.b32.xlu0 %v1894, 32
      %v1937 = vpop.permute.xlu0 %1936
      %1938 = vrot.lane.b32.xlu0 %v1895, 32
      %v1939 = vpop.permute.xlu0 %1938
      %1940 = vrot.lane.b32.xlu0 %v1896, 32
      %v1941 = vpop.permute.xlu0 %1940
      %1942 = vrot.lane.b32.xlu0 %v1897, 32
      %v1943 = vpop.permute.xlu0 %1942
      %1944 = vrot.lane.b32.xlu0 %v1898, 32
      %v1945 = vpop.permute.xlu0 %1944
      %1946 = vrot.lane.b32.xlu0 %v1899, 32
      %v1947 = vpop.permute.xlu0 %1946
      %1948 = vrot.lane.b32.xlu0 %v1900, 32
      %v1949 = vpop.permute.xlu0 %1948
      %1950 = vrot.lane.b32.xlu0 %v1901, 32
      %v1951 = vpop.permute.xlu0 %1950
      %1952 = vrot.lane.b32.xlu0 %v1902, 32
      %v1953 = vpop.permute.xlu0 %1952
      %1954 = vrot.lane.b32.xlu0 %v1903, 32
      %v1955 = vpop.permute.xlu0 %1954
      %1956 = vrot.lane.b32.xlu0 %v1904, 32
      %v1957 = vpop.permute.xlu0 %1956
      %1958 = vrot.lane.b32.xlu0 %v1905, 32
      %v1959 = vpop.permute.xlu0 %1958
      %vm1960 = vcmask 261120
      %v1961 = vsel %vm1960, %v1929, %v1931
      %v1962 = vsel %vm1960, %v1933, %v1935
      %v1963 = vsel %vm1960, %v1937, %v1939
      %v1964 = vsel %vm1960, %v1941, %v1943
      %v1965 = vsel %vm1960, %v1945, %v1947
      %v1966 = vsel %vm1960, %v1949, %v1951
      %v1967 = vsel %vm1960, %v1953, %v1955
      %v1968 = vsel %vm1960, %v1957, %v1959
      %v1975 = vunpack.c.l.b16 %v1906
      %v1976 = vunpack.c.l.b16 %v1907
      %v1977 = vunpack.c.l.b16 %v1908
      %v1978 = vunpack.c.l.b16 %v1909
      %v1979 = vunpack.c.l.b16 %v1910
      %v1980 = vunpack.c.l.b16 %v1911
      %v1981 = vpack.c.b16 %v1976, %v1975
      %v1982 = vpack.c.b16 %v1978, %v1977
      %v1983 = vpack.c.b16 %v1980, %v1979
      %vm1987 = vcmask 392192
      %v1989 = vsel %vm1987, %v1961, 0
      %v1992 = vsel %vm1987, %v1962, 0
      %v1995 = vsel %vm1987, %v1963, 0
      %v1998 = vsel %vm1987, %v1964, 0
      %v2001 = vsel %vm1987, %v1965, 0
      %v2004 = vsel %vm1987, %v1966, 0
      %v2007 = vsel %vm1987, %v1967, 0
      %v2010 = vsel %vm1987, %v1968, 0
      %2012 = vmatprep.subr.bf16.mxu0 0
      %2013 = vmatpush1.bf16.msra.mxu0 %v1981
      %2014 = vmatprep.subr.bf16.mxu0 0
      %2015 = vmatpush1.bf16.msra.mxu0 %v1982
      %2016 = vmatprep.subr.bf16.mxu0 0
      %2017 = vmatpush1.bf16.msra.mxu0 %v1983
      %2018 = vmatprep.subr.bf16.mxu0 0
      %2019 = vmatpush1.bf16.msra.mxu0 0
      %2020 = vmatprep.subr.bf16.mxu0 0
      %2021 = vmatpush1.bf16.msra.mxu0 0
      %2022 = vmatprep.subr.bf16.mxu0 0
      %2023 = vmatpush1.bf16.msra.mxu0 0
      %2024 = vmatprep.subr.bf16.mxu0 0
      %2025 = vmatpush1.bf16.msra.mxu0 0
      %2026 = vmatprep.subr.bf16.mxu0 0
      %2027 = vmatpush1.bf16.msra.mxu0 0
      %2028 = vmatprep.subr.bf16.mxu0 0
      %2029 = vmatpush1.bf16.msra.mxu0 0
      %2030 = vmatprep.subr.bf16.mxu0 0
      %2031 = vmatpush1.bf16.msra.mxu0 0
      %2032 = vmatprep.subr.bf16.mxu0 0
      %2033 = vmatpush1.bf16.msra.mxu0 0
      %2034 = vmatprep.subr.bf16.mxu0 0
      %2035 = vmatpush1.bf16.msra.mxu0 0
      %2036 = vmatprep.subr.bf16.mxu0 0
      %2037 = vmatpush1.bf16.msra.mxu0 0
      %2038 = vmatprep.subr.bf16.mxu0 0
      %2039 = vmatpush1.bf16.msra.mxu0 0
      %2040 = vmatprep.subr.bf16.mxu0 0
      %2041 = vmatpush1.bf16.msra.mxu0 0
      %2042 = vmatprep.subr.bf16.mxu0 0
      %2043 = vmatpush1.bf16.msra.mxu0 0
      %2044 = vmatprep.mubr.bf16.mxu0 0
      %2045 = vmatmul.mubr.bf16.gmra.mrb[0].mxu0 %v1989
      %v2046 = vpop.f32.mrb[0].mxu0
      %v2047 = vadd.f32 0.0, %v2046
      %v2048 = vpop.f32.mrb[0].mxu0
      %v2049 = vpop.f32.mrb[0].mxu0
      %v2050 = vadd.f32 0.0, %v2049
      %v2051 = vpop.f32.mrb[0].mxu0
      %2052 = vmatprep.mubr.bf16.mxu0 0
      %2053 = vmatmul.mubr.bf16.gmra.mrb[0].mxu0 %v1992
      %v2054 = vpop.f32.mrb[0].mxu0
      %v2055 = vadd.f32 0.0, %v2054
      %v2056 = vpop.f32.mrb[0].mxu0
      %v2057 = vpop.f32.mrb[0].mxu0
      %v2058 = vadd.f32 0.0, %v2057
      %v2059 = vpop.f32.mrb[0].mxu0
      %2060 = vmatprep.mubr.bf16.mxu0 0
      %2061 = vmatmul.mubr.bf16.gmra.mrb[0].mxu0 %v1995
      %v2062 = vpop.f32.mrb[0].mxu0
      %v2063 = vadd.f32 0.0, %v2062
      %v2064 = vpop.f32.mrb[0].mxu0
      %v2065 = vpop.f32.mrb[0].mxu0
      %v2066 = vadd.f32 0.0, %v2065
      %v2067 = vpop.f32.mrb[0].mxu0
      %2068 = vmatprep.mubr.bf16.mxu0 0
      %2069 = vmatmul.mubr.bf16.gmra.mrb[0].mxu0 %v1998
      %v2070 = vpop.f32.mrb[0].mxu0
      %v2071 = vadd.f32 0.0, %v2070
      %v2072 = vpop.f32.mrb[0].mxu0
      %v2073 = vpop.f32.mrb[0].mxu0
      %v2074 = vadd.f32 0.0, %v2073
      %v2075 = vpop.f32.mrb[0].mxu0
      %2076 = vmatprep.mubr.bf16.mxu0 0
      %2077 = vmatmul.mubr.bf16.gmra.mrb[0].mxu0 %v2001
      %v2078 = vpop.f32.mrb[0].mxu0
      %v2079 = vadd.f32 0.0, %v2078
      %v2080 = vpop.f32.mrb[0].mxu0
      %v2081 = vpop.f32.mrb[0].mxu0
      %v2082 = vadd.f32 0.0, %v2081
      %v2083 = vpop.f32.mrb[0].mxu0
      %2084 = vmatprep.mubr.bf16.mxu0 0
      %2085 = vmatmul.mubr.bf16.gmra.mrb[0].mxu0 %v2004
      %v2086 = vpop.f32.mrb[0].mxu0
      %v2087 = vadd.f32 0.0, %v2086
      %v2088 = vpop.f32.mrb[0].mxu0
      %v2089 = vpop.f32.mrb[0].mxu0
      %v2090 = vadd.f32 0.0, %v2089
      %v2091 = vpop.f32.mrb[0].mxu0
      %2092 = vmatprep.mubr.bf16.mxu0 0
      %2093 = vmatmul.mubr.bf16.gmra.mrb[0].mxu0 %v2007
      %v2094 = vpop.f32.mrb[0].mxu0
      %v2095 = vadd.f32 0.0, %v2094
      %v2096 = vpop.f32.mrb[0].mxu0
      %v2097 = vpop.f32.mrb[0].mxu0
      %v2098 = vadd.f32 0.0, %v2097
      %v2099 = vpop.f32.mrb[0].mxu0
      %2100 = vmatprep.mubr.bf16.mxu0 0
      %2101 = vmatmul.mubr.bf16.gmra.mrb[0].mxu0 %v2010
      %v2102 = vpop.f32.mrb[0].mxu0
      %v2103 = vadd.f32 0.0, %v2102
      %v2104 = vpop.f32.mrb[0].mxu0
      %v2105 = vpop.f32.mrb[0].mxu0
      %v2106 = vadd.f32 0.0, %v2105
      %v2107 = vpop.f32.mrb[0].mxu0
      %2108 = vdwg.mxu0
      %v2115 = vunpack.c.l.b16 %v1884
      %v2116 = vunpack.c.l.b16 %v1885
      %v2117 = vunpack.c.l.b16 %v1886
      %v2118 = vunpack.c.l.b16 %v1887
      %v2119 = vunpack.c.l.b16 %v1888
      %v2120 = vunpack.c.l.b16 %v1889
      %v2121 = vpack.c.b16 %v2116, %v2115
      %v2122 = vpack.c.b16 %v2118, %v2117
      %v2123 = vpack.c.b16 %v2120, %v2119
      %v2128 = vsel %vm1987, %v1876, 0
      %v2131 = vsel %vm1987, %v1877, 0
      %v2134 = vsel %vm1987, %v1878, 0
      %v2137 = vsel %vm1987, %v1879, 0
      %v2140 = vsel %vm1987, %v1880, 0
      %v2143 = vsel %vm1987, %v1881, 0
      %v2146 = vsel %vm1987, %v1882, 0
      %v2149 = vsel %vm1987, %v1883, 0
      %2151 = vmatprep.subr.bf16.mxu0 0
      %2152 = vmatpush1.bf16.msra.mxu0 %v2121
      %2153 = vmatprep.subr.bf16.mxu0 0
      %2154 = vmatpush1.bf16.msra.mxu0 %v2122
      %2155 = vmatprep.subr.bf16.mxu0 0
      %2156 = vmatpush1.bf16.msra.mxu0 %v2123
      %2157 = vmatprep.subr.bf16.mxu0 0
      %2158 = vmatpush1.bf16.msra.mxu0 0
      %2159 = vmatprep.subr.bf16.mxu0 0
      %2160 = vmatpush1.bf16.msra.mxu0 0
      %2161 = vmatprep.subr.bf16.mxu0 0
      %2162 = vmatpush1.bf16.msra.mxu0 0
      %2163 = vmatprep.subr.bf16.mxu0 0
      %2164 = vmatpush1.bf16.msra.mxu0 0
      %2165 = vmatprep.subr.bf16.mxu0 0
      %2166 = vmatpush1.bf16.msra.mxu0 0
      %2167 = vmatprep.subr.bf16.mxu0 0
      %2168 = vmatpush1.bf16.msra.mxu0 0
      %2169 = vmatprep.subr.bf16.mxu0 0
      %2170 = vmatpush1.bf16.msra.mxu0 0
      %2171 = vmatprep.subr.bf16.mxu0 0
      %2172 = vmatpush1.bf16.msra.mxu0 0
      %2173 = vmatprep.subr.bf16.mxu0 0
      %2174 = vmatpush1.bf16.msra.mxu0 0
      %2175 = vmatprep.subr.bf16.mxu0 0
      %2176 = vmatpush1.bf16.msra.mxu0 0
      %2177 = vmatprep.subr.bf16.mxu0 0
      %2178 = vmatpush1.bf16.msra.mxu0 0
      %2179 = vmatprep.subr.bf16.mxu0 0
      %2180 = vmatpush1.bf16.msra.mxu0 0
      %2181 = vmatprep.subr.bf16.mxu0 0
      %2182 = vmatpush1.bf16.msra.mxu0 0
      %2183 = vmatprep.mubr.bf16.mxu0 0
      %2184 = vmatmul.mubr.bf16.gmra.mrb[0].mxu0 %v2128
      %v2185 = vpop.f32.mrb[0].mxu0
      %v2186 = vadd.f32 %v2047, %v2185
      %v2187 = vpop.f32.mrb[0].mxu0
      %v2188 = vpop.f32.mrb[0].mxu0
      %v2189 = vadd.f32 %v2050, %v2188
      %v2190 = vpop.f32.mrb[0].mxu0
      %2191 = vmatprep.mubr.bf16.mxu0 0
      %2192 = vmatmul.mubr.bf16.gmra.mrb[0].mxu0 %v2131
      %v2193 = vpop.f32.mrb[0].mxu0
      %v2194 = vadd.f32 %v2055, %v2193
      %v2195 = vpop.f32.mrb[0].mxu0
      %v2196 = vpop.f32.mrb[0].mxu0
      %v2197 = vadd.f32 %v2058, %v2196
      %v2198 = vpop.f32.mrb[0].mxu0
      %2199 = vmatprep.mubr.bf16.mxu0 0
      %2200 = vmatmul.mubr.bf16.gmra.mrb[0].mxu0 %v2134
      %v2201 = vpop.f32.mrb[0].mxu0
      %v2202 = vadd.f32 %v2063, %v2201
      %v2203 = vpop.f32.mrb[0].mxu0
      %v2204 = vpop.f32.mrb[0].mxu0
      %v2205 = vadd.f32 %v2066, %v2204
      %v2206 = vpop.f32.mrb[0].mxu0
      %2207 = vmatprep.mubr.bf16.mxu0 0
      %2208 = vmatmul.mubr.bf16.gmra.mrb[0].mxu0 %v2137
      %v2209 = vpop.f32.mrb[0].mxu0
      %v2210 = vadd.f32 %v2071, %v2209
      %v2211 = vpop.f32.mrb[0].mxu0
      %v2212 = vpop.f32.mrb[0].mxu0
      %v2213 = vadd.f32 %v2074, %v2212
      %v2214 = vpop.f32.mrb[0].mxu0
      %2215 = vmatprep.mubr.bf16.mxu0 0
      %2216 = vmatmul.mubr.bf16.gmra.mrb[0].mxu0 %v2140
      %v2217 = vpop.f32.mrb[0].mxu0
      %v2218 = vadd.f32 %v2079, %v2217
      %v2219 = vpop.f32.mrb[0].mxu0
      %v2220 = vpop.f32.mrb[0].mxu0
      %v2221 = vadd.f32 %v2082, %v2220
      %v2222 = vpop.f32.mrb[0].mxu0
      %2223 = vmatprep.mubr.bf16.mxu0 0
      %2224 = vmatmul.mubr.bf16.gmra.mrb[0].mxu0 %v2143
      %v2225 = vpop.f32.mrb[0].mxu0
      %v2226 = vadd.f32 %v2087, %v2225
      %v2227 = vpop.f32.mrb[0].mxu0
      %v2228 = vpop.f32.mrb[0].mxu0
      %v2229 = vadd.f32 %v2090, %v2228
      %v2230 = vpop.f32.mrb[0].mxu0
      %2231 = vmatprep.mubr.bf16.mxu0 0
      %2232 = vmatmul.mubr.bf16.gmra.mrb[0].mxu0 %v2146
      %v2233 = vpop.f32.mrb[0].mxu0
      %v2234 = vadd.f32 %v2095, %v2233
      %v2235 = vpop.f32.mrb[0].mxu0
      %v2236 = vpop.f32.mrb[0].mxu0
      %v2237 = vadd.f32 %v2098, %v2236
      %v2238 = vpop.f32.mrb[0].mxu0
      %2239 = vmatprep.mubr.bf16.mxu0 0
      %2240 = vmatmul.mubr.bf16.gmra.mrb[0].mxu0 %v2149
      %v2241 = vpop.f32.mrb[0].mxu0
      %v2242 = vadd.f32 %v2103, %v2241
      %v2243 = vpop.f32.mrb[0].mxu0
      %v2244 = vpop.f32.mrb[0].mxu0
      %v2245 = vadd.f32 %v2106, %v2244
      %v2246 = vpop.f32.mrb[0].mxu0
      %2247 = vdwg.mxu0
      %v2248 = vpack.c.bf16 %v1861, %v1860
      %v2249 = vpack.c.bf16 %v1863, %v1862
      %v2250 = vpack.c.bf16 %v1865, %v1864
      %v2251 = vpack.c.bf16 %v1867, %v1866
      %v2252 = vpack.c.bf16 %v1869, %v1868
      %v2253 = vpack.c.bf16 %v1871, %v1870
      %v2254 = vpack.c.bf16 %v1873, %v1872
      %v2255 = vpack.c.bf16 %v1875, %v1874
      %v2256 = vld [vmem:[%s4 + $0x30] sm:$0xf]
      %v2257 = vld [vmem:[%s4 + $0x34] sm:$0xf]
      %v2258 = vld [vmem:[%s4 + $0x38] sm:$0xf]
      %v2259 = vld [vmem:[%s4 + $0x3c] sm:$0xf]
      %v2260 = vld [vmem:[%s4 + $0x40] sm:$0xf]
      %v2261 = vld [vmem:[%s4 + $0x44] sm:$0xf]
      %v2268 = vunpack.c.l.b16 %v2256
      %v2269 = vunpack.c.l.b16 %v2257
      %v2270 = vunpack.c.l.b16 %v2258
      %v2271 = vunpack.c.l.b16 %v2259
      %v2272 = vunpack.c.l.b16 %v2260
      %v2273 = vunpack.c.l.b16 %v2261
      %v2274 = vpack.c.b16 %v2269, %v2268
      %v2275 = vpack.c.b16 %v2271, %v2270
      %v2276 = vpack.c.b16 %v2273, %v2272
      %v2281 = vsel %vm1987, %v2248, 0
      %v2284 = vsel %vm1987, %v2249, 0
      %v2287 = vsel %vm1987, %v2250, 0
      %v2290 = vsel %vm1987, %v2251, 0
      %v2293 = vsel %vm1987, %v2252, 0
      %v2296 = vsel %vm1987, %v2253, 0
      %v2299 = vsel %vm1987, %v2254, 0
      %v2302 = vsel %vm1987, %v2255, 0
      %2304 = vmatprep.subr.bf16.mxu0 0
      %2305 = vmatpush1.bf16.msra.mxu0 %v2274
      %2306 = vmatprep.subr.bf16.mxu0 0
      %2307 = vmatpush1.bf16.msra.mxu0 %v2275
      %2308 = vmatprep.subr.bf16.mxu0 0
      %2309 = vmatpush1.bf16.msra.mxu0 %v2276
      %2310 = vmatprep.subr.bf16.mxu0 0
      %2311 = vmatpush1.bf16.msra.mxu0 0
      %2312 = vmatprep.subr.bf16.mxu0 0
      %2313 = vmatpush1.bf16.msra.mxu0 0
      %2314 = vmatprep.subr.bf16.mxu0 0
      %2315 = vmatpush1.bf16.msra.mxu0 0
      %2316 = vmatprep.subr.bf16.mxu0 0
      %2317 = vmatpush1.bf16.msra.mxu0 0
      %2318 = vmatprep.subr.bf16.mxu0 0
      %2319 = vmatpush1.bf16.msra.mxu0 0
      %2320 = vmatprep.subr.bf16.mxu0 0
      %2321 = vmatpush1.bf16.msra.mxu0 0
      %2322 = vmatprep.subr.bf16.mxu0 0
      %2323 = vmatpush1.bf16.msra.mxu0 0
      %2324 = vmatprep.subr.bf16.mxu0 0
      %2325 = vmatpush1.bf16.msra.mxu0 0
      %2326 = vmatprep.subr.bf16.mxu0 0
      %2327 = vmatpush1.bf16.msra.mxu0 0
      %2328 = vmatprep.subr.bf16.mxu0 0
      %2329 = vmatpush1.bf16.msra.mxu0 0
      %2330 = vmatprep.subr.bf16.mxu0 0
      %2331 = vmatpush1.bf16.msra.mxu0 0
      %2332 = vmatprep.subr.bf16.mxu0 0
      %2333 = vmatpush1.bf16.msra.mxu0 0
      %2334 = vmatprep.subr.bf16.mxu0 0
      %2335 = vmatpush1.bf16.msra.mxu0 0
      %2336 = vmatprep.mubr.bf16.mxu0 0
      %2337 = vmatmul.mubr.bf16.gmra.mrb[0].mxu0 %v2281
      %v2338 = vpop.f32.mrb[0].mxu0
      %v2339 = vadd.f32 0.0, %v2338
      %v2340 = vpop.f32.mrb[0].mxu0
      %v2341 = vpop.f32.mrb[0].mxu0
      %v2342 = vadd.f32 0.0, %v2341
      %v2343 = vpop.f32.mrb[0].mxu0
      %2344 = vmatprep.mubr.bf16.mxu0 0
      %2345 = vmatmul.mubr.bf16.gmra.mrb[0].mxu0 %v2284
      %v2346 = vpop.f32.mrb[0].mxu0
      %v2347 = vadd.f32 0.0, %v2346
      %v2348 = vpop.f32.mrb[0].mxu0
      %v2349 = vpop.f32.mrb[0].mxu0
      %v2350 = vadd.f32 0.0, %v2349
      %v2351 = vpop.f32.mrb[0].mxu0
      %2352 = vmatprep.mubr.bf16.mxu0 0
      %2353 = vmatmul.mubr.bf16.gmra.mrb[0].mxu0 %v2287
      %v2354 = vpop.f32.mrb[0].mxu0
      %v2355 = vadd.f32 0.0, %v2354
      %v2356 = vpop.f32.mrb[0].mxu0
      %v2357 = vpop.f32.mrb[0].mxu0
      %v2358 = vadd.f32 0.0, %v2357
      %v2359 = vpop.f32.mrb[0].mxu0
      %2360 = vmatprep.mubr.bf16.mxu0 0
      %2361 = vmatmul.mubr.bf16.gmra.mrb[0].mxu0 %v2290
      %v2362 = vpop.f32.mrb[0].mxu0
      %v2363 = vadd.f32 0.0, %v2362
      %v2364 = vpop.f32.mrb[0].mxu0
      %v2365 = vpop.f32.mrb[0].mxu0
      %v2366 = vadd.f32 0.0, %v2365
      %v2367 = vpop.f32.mrb[0].mxu0
      %2368 = vmatprep.mubr.bf16.mxu0 0
      %2369 = vmatmul.mubr.bf16.gmra.mrb[0].mxu0 %v2293
      %v2370 = vpop.f32.mrb[0].mxu0
      %v2371 = vadd.f32 0.0, %v2370
      %v2372 = vpop.f32.mrb[0].mxu0
      %v2373 = vpop.f32.mrb[0].mxu0
      %v2374 = vadd.f32 0.0, %v2373
      %v2375 = vpop.f32.mrb[0].mxu0
      %2376 = vmatprep.mubr.bf16.mxu0 0
      %2377 = vmatmul.mubr.bf16.gmra.mrb[0].mxu0 %v2296
      %v2378 = vpop.f32.mrb[0].mxu0
      %v2379 = vadd.f32 0.0, %v2378
      %v2380 = vpop.f32.mrb[0].mxu0
      %v2381 = vpop.f32.mrb[0].mxu0
      %v2382 = vadd.f32 0.0, %v2381
      %v2383 = vpop.f32.mrb[0].mxu0
      %2384 = vmatprep.mubr.bf16.mxu0 0
      %2385 = vmatmul.mubr.bf16.gmra.mrb[0].mxu0 %v2299
      %v2386 = vpop.f32.mrb[0].mxu0
      %v2387 = vadd.f32 0.0, %v2386
      %v2388 = vpop.f32.mrb[0].mxu0
      %v2389 = vpop.f32.mrb[0].mxu0
      %v2390 = vadd.f32 0.0, %v2389
      %v2391 = vpop.f32.mrb[0].mxu0
      %2392 = vmatprep.mubr.bf16.mxu0 0
      %2393 = vmatmul.mubr.bf16.gmra.mrb[0].mxu0 %v2302
      %v2394 = vpop.f32.mrb[0].mxu0
      %v2395 = vadd.f32 0.0, %v2394
      %v2396 = vpop.f32.mrb[0].mxu0
      %v2397 = vpop.f32.mrb[0].mxu0
      %v2398 = vadd.f32 0.0, %v2397
      %v2399 = vpop.f32.mrb[0].mxu0
      %2400 = vdwg.mxu0
      %v2401 = vadd.f32 %v2186, %v2339
      %v2402 = vadd.f32 %v2189, %v2342
      %v2403 = vadd.f32 %v2194, %v2347
      %v2404 = vadd.f32 %v2197, %v2350
      %v2405 = vadd.f32 %v2202, %v2355
      %v2406 = vadd.f32 %v2205, %v2358
      %v2407 = vadd.f32 %v2210, %v2363
      %v2408 = vadd.f32 %v2213, %v2366
      %v2409 = vadd.f32 %v2218, %v2371
      %v2410 = vadd.f32 %v2221, %v2374
      %v2411 = vadd.f32 %v2226, %v2379
      %v2412 = vadd.f32 %v2229, %v2382
      %v2413 = vadd.f32 %v2234, %v2387
      %v2414 = vadd.f32 %v2237, %v2390
      %v2415 = vadd.f32 %v2242, %v2395
      %v2416 = vadd.f32 %v2245, %v2398
      %v2417 = vld [vmem:[%s5] sm:$0x1]
      %v2419 = vlaneseq
      %v2420 = vshrl.u32 %v2419, 7
      %v2421 = vsub.s32 0, %v2420
      %v2422 = vrot.slane %v2417, %v2421
      %v2424 = vadd.f32 %v2401, %v2422
      %v2425 = vadd.f32 %v2402, %v2422
      %v2426 = vadd.f32 %v2403, %v2422
      %v2427 = vadd.f32 %v2404, %v2422
      %v2428 = vadd.f32 %v2405, %v2422
      %v2429 = vadd.f32 %v2406, %v2422
      %v2430 = vadd.f32 %v2407, %v2422
      %v2431 = vadd.f32 %v2408, %v2422
      %v2432 = vadd.f32 %v2409, %v2422
      %v2433 = vadd.f32 %v2410, %v2422
      %v2434 = vadd.f32 %v2411, %v2422
      %v2435 = vadd.f32 %v2412, %v2422
      %v2436 = vadd.f32 %v2413, %v2422
      %v2437 = vadd.f32 %v2414, %v2422
      %v2438 = vadd.f32 %v2415, %v2422
      %v2439 = vadd.f32 %v2416, %v2422
      %vm2440 = vcmp.eq.s32.totalorder %v534, 1
      %vm2441 = vcmp.eq.s32.totalorder %v535, 1
      %vm2442 = vcmp.eq.s32.totalorder %v536, 1
      %vm2443 = vcmp.eq.s32.totalorder %v537, 1
      %vm2444 = vcmp.eq.s32.totalorder %v538, 1
      %vm2445 = vcmp.eq.s32.totalorder %v539, 1
      %vm2446 = vcmp.eq.s32.totalorder %v540, 1
      %vm2447 = vcmp.eq.s32.totalorder %v541, 1
      %vm2448 = vcmp.eq.s32.totalorder %v542, 1
      %vm2449 = vcmp.eq.s32.totalorder %v543, 1
      %vm2450 = vcmp.eq.s32.totalorder %v544, 1
      %vm2451 = vcmp.eq.s32.totalorder %v545, 1
      %vm2452 = vcmp.eq.s32.totalorder %v546, 1
      %vm2453 = vcmp.eq.s32.totalorder %v547, 1
      %vm2454 = vcmp.eq.s32.totalorder %v548, 1
      %vm2455 = vcmp.eq.s32.totalorder %v549, 1
      %v2456 = vsel %vm2440, 1, 0
      %v2457 = vsel %vm2441, 1, 0
      %v2458 = vsel %vm2442, 1, 0
      %v2459 = vsel %vm2443, 1, 0
      %v2460 = vsel %vm2444, 1, 0
      %v2461 = vsel %vm2445, 1, 0
      %v2462 = vsel %vm2446, 1, 0
      %v2463 = vsel %vm2447, 1, 0
      %v2464 = vsel %vm2448, 1, 0
      %v2465 = vsel %vm2449, 1, 0
      %v2466 = vsel %vm2450, 1, 0
      %v2467 = vsel %vm2451, 1, 0
      %v2468 = vsel %vm2452, 1, 0
      %v2469 = vsel %vm2453, 1, 0
      %v2470 = vsel %vm2454, 1, 0
      %v2471 = vsel %vm2455, 1, 0
      %2472 = vset.pattern.permute.xlu0 0
      %2473 = vperm.xlu0 %2472, %v2456
      %v2474 = vpop.permute.xlu0 %2473
      %2475 = vset.pattern.permute.xlu0 0
      %2476 = vperm.xlu0 %2475, %v2457
      %v2477 = vpop.permute.xlu0 %2476
      %2478 = vset.pattern.permute.xlu0 0
      %2479 = vperm.xlu0 %2478, %v2458
      %v2480 = vpop.permute.xlu0 %2479
      %2481 = vset.pattern.permute.xlu0 0
      %2482 = vperm.xlu0 %2481, %v2459
      %v2483 = vpop.permute.xlu0 %2482
      %2484 = vset.pattern.permute.xlu0 0
      %2485 = vperm.xlu0 %2484, %v2460
      %v2486 = vpop.permute.xlu0 %2485
      %2487 = vset.pattern.permute.xlu0 0
      %2488 = vperm.xlu0 %2487, %v2461
      %v2489 = vpop.permute.xlu0 %2488
      %2490 = vset.pattern.permute.xlu0 0
      %2491 = vperm.xlu0 %2490, %v2462
      %v2492 = vpop.permute.xlu0 %2491
      %2493 = vset.pattern.permute.xlu0 0
      %2494 = vperm.xlu0 %2493, %v2463
      %v2495 = vpop.permute.xlu0 %2494
      %2496 = vset.pattern.permute.xlu0 0
      %2497 = vperm.xlu0 %2496, %v2464
      %v2498 = vpop.permute.xlu0 %2497
      %2499 = vset.pattern.permute.xlu0 0
      %2500 = vperm.xlu0 %2499, %v2465
      %v2501 = vpop.permute.xlu0 %2500
      %2502 = vset.pattern.permute.xlu0 0
      %2503 = vperm.xlu0 %2502, %v2466
      %v2504 = vpop.permute.xlu0 %2503
      %2505 = vset.pattern.permute.xlu0 0
      %2506 = vperm.xlu0 %2505, %v2467
      %v2507 = vpop.permute.xlu0 %2506
      %2508 = vset.pattern.permute.xlu0 0
      %2509 = vperm.xlu0 %2508, %v2468
      %v2510 = vpop.permute.xlu0 %2509
      %2511 = vset.pattern.permute.xlu0 0
      %2512 = vperm.xlu0 %2511, %v2469
      %v2513 = vpop.permute.xlu0 %2512
      %2514 = vset.pattern.permute.xlu0 0
      %2515 = vperm.xlu0 %2514, %v2470
      %v2516 = vpop.permute.xlu0 %2515
      %2517 = vset.pattern.permute.xlu0 0
      %2518 = vperm.xlu0 %2517, %v2471
      %v2519 = vpop.permute.xlu0 %2518
      %vm2520 = vcmp.eq.s32.totalorder %v2474, 1
      %vm2521 = vcmp.eq.s32.totalorder %v2477, 1
      %vm2522 = vcmp.eq.s32.totalorder %v2480, 1
      %vm2523 = vcmp.eq.s32.totalorder %v2483, 1
      %vm2524 = vcmp.eq.s32.totalorder %v2486, 1
      %vm2525 = vcmp.eq.s32.totalorder %v2489, 1
      %vm2526 = vcmp.eq.s32.totalorder %v2492, 1
      %vm2527 = vcmp.eq.s32.totalorder %v2495, 1
      %vm2528 = vcmp.eq.s32.totalorder %v2498, 1
      %vm2529 = vcmp.eq.s32.totalorder %v2501, 1
      %vm2530 = vcmp.eq.s32.totalorder %v2504, 1
      %vm2531 = vcmp.eq.s32.totalorder %v2507, 1
      %vm2532 = vcmp.eq.s32.totalorder %v2510, 1
      %vm2533 = vcmp.eq.s32.totalorder %v2513, 1
      %vm2534 = vcmp.eq.s32.totalorder %v2516, 1
      %vm2535 = vcmp.eq.s32.totalorder %v2519, 1
      %v2536 = vsel %vm2520, %v2424, -1e+30
      %v2537 = vsel %vm2521, %v2425, -1e+30
      %v2538 = vsel %vm2522, %v2426, -1e+30
      %v2539 = vsel %vm2523, %v2427, -1e+30
      %v2540 = vsel %vm2524, %v2428, -1e+30
      %v2541 = vsel %vm2525, %v2429, -1e+30
      %v2542 = vsel %vm2526, %v2430, -1e+30
      %v2543 = vsel %vm2527, %v2431, -1e+30
      %v2544 = vsel %vm2528, %v2432, -1e+30
      %v2545 = vsel %vm2529, %v2433, -1e+30
      %v2546 = vsel %vm2530, %v2434, -1e+30
      %v2547 = vsel %vm2531, %v2435, -1e+30
      %v2548 = vsel %vm2532, %v2436, -1e+30
      %v2549 = vsel %vm2533, %v2437, -1e+30
      %v2550 = vsel %vm2534, %v2438, -1e+30
      %v2551 = vsel %vm2535, %v2439, -1e+30
      %v2552 = vsel %vm1665, %v2536, -inf
      %v2553 = vsel %vm1665, %v2537, -inf
      %v2554 = vmax.f32 %v2552, %v2553
      %v2555 = vrot.slane %v2554, 4
      %v2556 = vmax.f32 %v2554, %v2555
      %v2557 = vrot.slane %v2556, 2
      %v2558 = vmax.f32 %v2556, %v2557
      %v2559 = vrot.slane %v2558, 1
      %v2560 = vmax.f32 %v2558, %v2559
      %v2561 = vsel %vm1665, %v2538, -inf
      %v2562 = vsel %vm1665, %v2539, -inf
      %v2563 = vmax.f32 %v2561, %v2562
      %v2564 = vrot.slane %v2563, 4
      %v2565 = vmax.f32 %v2563, %v2564
      %v2566 = vrot.slane %v2565, 2
      %v2567 = vmax.f32 %v2565, %v2566
      %v2568 = vrot.slane %v2567, 1
      %v2569 = vmax.f32 %v2567, %v2568
      %v2570 = vsel %vm1665, %v2540, -inf
      %v2571 = vsel %vm1665, %v2541, -inf
      %v2572 = vmax.f32 %v2570, %v2571
      %v2573 = vrot.slane %v2572, 4
      %v2574 = vmax.f32 %v2572, %v2573
      %v2575 = vrot.slane %v2574, 2
      %v2576 = vmax.f32 %v2574, %v2575
      %v2577 = vrot.slane %v2576, 1
      %v2578 = vmax.f32 %v2576, %v2577
      %v2579 = vsel %vm1665, %v2542, -inf
      %v2580 = vsel %vm1665, %v2543, -inf
      %v2581 = vmax.f32 %v2579, %v2580
      %v2582 = vrot.slane %v2581, 4
      %v2583 = vmax.f32 %v2581, %v2582
      %v2584 = vrot.slane %v2583, 2
      %v2585 = vmax.f32 %v2583, %v2584
      %v2586 = vrot.slane %v2585, 1
      %v2587 = vmax.f32 %v2585, %v2586
      %v2588 = vsel %vm1665, %v2544, -inf
      %v2589 = vsel %vm1665, %v2545, -inf
      %v2590 = vmax.f32 %v2588, %v2589
      %v2591 = vrot.slane %v2590, 4
      %v2592 = vmax.f32 %v2590, %v2591
      %v2593 = vrot.slane %v2592, 2
      %v2594 = vmax.f32 %v2592, %v2593
      %v2595 = vrot.slane %v2594, 1
      %v2596 = vmax.f32 %v2594, %v2595
      %v2597 = vsel %vm1665, %v2546, -inf
      %v2598 = vsel %vm1665, %v2547, -inf
      %v2599 = vmax.f32 %v2597, %v2598
      %v2600 = vrot.slane %v2599, 4
      %v2601 = vmax.f32 %v2599, %v2600
      %v2602 = vrot.slane %v2601, 2
      %v2603 = vmax.f32 %v2601, %v2602
      %v2604 = vrot.slane %v2603, 1
      %v2605 = vmax.f32 %v2603, %v2604
      %v2606 = vsel %vm1665, %v2548, -inf
      %v2607 = vsel %vm1665, %v2549, -inf
      %v2608 = vmax.f32 %v2606, %v2607
      %v2609 = vrot.slane %v2608, 4
      %v2610 = vmax.f32 %v2608, %v2609
      %v2611 = vrot.slane %v2610, 2
      %v2612 = vmax.f32 %v2610, %v2611
      %v2613 = vrot.slane %v2612, 1
      %v2614 = vmax.f32 %v2612, %v2613
      %v2615 = vsel %vm1665, %v2550, -inf
      %v2616 = vsel %vm1665, %v2551, -inf
      %v2617 = vmax.f32 %v2615, %v2616
      %v2618 = vrot.slane %v2617, 4
      %v2619 = vmax.f32 %v2617, %v2618
      %v2620 = vrot.slane %v2619, 2
      %v2621 = vmax.f32 %v2619, %v2620
      %v2622 = vrot.slane %v2621, 1
      %v2623 = vmax.f32 %v2621, %v2622
      %vm2624 = vcmp.eq.s32.totalorder %v534, 2
      %vm2625 = vcmp.eq.s32.totalorder %v535, 2
      %vm2626 = vcmp.eq.s32.totalorder %v536, 2
      %vm2627 = vcmp.eq.s32.totalorder %v537, 2
      %vm2628 = vcmp.eq.s32.totalorder %v538, 2
      %vm2629 = vcmp.eq.s32.totalorder %v539, 2
      %vm2630 = vcmp.eq.s32.totalorder %v540, 2
      %vm2631 = vcmp.eq.s32.totalorder %v541, 2
      %vm2632 = vcmp.eq.s32.totalorder %v542, 2
      %vm2633 = vcmp.eq.s32.totalorder %v543, 2
      %vm2634 = vcmp.eq.s32.totalorder %v544, 2
      %vm2635 = vcmp.eq.s32.totalorder %v545, 2
      %vm2636 = vcmp.eq.s32.totalorder %v546, 2
      %vm2637 = vcmp.eq.s32.totalorder %v547, 2
      %vm2638 = vcmp.eq.s32.totalorder %v548, 2
      %vm2639 = vcmp.eq.s32.totalorder %v549, 2
      %v2640 = vsel %vm2624, 1, 0
      %v2641 = vsel %vm2625, 1, 0
      %v2642 = vsel %vm2626, 1, 0
      %v2643 = vsel %vm2627, 1, 0
      %v2644 = vsel %vm2628, 1, 0
      %v2645 = vsel %vm2629, 1, 0
      %v2646 = vsel %vm2630, 1, 0
      %v2647 = vsel %vm2631, 1, 0
      %v2648 = vsel %vm2632, 1, 0
      %v2649 = vsel %vm2633, 1, 0
      %v2650 = vsel %vm2634, 1, 0
      %v2651 = vsel %vm2635, 1, 0
      %v2652 = vsel %vm2636, 1, 0
      %v2653 = vsel %vm2637, 1, 0
      %v2654 = vsel %vm2638, 1, 0
      %v2655 = vsel %vm2639, 1, 0
      %2656 = vset.pattern.permute.xlu0 0
      %2657 = vperm.xlu0 %2656, %v2640
      %v2658 = vpop.permute.xlu0 %2657
      %2659 = vset.pattern.permute.xlu0 0
      %2660 = vperm.xlu0 %2659, %v2641
      %v2661 = vpop.permute.xlu0 %2660
      %2662 = vset.pattern.permute.xlu0 0
      %2663 = vperm.xlu0 %2662, %v2642
      %v2664 = vpop.permute.xlu0 %2663
      %2665 = vset.pattern.permute.xlu0 0
      %2666 = vperm.xlu0 %2665, %v2643
      %v2667 = vpop.permute.xlu0 %2666
      %2668 = vset.pattern.permute.xlu0 0
      %2669 = vperm.xlu0 %2668, %v2644
      %v2670 = vpop.permute.xlu0 %2669
      %2671 = vset.pattern.permute.xlu0 0
      %2672 = vperm.xlu0 %2671, %v2645
      %v2673 = vpop.permute.xlu0 %2672
      %2674 = vset.pattern.permute.xlu0 0
      %2675 = vperm.xlu0 %2674, %v2646
      %v2676 = vpop.permute.xlu0 %2675
      %2677 = vset.pattern.permute.xlu0 0
      %2678 = vperm.xlu0 %2677, %v2647
      %v2679 = vpop.permute.xlu0 %2678
      %2680 = vset.pattern.permute.xlu0 0
      %2681 = vperm.xlu0 %2680, %v2648
      %v2682 = vpop.permute.xlu0 %2681
      %2683 = vset.pattern.permute.xlu0 0
      %2684 = vperm.xlu0 %2683, %v2649
      %v2685 = vpop.permute.xlu0 %2684
      %2686 = vset.pattern.permute.xlu0 0
      %2687 = vperm.xlu0 %2686, %v2650
      %v2688 = vpop.permute.xlu0 %2687
      %2689 = vset.pattern.permute.xlu0 0
      %2690 = vperm.xlu0 %2689, %v2651
      %v2691 = vpop.permute.xlu0 %2690
      %2692 = vset.pattern.permute.xlu0 0
      %2693 = vperm.xlu0 %2692, %v2652
      %v2694 = vpop.permute.xlu0 %2693
      %2695 = vset.pattern.permute.xlu0 0
      %2696 = vperm.xlu0 %2695, %v2653
      %v2697 = vpop.permute.xlu0 %2696
      %2698 = vset.pattern.permute.xlu0 0
      %2699 = vperm.xlu0 %2698, %v2654
      %v2700 = vpop.permute.xlu0 %2699
      %2701 = vset.pattern.permute.xlu0 0
      %2702 = vperm.xlu0 %2701, %v2655
      %v2703 = vpop.permute.xlu0 %2702
      %vm2704 = vcmp.eq.s32.totalorder %v2658, 1
      %vm2705 = vcmp.eq.s32.totalorder %v2661, 1
      %vm2706 = vcmp.eq.s32.totalorder %v2664, 1
      %vm2707 = vcmp.eq.s32.totalorder %v2667, 1
      %vm2708 = vcmp.eq.s32.totalorder %v2670, 1
      %vm2709 = vcmp.eq.s32.totalorder %v2673, 1
      %vm2710 = vcmp.eq.s32.totalorder %v2676, 1
      %vm2711 = vcmp.eq.s32.totalorder %v2679, 1
      %vm2712 = vcmp.eq.s32.totalorder %v2682, 1
      %vm2713 = vcmp.eq.s32.totalorder %v2685, 1
      %vm2714 = vcmp.eq.s32.totalorder %v2688, 1
      %vm2715 = vcmp.eq.s32.totalorder %v2691, 1
      %vm2716 = vcmp.eq.s32.totalorder %v2694, 1
      %vm2717 = vcmp.eq.s32.totalorder %v2697, 1
      %vm2718 = vcmp.eq.s32.totalorder %v2700, 1
      %vm2719 = vcmp.eq.s32.totalorder %v2703, 1
      %v2720 = vsel %vm2704, %v2424, -1e+30
      %v2721 = vsel %vm2705, %v2425, -1e+30
      %v2722 = vsel %vm2706, %v2426, -1e+30
      %v2723 = vsel %vm2707, %v2427, -1e+30
      %v2724 = vsel %vm2708, %v2428, -1e+30
      %v2725 = vsel %vm2709, %v2429, -1e+30
      %v2726 = vsel %vm2710, %v2430, -1e+30
      %v2727 = vsel %vm2711, %v2431, -1e+30
      %v2728 = vsel %vm2712, %v2432, -1e+30
      %v2729 = vsel %vm2713, %v2433, -1e+30
      %v2730 = vsel %vm2714, %v2434, -1e+30
      %v2731 = vsel %vm2715, %v2435, -1e+30
      %v2732 = vsel %vm2716, %v2436, -1e+30
      %v2733 = vsel %vm2717, %v2437, -1e+30
      %v2734 = vsel %vm2718, %v2438, -1e+30
      %v2735 = vsel %vm2719, %v2439, -1e+30
      %v2736 = vsel %vm1665, %v2720, -inf
      %v2737 = vsel %vm1665, %v2721, -inf
      %v2738 = vmax.f32 %v2736, %v2737
      %v2739 = vrot.slane %v2738, 4
      %v2740 = vmax.f32 %v2738, %v2739
      %v2741 = vrot.slane %v2740, 2
      %v2742 = vmax.f32 %v2740, %v2741
      %v2743 = vrot.slane %v2742, 1
      %v2744 = vmax.f32 %v2742, %v2743
      %v2745 = vsel %vm1665, %v2722, -inf
      %v2746 = vsel %vm1665, %v2723, -inf
      %v2747 = vmax.f32 %v2745, %v2746
      %v2748 = vrot.slane %v2747, 4
      %v2749 = vmax.f32 %v2747, %v2748
      %v2750 = vrot.slane %v2749, 2
      %v2751 = vmax.f32 %v2749, %v2750
      %v2752 = vrot.slane %v2751, 1
      %v2753 = vmax.f32 %v2751, %v2752
      %v2754 = vsel %vm1665, %v2724, -inf
      %v2755 = vsel %vm1665, %v2725, -inf
      %v2756 = vmax.f32 %v2754, %v2755
      %v2757 = vrot.slane %v2756, 4
      %v2758 = vmax.f32 %v2756, %v2757
      %v2759 = vrot.slane %v2758, 2
      %v2760 = vmax.f32 %v2758, %v2759
      %v2761 = vrot.slane %v2760, 1
      %v2762 = vmax.f32 %v2760, %v2761
      %v2763 = vsel %vm1665, %v2726, -inf
      %v2764 = vsel %vm1665, %v2727, -inf
      %v2765 = vmax.f32 %v2763, %v2764
      %v2766 = vrot.slane %v2765, 4
      %v2767 = vmax.f32 %v2765, %v2766
      %v2768 = vrot.slane %v2767, 2
      %v2769 = vmax.f32 %v2767, %v2768
      %v2770 = vrot.slane %v2769, 1
      %v2771 = vmax.f32 %v2769, %v2770
      %v2772 = vsel %vm1665, %v2728, -inf
      %v2773 = vsel %vm1665, %v2729, -inf
      %v2774 = vmax.f32 %v2772, %v2773
      %v2775 = vrot.slane %v2774, 4
      %v2776 = vmax.f32 %v2774, %v2775
      %v2777 = vrot.slane %v2776, 2
      %v2778 = vmax.f32 %v2776, %v2777
      %v2779 = vrot.slane %v2778, 1
      %v2780 = vmax.f32 %v2778, %v2779
      %v2781 = vsel %vm1665, %v2730, -inf
      %v2782 = vsel %vm1665, %v2731, -inf
      %v2783 = vmax.f32 %v2781, %v2782
      %v2784 = vrot.slane %v2783, 4
      %v2785 = vmax.f32 %v2783, %v2784
      %v2786 = vrot.slane %v2785, 2
      %v2787 = vmax.f32 %v2785, %v2786
      %v2788 = vrot.slane %v2787, 1
      %v2789 = vmax.f32 %v2787, %v2788
      %v2790 = vsel %vm1665, %v2732, -inf
      %v2791 = vsel %vm1665, %v2733, -inf
      %v2792 = vmax.f32 %v2790, %v2791
      %v2793 = vrot.slane %v2792, 4
      %v2794 = vmax.f32 %v2792, %v2793
      %v2795 = vrot.slane %v2794, 2
      %v2796 = vmax.f32 %v2794, %v2795
      %v2797 = vrot.slane %v2796, 1
      %v2798 = vmax.f32 %v2796, %v2797
      %v2799 = vsel %vm1665, %v2734, -inf
      %v2800 = vsel %vm1665, %v2735, -inf
      %v2801 = vmax.f32 %v2799, %v2800
      %v2802 = vrot.slane %v2801, 4
      %v2803 = vmax.f32 %v2801, %v2802
      %v2804 = vrot.slane %v2803, 2
      %v2805 = vmax.f32 %v2803, %v2804
      %v2806 = vrot.slane %v2805, 1
      %v2807 = vmax.f32 %v2805, %v2806
      %vm2808 = vcmp.eq.s32.totalorder %v534, 3
      %vm2809 = vcmp.eq.s32.totalorder %v535, 3
      %vm2810 = vcmp.eq.s32.totalorder %v536, 3
      %vm2811 = vcmp.eq.s32.totalorder %v537, 3
      %vm2812 = vcmp.eq.s32.totalorder %v538, 3
      %vm2813 = vcmp.eq.s32.totalorder %v539, 3
      %vm2814 = vcmp.eq.s32.totalorder %v540, 3
      %vm2815 = vcmp.eq.s32.totalorder %v541, 3
      %vm2816 = vcmp.eq.s32.totalorder %v542, 3
      %vm2817 = vcmp.eq.s32.totalorder %v543, 3
      %vm2818 = vcmp.eq.s32.totalorder %v544, 3
      %vm2819 = vcmp.eq.s32.totalorder %v545, 3
      %vm2820 = vcmp.eq.s32.totalorder %v546, 3
      %vm2821 = vcmp.eq.s32.totalorder %v547, 3
      %vm2822 = vcmp.eq.s32.totalorder %v548, 3
      %vm2823 = vcmp.eq.s32.totalorder %v549, 3
      %v2824 = vsel %vm2808, 1, 0
      %v2825 = vsel %vm2809, 1, 0
      %v2826 = vsel %vm2810, 1, 0
      %v2827 = vsel %vm2811, 1, 0
      %v2828 = vsel %vm2812, 1, 0
      %v2829 = vsel %vm2813, 1, 0
      %v2830 = vsel %vm2814, 1, 0
      %v2831 = vsel %vm2815, 1, 0
      %v2832 = vsel %vm2816, 1, 0
      %v2833 = vsel %vm2817, 1, 0
      %v2834 = vsel %vm2818, 1, 0
      %v2835 = vsel %vm2819, 1, 0
      %v2836 = vsel %vm2820, 1, 0
      %v2837 = vsel %vm2821, 1, 0
      %v2838 = vsel %vm2822, 1, 0
      %v2839 = vsel %vm2823, 1, 0
      %2840 = vset.pattern.permute.xlu0 0
      %2841 = vperm.xlu0 %2840, %v2824
      %v2842 = vpop.permute.xlu0 %2841
      %2843 = vset.pattern.permute.xlu0 0
      %2844 = vperm.xlu0 %2843, %v2825
      %v2845 = vpop.permute.xlu0 %2844
      %2846 = vset.pattern.permute.xlu0 0
      %2847 = vperm.xlu0 %2846, %v2826
      %v2848 = vpop.permute.xlu0 %2847
      %2849 = vset.pattern.permute.xlu0 0
      %2850 = vperm.xlu0 %2849, %v2827
      %v2851 = vpop.permute.xlu0 %2850
      %2852 = vset.pattern.permute.xlu0 0
      %2853 = vperm.xlu0 %2852, %v2828
      %v2854 = vpop.permute.xlu0 %2853
      %2855 = vset.pattern.permute.xlu0 0
      %2856 = vperm.xlu0 %2855, %v2829
      %v2857 = vpop.permute.xlu0 %2856
      %2858 = vset.pattern.permute.xlu0 0
      %2859 = vperm.xlu0 %2858, %v2830
      %v2860 = vpop.permute.xlu0 %2859
      %2861 = vset.pattern.permute.xlu0 0
      %2862 = vperm.xlu0 %2861, %v2831
      %v2863 = vpop.permute.xlu0 %2862
      %2864 = vset.pattern.permute.xlu0 0
      %2865 = vperm.xlu0 %2864, %v2832
      %v2866 = vpop.permute.xlu0 %2865
      %2867 = vset.pattern.permute.xlu0 0
      %2868 = vperm.xlu0 %2867, %v2833
      %v2869 = vpop.permute.xlu0 %2868
      %2870 = vset.pattern.permute.xlu0 0
      %2871 = vperm.xlu0 %2870, %v2834
      %v2872 = vpop.permute.xlu0 %2871
      %2873 = vset.pattern.permute.xlu0 0
      %2874 = vperm.xlu0 %2873, %v2835
      %v2875 = vpop.permute.xlu0 %2874
      %2876 = vset.pattern.permute.xlu0 0
      %2877 = vperm.xlu0 %2876, %v2836
      %v2878 = vpop.permute.xlu0 %2877
      %2879 = vset.pattern.permute.xlu0 0
      %2880 = vperm.xlu0 %2879, %v2837
      %v2881 = vpop.permute.xlu0 %2880
      %2882 = vset.pattern.permute.xlu0 0
      %2883 = vperm.xlu0 %2882, %v2838
      %v2884 = vpop.permute.xlu0 %2883
      %2885 = vset.pattern.permute.xlu0 0
      %2886 = vperm.xlu0 %2885, %v2839
      %v2887 = vpop.permute.xlu0 %2886
      %vm2888 = vcmp.eq.s32.totalorder %v2842, 1
      %vm2889 = vcmp.eq.s32.totalorder %v2845, 1
      %vm2890 = vcmp.eq.s32.totalorder %v2848, 1
      %vm2891 = vcmp.eq.s32.totalorder %v2851, 1
      %vm2892 = vcmp.eq.s32.totalorder %v2854, 1
      %vm2893 = vcmp.eq.s32.totalorder %v2857, 1
      %vm2894 = vcmp.eq.s32.totalorder %v2860, 1
      %vm2895 = vcmp.eq.s32.totalorder %v2863, 1
      %vm2896 = vcmp.eq.s32.totalorder %v2866, 1
      %vm2897 = vcmp.eq.s32.totalorder %v2869, 1
      %vm2898 = vcmp.eq.s32.totalorder %v2872, 1
      %vm2899 = vcmp.eq.s32.totalorder %v2875, 1
      %vm2900 = vcmp.eq.s32.totalorder %v2878, 1
      %vm2901 = vcmp.eq.s32.totalorder %v2881, 1
      %vm2902 = vcmp.eq.s32.totalorder %v2884, 1
      %vm2903 = vcmp.eq.s32.totalorder %v2887, 1
      %v2904 = vsel %vm2888, %v2424, -1e+30
      %v2905 = vsel %vm2889, %v2425, -1e+30
      %v2906 = vsel %vm2890, %v2426, -1e+30
      %v2907 = vsel %vm2891, %v2427, -1e+30
      %v2908 = vsel %vm2892, %v2428, -1e+30
      %v2909 = vsel %vm2893, %v2429, -1e+30
      %v2910 = vsel %vm2894, %v2430, -1e+30
      %v2911 = vsel %vm2895, %v2431, -1e+30
      %v2912 = vsel %vm2896, %v2432, -1e+30
      %v2913 = vsel %vm2897, %v2433, -1e+30
      %v2914 = vsel %vm2898, %v2434, -1e+30
      %v2915 = vsel %vm2899, %v2435, -1e+30
      %v2916 = vsel %vm2900, %v2436, -1e+30
      %v2917 = vsel %vm2901, %v2437, -1e+30
      %v2918 = vsel %vm2902, %v2438, -1e+30
      %v2919 = vsel %vm2903, %v2439, -1e+30
      %v2920 = vsel %vm1665, %v2904, -inf
      %v2921 = vsel %vm1665, %v2905, -inf
      %v2922 = vmax.f32 %v2920, %v2921
      %v2923 = vrot.slane %v2922, 4
      %v2924 = vmax.f32 %v2922, %v2923
      %v2925 = vrot.slane %v2924, 2
      %v2926 = vmax.f32 %v2924, %v2925
      %v2927 = vrot.slane %v2926, 1
      %v2928 = vmax.f32 %v2926, %v2927
      %v2929 = vsel %vm1665, %v2906, -inf
      %v2930 = vsel %vm1665, %v2907, -inf
      %v2931 = vmax.f32 %v2929, %v2930
      %v2932 = vrot.slane %v2931, 4
      %v2933 = vmax.f32 %v2931, %v2932
      %v2934 = vrot.slane %v2933, 2
      %v2935 = vmax.f32 %v2933, %v2934
      %v2936 = vrot.slane %v2935, 1
      %v2937 = vmax.f32 %v2935, %v2936
      %v2938 = vsel %vm1665, %v2908, -inf
      %v2939 = vsel %vm1665, %v2909, -inf
      %v2940 = vmax.f32 %v2938, %v2939
      %v2941 = vrot.slane %v2940, 4
      %v2942 = vmax.f32 %v2940, %v2941
      %v2943 = vrot.slane %v2942, 2
      %v2944 = vmax.f32 %v2942, %v2943
      %v2945 = vrot.slane %v2944, 1
      %v2946 = vmax.f32 %v2944, %v2945
      %v2947 = vsel %vm1665, %v2910, -inf
      %v2948 = vsel %vm1665, %v2911, -inf
      %v2949 = vmax.f32 %v2947, %v2948
      %v2950 = vrot.slane %v2949, 4
      %v2951 = vmax.f32 %v2949, %v2950
      %v2952 = vrot.slane %v2951, 2
      %v2953 = vmax.f32 %v2951, %v2952
      %v2954 = vrot.slane %v2953, 1
      %v2955 = vmax.f32 %v2953, %v2954
      %v2956 = vsel %vm1665, %v2912, -inf
      %v2957 = vsel %vm1665, %v2913, -inf
      %v2958 = vmax.f32 %v2956, %v2957
      %v2959 = vrot.slane %v2958, 4
      %v2960 = vmax.f32 %v2958, %v2959
      %v2961 = vrot.slane %v2960, 2
      %v2962 = vmax.f32 %v2960, %v2961
      %v2963 = vrot.slane %v2962, 1
      %v2964 = vmax.f32 %v2962, %v2963
      %v2965 = vsel %vm1665, %v2914, -inf
      %v2966 = vsel %vm1665, %v2915, -inf
      %v2967 = vmax.f32 %v2965, %v2966
      %v2968 = vrot.slane %v2967, 4
      %v2969 = vmax.f32 %v2967, %v2968
      %v2970 = vrot.slane %v2969, 2
      %v2971 = vmax.f32 %v2969, %v2970
      %v2972 = vrot.slane %v2971, 1
      %v2973 = vmax.f32 %v2971, %v2972
      %v2974 = vsel %vm1665, %v2916, -inf
      %v2975 = vsel %vm1665, %v2917, -inf
      %v2976 = vmax.f32 %v2974, %v2975
      %v2977 = vrot.slane %v2976, 4
      %v2978 = vmax.f32 %v2976, %v2977
      %v2979 = vrot.slane %v2978, 2
      %v2980 = vmax.f32 %v2978, %v2979
      %v2981 = vrot.slane %v2980, 1
      %v2982 = vmax.f32 %v2980, %v2981
      %v2983 = vsel %vm1665, %v2918, -inf
      %v2984 = vsel %vm1665, %v2919, -inf
      %v2985 = vmax.f32 %v2983, %v2984
      %v2986 = vrot.slane %v2985, 4
      %v2987 = vmax.f32 %v2985, %v2986
      %v2988 = vrot.slane %v2987, 2
      %v2989 = vmax.f32 %v2987, %v2988
      %v2990 = vrot.slane %v2989, 1
      %v2991 = vmax.f32 %v2989, %v2990
      %vm3000 = vcmask 1041409
      %v3001 = vsel %vm3000, %v2569, %v2560
      %vm3002 = vcmask 1042434
      %v3003 = vsel %vm3002, %v2578, %v3001
      %vm3004 = vcmask 1043459
      %v3005 = vsel %vm3004, %v2587, %v3003
      %vm3006 = vcmask 1044484
      %v3007 = vsel %vm3006, %v2596, %v3005
      %vm3008 = vcmask 1045509
      %v3009 = vsel %vm3008, %v2605, %v3007
      %vm3010 = vcmask 1046534
      %v3011 = vsel %vm3010, %v2614, %v3009
      %vm3012 = vcmask 1047559
      %v3013 = vsel %vm3012, %v2623, %v3011
      %v3023 = vsel %vm3000, %v2753, %v2744
      %v3024 = vsel %vm3002, %v2762, %v3023
      %v3025 = vsel %vm3004, %v2771, %v3024
      %v3026 = vsel %vm3006, %v2780, %v3025
      %v3027 = vsel %vm3008, %v2789, %v3026
      %v3028 = vsel %vm3010, %v2798, %v3027
      %v3029 = vsel %vm3012, %v2807, %v3028
      %3030 = vrot.lane.b32.xlu0 %v3029, 32
      %v3031 = vpop.permute.xlu0 %3030
      %v3041 = vsel %vm3000, %v2937, %v2928
      %v3042 = vsel %vm3002, %v2946, %v3041
      %v3043 = vsel %vm3004, %v2955, %v3042
      %v3044 = vsel %vm3006, %v2964, %v3043
      %v3045 = vsel %vm3008, %v2973, %v3044
      %v3046 = vsel %vm3010, %v2982, %v3045
      %v3047 = vsel %vm3012, %v2991, %v3046
      %3048 = vrot.lane.b32.xlu0 %v3047, 64
      %v3049 = vpop.permute.xlu0 %3048
      %v3051 = vsel %vm1665, %v3013, %v3031
      %vm3052 = vcmask 523264
      %v3053 = vsel %vm3052, %v3051, %v3049
      %v3054 = vmax.f32 %v3053, 0.0
      %v3055 = vpack.c.bf16 %v1329, %v1328
      %v3056 = vpack.c.bf16 %v1331, %v1330
      %v3057 = vpack.c.bf16 %v1333, %v1332
      %v3058 = vpack.c.bf16 %v1335, %v1334
      %v3059 = vpack.c.bf16 %v1337, %v1336
      %v3060 = vpack.c.bf16 %v1339, %v1338
      %v3061 = vpack.c.bf16 %v1341, %v1340
      %v3062 = vpack.c.bf16 %v1343, %v1342
      %v3063 = vld [vmem:[%s6] sm:$0xf]
      %v3064 = vld [vmem:[%s6 + $0x4] sm:$0xf]
      %v3065 = vld [vmem:[%s6 + $0x8] sm:$0xf]
      %v3066 = vld [vmem:[%s6 + $0xc] sm:$0xf]
      %v3067 = vld [vmem:[%s6 + $0x10] sm:$0xf]
      %v3068 = vld [vmem:[%s6 + $0x14] sm:$0xf]
      %v3069 = vld [vmem:[%s7] sm:$0x1]
      %v3071 = vlaneseq
      %v3072 = vshrl.u32 %v3071, 7
      %v3073 = vsub.s32 0, %v3072
      %v3074 = vrot.slane %v3069, %v3073
      %3084 = vrot.lane.b32.xlu0 %v3055, 112
      %v3085 = vpop.permute.xlu0 %3084
      %3086 = vrot.lane.b32.xlu0 %v3056, 112
      %v3087 = vpop.permute.xlu0 %3086
      %3088 = vrot.lane.b32.xlu0 %v3057, 112
      %v3089 = vpop.permute.xlu0 %3088
      %3090 = vrot.lane.b32.xlu0 %v3058, 112
      %v3091 = vpop.permute.xlu0 %3090
      %3092 = vrot.lane.b32.xlu0 %v3059, 112
      %v3093 = vpop.permute.xlu0 %3092
      %3094 = vrot.lane.b32.xlu0 %v3060, 112
      %v3095 = vpop.permute.xlu0 %3094
      %3096 = vrot.lane.b32.xlu0 %v3061, 112
      %v3097 = vpop.permute.xlu0 %3096
      %3098 = vrot.lane.b32.xlu0 %v3062, 112
      %v3099 = vpop.permute.xlu0 %3098
      %v3106 = vunpack.c.l.b16 %v3063
      %v3107 = vunpack.c.l.b16 %v3064
      %v3108 = vunpack.c.l.b16 %v3065
      %v3109 = vunpack.c.l.b16 %v3066
      %v3110 = vunpack.c.l.b16 %v3067
      %v3111 = vunpack.c.l.b16 %v3068
      %v3112 = vpack.c.b16 %v3107, %v3106
      %v3113 = vpack.c.b16 %v3109, %v3108
      %v3114 = vpack.c.b16 %v3111, %v3110
      %v3119 = vsel %vm1987, %v3085, 0
      %v3122 = vsel %vm1987, %v3087, 0
      %v3125 = vsel %vm1987, %v3089, 0
      %v3128 = vsel %vm1987, %v3091, 0
      %v3131 = vsel %vm1987, %v3093, 0
      %v3134 = vsel %vm1987, %v3095, 0
      %v3137 = vsel %vm1987, %v3097, 0
      %v3140 = vsel %vm1987, %v3099, 0
      %3142 = vmatprep.subr.bf16.mxu0 0
      %3143 = vmatpush1.bf16.msra.mxu0 %v3112
      %3144 = vmatprep.subr.bf16.mxu0 0
      %3145 = vmatpush1.bf16.msra.mxu0 %v3113
      %3146 = vmatprep.subr.bf16.mxu0 0
      %3147 = vmatpush1.bf16.msra.mxu0 %v3114
      %3148 = vmatprep.subr.bf16.mxu0 0
      %3149 = vmatpush1.bf16.msra.mxu0 0
      %3150 = vmatprep.subr.bf16.mxu0 0
      %3151 = vmatpush1.bf16.msra.mxu0 0
      %3152 = vmatprep.subr.bf16.mxu0 0
      %3153 = vmatpush1.bf16.msra.mxu0 0
      %3154 = vmatprep.subr.bf16.mxu0 0
      %3155 = vmatpush1.bf16.msra.mxu0 0
      %3156 = vmatprep.subr.bf16.mxu0 0
      %3157 = vmatpush1.bf16.msra.mxu0 0
      %3158 = vmatprep.subr.bf16.mxu0 0
      %3159 = vmatpush1.bf16.msra.mxu0 0
      %3160 = vmatprep.subr.bf16.mxu0 0
      %3161 = vmatpush1.bf16.msra.mxu0 0
      %3162 = vmatprep.subr.bf16.mxu0 0
      %3163 = vmatpush1.bf16.msra.mxu0 0
      %3164 = vmatprep.subr.bf16.mxu0 0
      %3165 = vmatpush1.bf16.msra.mxu0 0
      %3166 = vmatprep.subr.bf16.mxu0 0
      %3167 = vmatpush1.bf16.msra.mxu0 0
      %3168 = vmatprep.subr.bf16.mxu0 0
      %3169 = vmatpush1.bf16.msra.mxu0 0
      %3170 = vmatprep.subr.bf16.mxu0 0
      %3171 = vmatpush1.bf16.msra.mxu0 0
      %3172 = vmatprep.subr.bf16.mxu0 0
      %3173 = vmatpush1.bf16.msra.mxu0 0
      %3174 = vmatprep.mubr.bf16.mxu0 0
      %3175 = vmatmul.mubr.bf16.gmra.mrb[0].mxu0 %v3119
      %v3176 = vpop.f32.mrb[0].mxu0
      %v3177 = vadd.f32 %v3074, %v3176
      %v3178 = vpop.f32.mrb[0].mxu0
      %v3179 = vpop.f32.mrb[0].mxu0
      %v3180 = vadd.f32 %v3074, %v3179
      %v3181 = vpop.f32.mrb[0].mxu0
      %3182 = vmatprep.mubr.bf16.mxu0 0
      %3183 = vmatmul.mubr.bf16.gmra.mrb[0].mxu0 %v3122
      %v3184 = vpop.f32.mrb[0].mxu0
      %v3185 = vadd.f32 %v3074, %v3184
      %v3186 = vpop.f32.mrb[0].mxu0
      %v3187 = vpop.f32.mrb[0].mxu0
      %v3188 = vadd.f32 %v3074, %v3187
      %v3189 = vpop.f32.mrb[0].mxu0
      %3190 = vmatprep.mubr.bf16.mxu0 0
      %3191 = vmatmul.mubr.bf16.gmra.mrb[0].mxu0 %v3125
      %v3192 = vpop.f32.mrb[0].mxu0
      %v3193 = vadd.f32 %v3074, %v3192
      %v3194 = vpop.f32.mrb[0].mxu0
      %v3195 = vpop.f32.mrb[0].mxu0
      %v3196 = vadd.f32 %v3074, %v3195
      %v3197 = vpop.f32.mrb[0].mxu0
      %3198 = vmatprep.mubr.bf16.mxu0 0
      %3199 = vmatmul.mubr.bf16.gmra.mrb[0].mxu0 %v3128
      %v3200 = vpop.f32.mrb[0].mxu0
      %v3201 = vadd.f32 %v3074, %v3200
      %v3202 = vpop.f32.mrb[0].mxu0
      %v3203 = vpop.f32.mrb[0].mxu0
      %v3204 = vadd.f32 %v3074, %v3203
      %v3205 = vpop.f32.mrb[0].mxu0
      %3206 = vmatprep.mubr.bf16.mxu0 0
      %3207 = vmatmul.mubr.bf16.gmra.mrb[0].mxu0 %v3131
      %v3208 = vpop.f32.mrb[0].mxu0
      %v3209 = vadd.f32 %v3074, %v3208
      %v3210 = vpop.f32.mrb[0].mxu0
      %v3211 = vpop.f32.mrb[0].mxu0
      %v3212 = vadd.f32 %v3074, %v3211
      %v3213 = vpop.f32.mrb[0].mxu0
      %3214 = vmatprep.mubr.bf16.mxu0 0
      %3215 = vmatmul.mubr.bf16.gmra.mrb[0].mxu0 %v3134
      %v3216 = vpop.f32.mrb[0].mxu0
      %v3217 = vadd.f32 %v3074, %v3216
      %v3218 = vpop.f32.mrb[0].mxu0
      %v3219 = vpop.f32.mrb[0].mxu0
      %v3220 = vadd.f32 %v3074, %v3219
      %v3221 = vpop.f32.mrb[0].mxu0
      %3222 = vmatprep.mubr.bf16.mxu0 0
      %3223 = vmatmul.mubr.bf16.gmra.mrb[0].mxu0 %v3137
      %v3224 = vpop.f32.mrb[0].mxu0
      %v3225 = vadd.f32 %v3074, %v3224
      %v3226 = vpop.f32.mrb[0].mxu0
      %v3227 = vpop.f32.mrb[0].mxu0
      %v3228 = vadd.f32 %v3074, %v3227
      %v3229 = vpop.f32.mrb[0].mxu0
      %3230 = vmatprep.mubr.bf16.mxu0 0
      %3231 = vmatmul.mubr.bf16.gmra.mrb[0].mxu0 %v3140
      %v3232 = vpop.f32.mrb[0].mxu0
      %v3233 = vadd.f32 %v3074, %v3232
      %v3234 = vpop.f32.mrb[0].mxu0
      %v3235 = vpop.f32.mrb[0].mxu0
      %v3236 = vadd.f32 %v3074, %v3235
      %v3237 = vpop.f32.mrb[0].mxu0
      %3238 = vdwg.mxu0
      %v3239 = vtanh.pop %v3177
      %v3240 = vtanh.pop %v3180
      %v3241 = vtanh.pop %v3185
      %v3242 = vtanh.pop %v3188
      %v3243 = vtanh.pop %v3193
      %v3244 = vtanh.pop %v3196
      %v3245 = vtanh.pop %v3201
      %v3246 = vtanh.pop %v3204
      %v3247 = vtanh.pop %v3209
      %v3248 = vtanh.pop %v3212
      %v3249 = vtanh.pop %v3217
      %v3250 = vtanh.pop %v3220
      %v3251 = vtanh.pop %v3225
      %v3252 = vtanh.pop %v3228
      %v3253 = vtanh.pop %v3233
      %v3254 = vtanh.pop %v3236
      %v3255 = vld [vmem:[%s8] sm:$0x1]
      %v3257 = vlaneseq
      %v3258 = vshrl.u32 %v3257, 7
      %v3259 = vsub.s32 0, %v3258
      %v3260 = vrot.slane %v3255, %v3259
      %v3262 = vmul.f32 %v3239, %v3260
      %v3263 = vmul.f32 %v3240, %v3260
      %v3264 = vmul.f32 %v3241, %v3260
      %v3265 = vmul.f32 %v3242, %v3260
      %v3266 = vmul.f32 %v3243, %v3260
      %v3267 = vmul.f32 %v3244, %v3260
      %v3268 = vmul.f32 %v3245, %v3260
      %v3269 = vmul.f32 %v3246, %v3260
      %v3270 = vmul.f32 %v3247, %v3260
      %v3271 = vmul.f32 %v3248, %v3260
      %v3272 = vmul.f32 %v3249, %v3260
      %v3273 = vmul.f32 %v3250, %v3260
      %v3274 = vmul.f32 %v3251, %v3260
      %v3275 = vmul.f32 %v3252, %v3260
      %v3276 = vmul.f32 %v3253, %v3260
      %v3277 = vmul.f32 %v3254, %v3260
      %v3278 = vsel %vm1987, %v3262, 0.0
      %3279 = vadd.xlane.f32.xlu0 %v3278
      %v3280 = vpop.xlane.xlu0 %3279
      %v3281 = vsel %vm1987, %v3263, 0.0
      %3282 = vadd.xlane.f32.xlu0 %v3281
      %v3283 = vpop.xlane.xlu0 %3282
      %v3284 = vsel %vm1987, %v3264, 0.0
      %3285 = vadd.xlane.f32.xlu0 %v3284
      %v3286 = vpop.xlane.xlu0 %3285
      %v3287 = vsel %vm1987, %v3265, 0.0
      %3288 = vadd.xlane.f32.xlu0 %v3287
      %v3289 = vpop.xlane.xlu0 %3288
      %v3290 = vsel %vm1987, %v3266, 0.0
      %3291 = vadd.xlane.f32.xlu0 %v3290
      %v3292 = vpop.xlane.xlu0 %3291
      %v3293 = vsel %vm1987, %v3267, 0.0
      %3294 = vadd.xlane.f32.xlu0 %v3293
      %v3295 = vpop.xlane.xlu0 %3294
      %v3296 = vsel %vm1987, %v3268, 0.0
      %3297 = vadd.xlane.f32.xlu0 %v3296
      %v3298 = vpop.xlane.xlu0 %3297
      %v3299 = vsel %vm1987, %v3269, 0.0
      %3300 = vadd.xlane.f32.xlu0 %v3299
      %v3301 = vpop.xlane.xlu0 %3300
      %v3302 = vsel %vm1987, %v3270, 0.0
      %3303 = vadd.xlane.f32.xlu0 %v3302
      %v3304 = vpop.xlane.xlu0 %3303
      %v3305 = vsel %vm1987, %v3271, 0.0
      %3306 = vadd.xlane.f32.xlu0 %v3305
      %v3307 = vpop.xlane.xlu0 %3306
      %v3308 = vsel %vm1987, %v3272, 0.0
      %3309 = vadd.xlane.f32.xlu0 %v3308
      %v3310 = vpop.xlane.xlu0 %3309
      %v3311 = vsel %vm1987, %v3273, 0.0
      %3312 = vadd.xlane.f32.xlu0 %v3311
      %v3313 = vpop.xlane.xlu0 %3312
      %v3314 = vsel %vm1987, %v3274, 0.0
      %3315 = vadd.xlane.f32.xlu0 %v3314
      %v3316 = vpop.xlane.xlu0 %3315
      %v3317 = vsel %vm1987, %v3275, 0.0
      %3318 = vadd.xlane.f32.xlu0 %v3317
      %v3319 = vpop.xlane.xlu0 %3318
      %v3320 = vsel %vm1987, %v3276, 0.0
      %3321 = vadd.xlane.f32.xlu0 %v3320
      %v3322 = vpop.xlane.xlu0 %3321
      %v3323 = vsel %vm1987, %v3277, 0.0
      %3324 = vadd.xlane.f32.xlu0 %v3323
      %v3325 = vpop.xlane.xlu0 %3324
      %v3326 = vmax.f32 %v3280, %v3283
      %v3327 = vrot.slane %v3326, 4
      %v3328 = vmax.f32 %v3326, %v3327
      %v3329 = vrot.slane %v3328, 2
      %v3330 = vmax.f32 %v3328, %v3329
      %v3331 = vrot.slane %v3330, 1
      %v3332 = vmax.f32 %v3330, %v3331
      %v3333 = vmax.f32 %v3286, %v3289
      %v3334 = vrot.slane %v3333, 4
      %v3335 = vmax.f32 %v3333, %v3334
      %v3336 = vrot.slane %v3335, 2
      %v3337 = vmax.f32 %v3335, %v3336
      %v3338 = vrot.slane %v3337, 1
      %v3339 = vmax.f32 %v3337, %v3338
      %v3340 = vmax.f32 %v3292, %v3295
      %v3341 = vrot.slane %v3340, 4
      %v3342 = vmax.f32 %v3340, %v3341
      %v3343 = vrot.slane %v3342, 2
      %v3344 = vmax.f32 %v3342, %v3343
      %v3345 = vrot.slane %v3344, 1
      %v3346 = vmax.f32 %v3344, %v3345
      %v3347 = vmax.f32 %v3298, %v3301
      %v3348 = vrot.slane %v3347, 4
      %v3349 = vmax.f32 %v3347, %v3348
      %v3350 = vrot.slane %v3349, 2
      %v3351 = vmax.f32 %v3349, %v3350
      %v3352 = vrot.slane %v3351, 1
      %v3353 = vmax.f32 %v3351, %v3352
      %v3354 = vmax.f32 %v3304, %v3307
      %v3355 = vrot.slane %v3354, 4
      %v3356 = vmax.f32 %v3354, %v3355
      %v3357 = vrot.slane %v3356, 2
      %v3358 = vmax.f32 %v3356, %v3357
      %v3359 = vrot.slane %v3358, 1
      %v3360 = vmax.f32 %v3358, %v3359
      %v3361 = vmax.f32 %v3310, %v3313
      %v3362 = vrot.slane %v3361, 4
      %v3363 = vmax.f32 %v3361, %v3362
      %v3364 = vrot.slane %v3363, 2
      %v3365 = vmax.f32 %v3363, %v3364
      %v3366 = vrot.slane %v3365, 1
      %v3367 = vmax.f32 %v3365, %v3366
      %v3368 = vmax.f32 %v3316, %v3319
      %v3369 = vrot.slane %v3368, 4
      %v3370 = vmax.f32 %v3368, %v3369
      %v3371 = vrot.slane %v3370, 2
      %v3372 = vmax.f32 %v3370, %v3371
      %v3373 = vrot.slane %v3372, 1
      %v3374 = vmax.f32 %v3372, %v3373
      %v3375 = vmax.f32 %v3322, %v3325
      %v3376 = vrot.slane %v3375, 4
      %v3377 = vmax.f32 %v3375, %v3376
      %v3378 = vrot.slane %v3377, 2
      %v3379 = vmax.f32 %v3377, %v3378
      %v3380 = vrot.slane %v3379, 1
      %v3381 = vmax.f32 %v3379, %v3380
      %v3382 = vsub.f32 %v3280, %v3332
      %v3383 = vsub.f32 %v3283, %v3332
      %v3384 = vsub.f32 %v3286, %v3339
      %v3385 = vsub.f32 %v3289, %v3339
      %v3386 = vsub.f32 %v3292, %v3346
      %v3387 = vsub.f32 %v3295, %v3346
      %v3388 = vsub.f32 %v3298, %v3353
      %v3389 = vsub.f32 %v3301, %v3353
      %v3390 = vsub.f32 %v3304, %v3360
      %v3391 = vsub.f32 %v3307, %v3360
      %v3392 = vsub.f32 %v3310, %v3367
      %v3393 = vsub.f32 %v3313, %v3367
      %v3394 = vsub.f32 %v3316, %v3374
      %v3395 = vsub.f32 %v3319, %v3374
      %v3396 = vsub.f32 %v3322, %v3381
      %v3397 = vsub.f32 %v3325, %v3381
      %v3398 = vmul.f32 %v3382, 1.442695
      %v3399 = vpow.pop %v3398
      %v3400 = vmul.f32 %v3383, 1.442695
      %v3401 = vpow.pop %v3400
      %v3402 = vmul.f32 %v3384, 1.442695
      %v3403 = vpow.pop %v3402
      %v3404 = vmul.f32 %v3385, 1.442695
      %v3405 = vpow.pop %v3404
      %v3406 = vmul.f32 %v3386, 1.442695
      %v3407 = vpow.pop %v3406
      %v3408 = vmul.f32 %v3387, 1.442695
      %v3409 = vpow.pop %v3408
      %v3410 = vmul.f32 %v3388, 1.442695
      %v3411 = vpow.pop %v3410
      %v3412 = vmul.f32 %v3389, 1.442695
      %v3413 = vpow.pop %v3412
      %v3414 = vmul.f32 %v3390, 1.442695
      %v3415 = vpow.pop %v3414
      %v3416 = vmul.f32 %v3391, 1.442695
      %v3417 = vpow.pop %v3416
      %v3418 = vmul.f32 %v3392, 1.442695
      %v3419 = vpow.pop %v3418
      %v3420 = vmul.f32 %v3393, 1.442695
      %v3421 = vpow.pop %v3420
      %v3422 = vmul.f32 %v3394, 1.442695
      %v3423 = vpow.pop %v3422
      %v3424 = vmul.f32 %v3395, 1.442695
      %v3425 = vpow.pop %v3424
      %v3426 = vmul.f32 %v3396, 1.442695
      %v3427 = vpow.pop %v3426
      %v3428 = vmul.f32 %v3397, 1.442695
      %v3429 = vpow.pop %v3428
      %v3430 = vadd.f32 %v3399, %v3401
      %v3431 = vrot.slane %v3430, 4
      %v3432 = vadd.f32 %v3430, %v3431
      %v3433 = vrot.slane %v3432, 2
      %v3434 = vadd.f32 %v3432, %v3433
      %v3435 = vrot.slane %v3434, 1
      %v3436 = vadd.f32 %v3434, %v3435
      %v3437 = vadd.f32 %v3403, %v3405
      %v3438 = vrot.slane %v3437, 4
      %v3439 = vadd.f32 %v3437, %v3438
      %v3440 = vrot.slane %v3439, 2
      %v3441 = vadd.f32 %v3439, %v3440
      %v3442 = vrot.slane %v3441, 1
      %v3443 = vadd.f32 %v3441, %v3442
      %v3444 = vadd.f32 %v3407, %v3409
      %v3445 = vrot.slane %v3444, 4
      %v3446 = vadd.f32 %v3444, %v3445
      %v3447 = vrot.slane %v3446, 2
      %v3448 = vadd.f32 %v3446, %v3447
      %v3449 = vrot.slane %v3448, 1
      %v3450 = vadd.f32 %v3448, %v3449
      %v3451 = vadd.f32 %v3411, %v3413
      %v3452 = vrot.slane %v3451, 4
      %v3453 = vadd.f32 %v3451, %v3452
      %v3454 = vrot.slane %v3453, 2
      %v3455 = vadd.f32 %v3453, %v3454
      %v3456 = vrot.slane %v3455, 1
      %v3457 = vadd.f32 %v3455, %v3456
      %v3458 = vadd.f32 %v3415, %v3417
      %v3459 = vrot.slane %v3458, 4
      %v3460 = vadd.f32 %v3458, %v3459
      %v3461 = vrot.slane %v3460, 2
      %v3462 = vadd.f32 %v3460, %v3461
      %v3463 = vrot.slane %v3462, 1
      %v3464 = vadd.f32 %v3462, %v3463
      %v3465 = vadd.f32 %v3419, %v3421
      %v3466 = vrot.slane %v3465, 4
      %v3467 = vadd.f32 %v3465, %v3466
      %v3468 = vrot.slane %v3467, 2
      %v3469 = vadd.f32 %v3467, %v3468
      %v3470 = vrot.slane %v3469, 1
      %v3471 = vadd.f32 %v3469, %v3470
      %v3472 = vadd.f32 %v3423, %v3425
      %v3473 = vrot.slane %v3472, 4
      %v3474 = vadd.f32 %v3472, %v3473
      %v3475 = vrot.slane %v3474, 2
      %v3476 = vadd.f32 %v3474, %v3475
      %v3477 = vrot.slane %v3476, 1
      %v3478 = vadd.f32 %v3476, %v3477
      %v3479 = vadd.f32 %v3427, %v3429
      %v3480 = vrot.slane %v3479, 4
      %v3481 = vadd.f32 %v3479, %v3480
      %v3482 = vrot.slane %v3481, 2
      %v3483 = vadd.f32 %v3481, %v3482
      %v3484 = vrot.slane %v3483, 1
      %v3485 = vadd.f32 %v3483, %v3484
      %v3486 = vrcp.pop %v3436
      %v3487 = vmul.f32 %v3399, %v3486
      %v3488 = vmul.f32 %v3401, %v3486
      %v3489 = vrcp.pop %v3443
      %v3490 = vmul.f32 %v3403, %v3489
      %v3491 = vmul.f32 %v3405, %v3489
      %v3492 = vrcp.pop %v3450
      %v3493 = vmul.f32 %v3407, %v3492
      %v3494 = vmul.f32 %v3409, %v3492
      %v3495 = vrcp.pop %v3457
      %v3496 = vmul.f32 %v3411, %v3495
      %v3497 = vmul.f32 %v3413, %v3495
      %v3498 = vrcp.pop %v3464
      %v3499 = vmul.f32 %v3415, %v3498
      %v3500 = vmul.f32 %v3417, %v3498
      %v3501 = vrcp.pop %v3471
      %v3502 = vmul.f32 %v3419, %v3501
      %v3503 = vmul.f32 %v3421, %v3501
      %v3504 = vrcp.pop %v3478
      %v3505 = vmul.f32 %v3423, %v3504
      %v3506 = vmul.f32 %v3425, %v3504
      %v3507 = vrcp.pop %v3485
      %v3508 = vmul.f32 %v3427, %v3507
      %v3509 = vmul.f32 %v3429, %v3507
      %v3510 = vmul.f32 %v3487, %v518
      %v3511 = vmul.f32 %v3488, %v519
      %v3512 = vmul.f32 %v3490, %v520
      %v3513 = vmul.f32 %v3491, %v521
      %v3514 = vmul.f32 %v3493, %v522
      %v3515 = vmul.f32 %v3494, %v523
      %v3516 = vmul.f32 %v3496, %v524
      %v3517 = vmul.f32 %v3497, %v525
      %v3518 = vmul.f32 %v3499, %v526
      %v3519 = vmul.f32 %v3500, %v527
      %v3520 = vmul.f32 %v3502, %v528
      %v3521 = vmul.f32 %v3503, %v529
      %v3522 = vmul.f32 %v3505, %v530
      %v3523 = vmul.f32 %v3506, %v531
      %v3524 = vmul.f32 %v3508, %v532
      %v3525 = vmul.f32 %v3509, %v533
      %v3526 = vsel %vm1987, %v3510, 0.0
      %v3527 = vsel %vm1987, %v3511, 0.0
      %v3528 = vadd.f32 %v3526, %v3527
      %v3529 = vrot.slane %v3528, 4
      %v3530 = vadd.f32 %v3528, %v3529
      %v3531 = vrot.slane %v3530, 2
      %v3532 = vadd.f32 %v3530, %v3531
      %v3533 = vrot.slane %v3532, 1
      %v3534 = vadd.f32 %v3532, %v3533
      %v3535 = vsel %vm1987, %v3512, 0.0
      %v3536 = vsel %vm1987, %v3513, 0.0
      %v3537 = vadd.f32 %v3535, %v3536
      %v3538 = vrot.slane %v3537, 4
      %v3539 = vadd.f32 %v3537, %v3538
      %v3540 = vrot.slane %v3539, 2
      %v3541 = vadd.f32 %v3539, %v3540
      %v3542 = vrot.slane %v3541, 1
      %v3543 = vadd.f32 %v3541, %v3542
      %v3544 = vsel %vm1987, %v3514, 0.0
      %v3545 = vsel %vm1987, %v3515, 0.0
      %v3546 = vadd.f32 %v3544, %v3545
      %v3547 = vrot.slane %v3546, 4
      %v3548 = vadd.f32 %v3546, %v3547
      %v3549 = vrot.slane %v3548, 2
      %v3550 = vadd.f32 %v3548, %v3549
      %v3551 = vrot.slane %v3550, 1
      %v3552 = vadd.f32 %v3550, %v3551
      %v3553 = vsel %vm1987, %v3516, 0.0
      %v3554 = vsel %vm1987, %v3517, 0.0
      %v3555 = vadd.f32 %v3553, %v3554
      %v3556 = vrot.slane %v3555, 4
      %v3557 = vadd.f32 %v3555, %v3556
      %v3558 = vrot.slane %v3557, 2
      %v3559 = vadd.f32 %v3557, %v3558
      %v3560 = vrot.slane %v3559, 1
      %v3561 = vadd.f32 %v3559, %v3560
      %v3562 = vsel %vm1987, %v3518, 0.0
      %v3563 = vsel %vm1987, %v3519, 0.0
      %v3564 = vadd.f32 %v3562, %v3563
      %v3565 = vrot.slane %v3564, 4
      %v3566 = vadd.f32 %v3564, %v3565
      %v3567 = vrot.slane %v3566, 2
      %v3568 = vadd.f32 %v3566, %v3567
      %v3569 = vrot.slane %v3568, 1
      %v3570 = vadd.f32 %v3568, %v3569
      %v3571 = vsel %vm1987, %v3520, 0.0
      %v3572 = vsel %vm1987, %v3521, 0.0
      %v3573 = vadd.f32 %v3571, %v3572
      %v3574 = vrot.slane %v3573, 4
      %v3575 = vadd.f32 %v3573, %v3574
      %v3576 = vrot.slane %v3575, 2
      %v3577 = vadd.f32 %v3575, %v3576
      %v3578 = vrot.slane %v3577, 1
      %v3579 = vadd.f32 %v3577, %v3578
      %v3580 = vsel %vm1987, %v3522, 0.0
      %v3581 = vsel %vm1987, %v3523, 0.0
      %v3582 = vadd.f32 %v3580, %v3581
      %v3583 = vrot.slane %v3582, 4
      %v3584 = vadd.f32 %v3582, %v3583
      %v3585 = vrot.slane %v3584, 2
      %v3586 = vadd.f32 %v3584, %v3585
      %v3587 = vrot.slane %v3586, 1
      %v3588 = vadd.f32 %v3586, %v3587
      %v3589 = vsel %vm1987, %v3524, 0.0
      %v3590 = vsel %vm1987, %v3525, 0.0
      %v3591 = vadd.f32 %v3589, %v3590
      %v3592 = vrot.slane %v3591, 4
      %v3593 = vadd.f32 %v3591, %v3592
      %v3594 = vrot.slane %v3593, 2
      %v3595 = vadd.f32 %v3593, %v3594
      %v3596 = vrot.slane %v3595, 1
      %v3597 = vadd.f32 %v3595, %v3596
      %v3598 = vpack.c.bf16 %v3534, %v3534
      %v3599 = vpack.c.bf16 %v3543, %v3543
      %v3600 = vpack.c.bf16 %v3552, %v3552
      %v3601 = vpack.c.bf16 %v3561, %v3561
      %v3602 = vpack.c.bf16 %v3570, %v3570
      %v3603 = vpack.c.bf16 %v3579, %v3579
      %v3604 = vpack.c.bf16 %v3588, %v3588
      %v3605 = vpack.c.bf16 %v3597, %v3597
      %v3606 = vld [vmem:[%s9] sm:$0xf]
      %v3607 = vld [vmem:[%s9 + $0x4] sm:$0xf]
      %v3608 = vld [vmem:[%s9 + $0x8] sm:$0xf]
      %v3609 = vld [vmem:[%s9 + $0xc] sm:$0xf]
      %v3610 = vld [vmem:[%s9 + $0x10] sm:$0xf]
      %v3611 = vld [vmem:[%s9 + $0x14] sm:$0xf]
      %v3612 = vld [vmem:[%s10] sm:$0x1]
      %v3614 = vlaneseq
      %v3615 = vshrl.u32 %v3614, 7
      %v3616 = vsub.s32 0, %v3615
      %v3617 = vrot.slane %v3612, %v3616
      %v3627 = vunpack.c.l.b16 %v3598
      %v3628 = vunpack.c.l.b16 %v3599
      %v3629 = vunpack.c.l.b16 %v3600
      %v3630 = vunpack.c.l.b16 %v3601
      %v3631 = vunpack.c.l.b16 %v3602
      %v3632 = vunpack.c.l.b16 %v3603
      %v3633 = vunpack.c.l.b16 %v3604
      %v3634 = vunpack.c.l.b16 %v3605
      %v3635 = vsel %vm3000, %v3628, %v3627
      %v3636 = vsel %vm3002, %v3629, %v3635
      %v3637 = vsel %vm3004, %v3630, %v3636
      %v3638 = vsel %vm3006, %v3631, %v3637
      %v3639 = vsel %vm3008, %v3632, %v3638
      %v3640 = vsel %vm3010, %v3633, %v3639
      %v3641 = vsel %vm3012, %v3634, %v3640
      %v3642 = vpack.c.b16 %v3641, %v3641
      %v3649 = vunpack.c.l.b16 %v3606
      %v3650 = vunpack.c.l.b16 %v3607
      %v3651 = vunpack.c.l.b16 %v3608
      %v3652 = vunpack.c.l.b16 %v3609
      %v3653 = vunpack.c.l.b16 %v3610
      %v3654 = vunpack.c.l.b16 %v3611
      %v3655 = vpack.c.b16 %v3650, %v3649
      %v3656 = vpack.c.b16 %v3652, %v3651
      %v3657 = vpack.c.b16 %v3654, %v3653
      %v3662 = vsel %vm1987, %v3642, 0
      %3664 = vmatprep.subr.bf16.mxu0 0
      %3665 = vmatpush1.bf16.msra.mxu0 %v3655
      %3666 = vmatprep.subr.bf16.mxu0 0
      %3667 = vmatpush1.bf16.msra.mxu0 %v3656
      %3668 = vmatprep.subr.bf16.mxu0 0
      %3669 = vmatpush1.bf16.msra.mxu0 %v3657
      %3670 = vmatprep.subr.bf16.mxu0 0
      %3671 = vmatpush1.bf16.msra.mxu0 0
      %3672 = vmatprep.subr.bf16.mxu0 0
      %3673 = vmatpush1.bf16.msra.mxu0 0
      %3674 = vmatprep.subr.bf16.mxu0 0
      %3675 = vmatpush1.bf16.msra.mxu0 0
      %3676 = vmatprep.subr.bf16.mxu0 0
      %3677 = vmatpush1.bf16.msra.mxu0 0
      %3678 = vmatprep.subr.bf16.mxu0 0
      %3679 = vmatpush1.bf16.msra.mxu0 0
      %3680 = vmatprep.subr.bf16.mxu0 0
      %3681 = vmatpush1.bf16.msra.mxu0 0
      %3682 = vmatprep.subr.bf16.mxu0 0
      %3683 = vmatpush1.bf16.msra.mxu0 0
      %3684 = vmatprep.subr.bf16.mxu0 0
      %3685 = vmatpush1.bf16.msra.mxu0 0
      %3686 = vmatprep.subr.bf16.mxu0 0
      %3687 = vmatpush1.bf16.msra.mxu0 0
      %3688 = vmatprep.subr.bf16.mxu0 0
      %3689 = vmatpush1.bf16.msra.mxu0 0
      %3690 = vmatprep.subr.bf16.mxu0 0
      %3691 = vmatpush1.bf16.msra.mxu0 0
      %3692 = vmatprep.subr.bf16.mxu0 0
      %3693 = vmatpush1.bf16.msra.mxu0 0
      %3694 = vmatprep.subr.bf16.mxu0 0
      %3695 = vmatpush1.bf16.msra.mxu0 0
      %3696 = vmatprep.mubr.bf16.mxu0 0
      %3697 = vmatmul.mubr.bf16.gmra.mrb[0].mxu0 %v3662
      %v3698 = vpop.f32.mrb[0].mxu0
      %v3699 = vadd.f32 %v3617, %v3698
      %v3700 = vpop.f32.mrb[0].mxu0
      %v3701 = vpop.f32.mrb[0].mxu0
      %v3702 = vpop.f32.mrb[0].mxu0
      %3703 = vdwg.mxu0
      %v3704 = vtanh.pop %v3699
      %v3705 = vpack.c.bf16 %v3704, %v3704
      %v3706 = vld [vmem:[%s11] sm:$0xf]
      %v3707 = vld [vmem:[%s11 + $0x4] sm:$0xf]
      %v3708 = vld [vmem:[%s11 + $0x8] sm:$0xf]
      %v3709 = vld [vmem:[%s11 + $0xc] sm:$0xf]
      %v3710 = vld [vmem:[%s11 + $0x10] sm:$0xf]
      %v3711 = vld [vmem:[%s11 + $0x14] sm:$0xf]
      %v3712 = vld [vmem:[%s12] sm:$0x1]
      %v3714 = vlaneseq
      %v3715 = vshrl.u32 %v3714, 7
      %v3716 = vsub.s32 0, %v3715
      %v3717 = vrot.slane %v3712, %v3716
      %v3725 = vunpack.c.l.b16 %v3706
      %v3726 = vunpack.c.l.b16 %v3707
      %v3727 = vunpack.c.l.b16 %v3708
      %v3728 = vunpack.c.l.b16 %v3709
      %v3729 = vunpack.c.l.b16 %v3710
      %v3730 = vunpack.c.l.b16 %v3711
      %v3731 = vpack.c.b16 %v3726, %v3725
      %v3732 = vpack.c.b16 %v3728, %v3727
      %v3733 = vpack.c.b16 %v3730, %v3729
      %v3738 = vsel %vm1987, %v3705, 0
      %3740 = vmatprep.subr.bf16.mxu0 0
      %3741 = vmatpush1.bf16.msra.mxu0 %v3731
      %3742 = vmatprep.subr.bf16.mxu0 0
      %3743 = vmatpush1.bf16.msra.mxu0 %v3732
      %3744 = vmatprep.subr.bf16.mxu0 0
      %3745 = vmatpush1.bf16.msra.mxu0 %v3733
      %3746 = vmatprep.subr.bf16.mxu0 0
      %3747 = vmatpush1.bf16.msra.mxu0 0
      %3748 = vmatprep.subr.bf16.mxu0 0
      %3749 = vmatpush1.bf16.msra.mxu0 0
      %3750 = vmatprep.subr.bf16.mxu0 0
      %3751 = vmatpush1.bf16.msra.mxu0 0
      %3752 = vmatprep.subr.bf16.mxu0 0
      %3753 = vmatpush1.bf16.msra.mxu0 0
      %3754 = vmatprep.subr.bf16.mxu0 0
      %3755 = vmatpush1.bf16.msra.mxu0 0
      %3756 = vmatprep.subr.bf16.mxu0 0
      %3757 = vmatpush1.bf16.msra.mxu0 0
      %3758 = vmatprep.subr.bf16.mxu0 0
      %3759 = vmatpush1.bf16.msra.mxu0 0
      %3760 = vmatprep.subr.bf16.mxu0 0
      %3761 = vmatpush1.bf16.msra.mxu0 0
      %3762 = vmatprep.subr.bf16.mxu0 0
      %3763 = vmatpush1.bf16.msra.mxu0 0
      %3764 = vmatprep.subr.bf16.mxu0 0
      %3765 = vmatpush1.bf16.msra.mxu0 0
      %3766 = vmatprep.subr.bf16.mxu0 0
      %3767 = vmatpush1.bf16.msra.mxu0 0
      %3768 = vmatprep.subr.bf16.mxu0 0
      %3769 = vmatpush1.bf16.msra.mxu0 0
      %3770 = vmatprep.subr.bf16.mxu0 0
      %3771 = vmatpush1.bf16.msra.mxu0 0
      %3772 = vmatprep.mubr.bf16.mxu0 0
      %3773 = vmatmul.mubr.bf16.gmra.mrb[0].mxu0 %v3738
      %v3774 = vpop.f32.mrb[0].mxu0
      %v3775 = vadd.f32 %v3717, %v3774
      %v3776 = vpop.f32.mrb[0].mxu0
      %v3777 = vpop.f32.mrb[0].mxu0
      %v3778 = vpop.f32.mrb[0].mxu0
      %3779 = vdwg.mxu0
      %v3780 = vxor.u32 %v3775, 2147483648
      %v3781 = vmul.f32 %v3780, 1.442695
      %v3782 = vpow.pop %v3781
      %v3783 = vadd.f32 %v3782, 1.0
      %v3784 = vrcp.pop %v3783
      %v3785 = vmul.f32 1.0, %v3784
      %v3786 = vmul.f32 %v3785, %v3054
      %v3787 = vpack.c.bf16 %v3786, %v3786
      %v3788 = vld [vmem:[%s13] sm:$0xf]
      %v3789 = vld [vmem:[%s13 + $0x4] sm:$0xf]
      %v3790 = vld [vmem:[%s13 + $0x8] sm:$0xf]
      %v3791 = vld [vmem:[%s13 + $0xc] sm:$0xf]
      %v3792 = vld [vmem:[%s13 + $0x10] sm:$0xf]
      %v3793 = vld [vmem:[%s13 + $0x14] sm:$0xf]
      %v3794 = vld [vmem:[%s13 + $0x18] sm:$0xf]
      %v3795 = vld [vmem:[%s13 + $0x1c] sm:$0xf]
      %v3796 = vld [vmem:[%s13 + $0x20] sm:$0xf]
      %v3797 = vld [vmem:[%s13 + $0x24] sm:$0xf]
      %v3798 = vld [vmem:[%s13 + $0x28] sm:$0xf]
      %v3799 = vld [vmem:[%s13 + $0x2c] sm:$0xf]
      %v3800 = vld [vmem:[%s14] sm:$0x1]
      %v3802 = vlaneseq
      %v3803 = vshrl.u32 %v3802, 7
      %v3804 = vsub.s32 0, %v3803
      %v3805 = vrot.slane %v3800, %v3804
      %v3819 = vunpack.c.l.b16 %v3788
      %v3820 = vunpack.c.l.b16 %v3789
      %v3821 = vunpack.c.l.b16 %v3790
      %v3822 = vunpack.c.l.b16 %v3791
      %v3823 = vunpack.c.l.b16 %v3792
      %v3824 = vunpack.c.l.b16 %v3793
      %v3825 = vunpack.c.l.b16 %v3794
      %v3826 = vunpack.c.l.b16 %v3795
      %v3827 = vunpack.c.l.b16 %v3796
      %v3828 = vunpack.c.l.b16 %v3797
      %v3829 = vunpack.c.l.b16 %v3798
      %v3830 = vunpack.c.l.b16 %v3799
      %v3831 = vpack.c.b16 %v3820, %v3819
      %v3832 = vpack.c.b16 %v3822, %v3821
      %v3833 = vpack.c.b16 %v3824, %v3823
      %v3834 = vpack.c.b16 %v3826, %v3825
      %v3835 = vpack.c.b16 %v3828, %v3827
      %v3836 = vpack.c.b16 %v3830, %v3829
      %vm3843 = vcmask 785408
      %v3845 = vsel %vm3843, %v3787, 0
      %3847 = vmatprep.subr.bf16.mxu0 0
      %3848 = vmatpush1.bf16.msra.mxu0 %v3831
      %3849 = vmatprep.subr.bf16.mxu0 0
      %3850 = vmatpush1.bf16.msra.mxu0 %v3832
      %3851 = vmatprep.subr.bf16.mxu0 0
      %3852 = vmatpush1.bf16.msra.mxu0 %v3833
      %3853 = vmatprep.subr.bf16.mxu0 0
      %3854 = vmatpush1.bf16.msra.mxu0 %v3834
      %3855 = vmatprep.subr.bf16.mxu0 0
      %3856 = vmatpush1.bf16.msra.mxu0 %v3835
      %3857 = vmatprep.subr.bf16.mxu0 0
      %3858 = vmatpush1.bf16.msra.mxu0 %v3836
      %3859 = vmatprep.subr.bf16.mxu0 0
      %3860 = vmatpush1.bf16.msra.mxu0 0
      %3861 = vmatprep.subr.bf16.mxu0 0
      %3862 = vmatpush1.bf16.msra.mxu0 0
      %3863 = vmatprep.subr.bf16.mxu0 0
      %3864 = vmatpush1.bf16.msra.mxu0 0
      %3865 = vmatprep.subr.bf16.mxu0 0
      %3866 = vmatpush1.bf16.msra.mxu0 0
      %3867 = vmatprep.subr.bf16.mxu0 0
      %3868 = vmatpush1.bf16.msra.mxu0 0
      %3869 = vmatprep.subr.bf16.mxu0 0
      %3870 = vmatpush1.bf16.msra.mxu0 0
      %3871 = vmatprep.subr.bf16.mxu0 0
      %3872 = vmatpush1.bf16.msra.mxu0 0
      %3873 = vmatprep.subr.bf16.mxu0 0
      %3874 = vmatpush1.bf16.msra.mxu0 0
      %3875 = vmatprep.subr.bf16.mxu0 0
      %3876 = vmatpush1.bf16.msra.mxu0 0
      %3877 = vmatprep.subr.bf16.mxu0 0
      %3878 = vmatpush1.bf16.msra.mxu0 0
      %3879 = vmatprep.mubr.bf16.mxu0 0
      %3880 = vmatmul.mubr.bf16.gmra.mrb[0].mxu0 %v3845
      %v3881 = vpop.f32.mrb[0].mxu0
      %v3882 = vadd.f32 %v3805, %v3881
      %v3883 = vpop.f32.mrb[0].mxu0
      %v3884 = vpop.f32.mrb[0].mxu0
      %v3885 = vpop.f32.mrb[0].mxu0
      %3886 = vdwg.mxu0
      %3887 = vst [vmem:[%s516] sm:$0xff] %v3882
      %p3888 = scmp.lt.s32.totalorder %s26, 1
      %s3889 = scalar_select %p3888, %s26, 1
      %s3890 = smul.addr %s3889, 8
      %s3891 = scalar_lea.vmem %s15, %s3890
      // Predicated region
      $region81: #{seg_one_forward.1} parent=79 // pred_check
        %p3892 = pneg %p369
      $region82: #{seg_one_forward.1} parent=79 // pred_check_branch
        %3894 = sbr.rel (%p3892) target = $region84
      $region83: #{seg_one_forward.1} parent=79 // pred_region
        _
      $region84: #{seg_one_forward.1} parent=79 // pred_fallthru
        _
    $region80: #{seg_one_forward.1} parent=5 // pred_fallthru
      _
    %p3895 = scmp.le.s32.totalorder 2, %s21
    // Predicated region
    $region85: #{seg_one_forward.1} parent=5 // pred_check
      %p3896 = pneg %p3895
    $region86: #{seg_one_forward.1} parent=5 // pred_check_branch
      %3898 = sbr.rel (%p3896) target = $region88
    $region87: #{seg_one_forward.1} parent=5 // pred_region
      %s3899 = ssub.s32 %s21, 2
      // Predicated region
      $region89: #{seg_one_forward.1} parent=87 // pred_check
        %p3900 = pneg %p375
      $region90: #{seg_one_forward.1} parent=87 // pred_check_branch
        %3902 = sbr.rel (%p3900) target = $region92
      $region91: #{seg_one_forward.1} parent=87 // pred_region
        %p3903 = scmp.lt.s32.totalorder %s27, 1
        %s3904 = scalar_select %p3903, %s27, 1
        %s3905 = smul.addr %s3904, 8
        %s3906 = scalar_lea.vmem %s15, %s3905
      $region92: #{seg_one_forward.1} parent=87 // pred_fallthru
        _
    $region88: #{seg_one_forward.1} parent=5 // pred_fallthru
      _
  $region6: #{seg_one_forward.1} parent=0 // loop_footer
    %s25 = sadd.s32 1, %s21
  $region7: #{seg_one_forward.1} parent=0 // loop_footer_branch
    %20 = sbr.rel target = $region3
  $region8: #{seg_one_forward.1} parent=0 // loop_exit
    _

</llo_original>
